<compile_context>
chip_gen: v7x
topology: tpu7x:2x2x1
jax: 0.10.0
libtpu: 0.0.40
codegen_flags: <defaults>
</compile_context>

<pallas_src>
import functools

import jax
import jax.numpy as jnp
from jax.experimental import pallas as pl
from jax.experimental.pallas import tpu as pltpu

PADMAX = 2        # largest conv padding in RSU (the dilation-2 encoder)
_CH_PACK = 16     # bf16 sublane pack: channel counts padded to multiples of 16
_LANE = 128


def _round_up(x, m):
    return (x + m - 1) // m * m


def _canon_dims(H, W):
    """Canonical activation layout for spatial size (H, W).

    Pixel (i, j) of channel c lives at lane BASE + i*Wp + j of a (Cp, Lp)
    buffer; every other lane (halo rows/cols, width padding, padded channels)
    is exactly zero.  Wp is the smallest value >= W + 2*PADMAX with H*Wp a
    multiple of 128 (lane-dense, unmasked stores); BASE/TAIL are 128-aligned
    and large enough for a dilation<=PADMAX 3x3 halo.
    """
    Wp = W + 2 * PADMAX
    while (H * Wp) % _LANE:
        Wp += 1
    Mo = H * Wp
    halo = _round_up(PADMAX * (Wp + 1), _LANE)
    BASE, TAIL = halo, halo
    Lp = BASE + Mo + TAIL
    return Wp, Mo, BASE, TAIL, Lp


def to_canonical(x_nchw, dtype=jnp.bfloat16):
    """Embed an NCHW tensor into the canonical (N, Cp, Lp) layout."""
    N, C, H, W = x_nchw.shape
    Wp, Mo, BASE, TAIL, _ = _canon_dims(H, W)
    Cp = _round_up(C, _CH_PACK)
    xp = jnp.pad(x_nchw, ((0, 0), (0, Cp - C), (0, 0), (0, Wp - W)))
    flat = xp.reshape(N, Cp, Mo)
    return jnp.pad(flat, ((0, 0), (0, 0), (BASE, TAIL))).astype(dtype)


def from_canonical(buf, H, W, C=None):
    """Extract the valid NCHW region from a canonical buffer."""
    N, Cp, _ = buf.shape
    Wp, Mo, BASE, _, _ = _canon_dims(H, W)
    x = buf[:, :, BASE:BASE + Mo].reshape(N, Cp, H, Wp)[:, :, :, :W]
    return x if C is None else x[:, :C]


# ----------------------------- Pallas kernel --------------------------------

def _conv_bn_act_kernel(x_ref, w_ref, shift_ref, mask_ref, *rest,
                        Mo, BASE, offsets, act, has_res):
    """One batch element: y = act(W@patches + shift) * colmask [+ residual].

    x_ref    : (1, Cin_pad, Lp) bf16 canonical input (channel concat already
               done in the wrapper; Cin_pad is a multiple of 16).
    w_ref    : (Cout_pad, 9*Cin_pad) bf16 weights, BN scale pre-folded.
    shift_ref: (Cout_pad, 1) f32 folded-BN shift (zeros for conv-only layers).
    mask_ref : (1, Mo) f32 column-validity mask (zeroes the garbage columns so
               the canonical zero-halo invariant holds for the next conv).
    rest     : optional (1, Cout_pad, Lp) bf16 residual, then the output
               (1, Cout_pad, Lp) in canonical layout.
    """
    if has_res:
        res_ref, o_ref = rest
    else:
        (o_ref,) = rest

    x = x_ref[0]                                       # (Cin_pad, Lp) bf16
    # 9 sublane-aligned tap slices of the canonical buffer; lane offsets are
    # unaligned by construction.
    # TODO(synk): dump MLIR (pl.lower_as_mlir) and, if each unaligned slice
    # materializes a rotated VMEM copy, build taps with
    # pltpu.roll(x, -off, axis=-1)[:, :Mo] instead (XLU slot, co-issues).
    patches = jnp.concatenate([x[:, off:off + Mo] for off in offsets], axis=0)

    # Single deep-K bf16 MXU matmul, f32 accumulation (scale folded into w).
    acc = jnp.dot(w_ref[...], patches, preferred_element_type=jnp.float32)
    y = acc + shift_ref[...]                           # (Cout_pad, Mo) f32

    if act == "relu":
        y = jnp.maximum(y, 0.0)
    else:                                              # nn.LeakyReLU, slope 0.01
        y = jnp.where(y > 0, y, 0.01 * y)

    # Zero the Wp-W garbage columns so downstream convs read correct zeros.
    y = y * mask_ref[...]

    if has_res:
        res = res_ref[0]                               # canonical, same (H, W)
        y = y + res[:, BASE:BASE + Mo].astype(jnp.float32)

    cp, lp = o_ref.shape[1], o_ref.shape[2]
    # Zero the halo, then one lane-aligned (multiple-of-128) unmasked store.
    o_ref[0] = jnp.zeros((cp, lp), o_ref.dtype)
    o_ref[0, :, BASE:BASE + Mo] = y.astype(o_ref.dtype)


def conv_layer(x_bufs, real_cins, w_hwio, scale, shift, *, H, W, dilation=1,
               act="relu", residual=None, out_dtype=jnp.bfloat16):
    """3x3 conv (+folded BN) (+act) (+residual) on canonical-layout inputs.

    x_bufs   : list of canonical (N, Cp_i, Lp) bf16 buffers (channel concat —
               fuses torch.cat into the conv), all at spatial size (H, W).
    real_cins: real channel count of each buffer (matches w's input-ch order).
    w_hwio   : (3, 3, sum(real_cins), Cout) f32 weights.
    Returns a canonical (N, Cout_pad, Lp) buffer of dtype `out_dtype`.
    """
    Wp, Mo, BASE, TAIL, Lp = _canon_dims(H, W)
    N = x_bufs[0].shape[0]
    assert dilation <= PADMAX
    for xb in x_bufs:
        assert xb.shape[0] == N and xb.shape[2] == Lp, (xb.shape, Lp)

    # Pre-concatenate decoder inputs in the wrapper (one ref into the kernel).
    x = x_bufs[0] if len(x_bufs) == 1 else jnp.concatenate(x_bufs, axis=1)
    cin_pads = [int(xb.shape[1]) for xb in x_bufs]
    Cin_pad_tot = sum(cin_pads)

    KH, KW, Cin_real_tot, Cout = w_hwio.shape
    assert (KH, KW) == (3, 3) and sum(real_cins) == Cin_real_tot
    Cout_pad = _round_up(Cout, _CH_PACK)
    K = KH * KW * Cin_pad_tot

    # Fold BN scale into the weights in f32, pad the input-channel blocks to
    # each buffer's padded width, pad Cout, then flatten tap-major:
    # K index = (dy*3 + dx)*Cin_pad_tot + cin.
    wf = w_hwio.astype(jnp.float32) * scale.reshape(1, 1, 1, Cout)
    blocks, start = [], 0
    for cr, cp in zip(real_cins, cin_pads):
        blk = wf[:, :, start:start + cr, :]
        blocks.append(jnp.pad(blk, ((0, 0), (0, 0), (0, cp - cr), (0, 0))))
        start += cr
    wf = blocks[0] if len(blocks) == 1 else jnp.concatenate(blocks, axis=2)
    wf = jnp.pad(wf, ((0, 0), (0, 0), (0, 0), (0, Cout_pad - Cout)))
    w2 = jnp.transpose(wf, (3, 0, 1, 2)).reshape(Cout_pad, K).astype(jnp.bfloat16)

    shift2 = jnp.pad(shift.astype(jnp.float32),
                     (0, Cout_pad - Cout)).reshape(Cout_pad, 1)

    # Column-validity mask (1 for j < W, 0 for the garbage columns).
    colmask = ((jnp.arange(Mo, dtype=jnp.int32) % Wp) < W)
    colmask = colmask.astype(jnp.float32).reshape(1, Mo)

    # Tap lane offsets into the canonical input (padding == dilation for k=3).
    p = dilation
    offsets = tuple(BASE - p * (Wp + 1) + dilation * (dy * Wp + dx)
                    for dy in range(3) for dx in range(3))

    inputs = [x, w2, shift2, colmask]
    in_specs = [
        pl.BlockSpec((1, Cin_pad_tot, Lp), lambda n: (n, 0, 0)),
        pl.BlockSpec((Cout_pad, K), lambda n: (0, 0)),
        pl.BlockSpec((Cout_pad, 1), lambda n: (0, 0)),
        pl.BlockSpec((1, Mo), lambda n: (0, 0)),
    ]
    has_res = residual is not None
    if has_res:
        assert residual.shape == (N, Cout_pad, Lp)
        inputs.append(residual)
        in_specs.append(pl.BlockSpec((1, Cout_pad, Lp), lambda n: (n, 0, 0)))

    kernel = functools.partial(_conv_bn_act_kernel, Mo=Mo, BASE=BASE,
                               offsets=offsets, act=act, has_res=has_res)

    itemsize_out = jnp.dtype(out_dtype).itemsize
    cost = pl.CostEstimate(
        flops=2 * N * Cout_pad * K * Mo,
        transcendentals=0,
        bytes_accessed=(N * Cin_pad_tot * Lp * 2 + Cout_pad * K * 2
                        + Cout_pad * 4 + Mo * 4
                        + (N * Cout_pad * Lp * 2 if has_res else 0)
                        + N * Cout_pad * Lp * itemsize_out),
    )

    # grid=(N,) keeps a 'parallel' axis so dual-TC chips (v7x) split the batch.
    # TODO(synk): on single-TC v5e/v6e fold the batch into the lane dim (one
    # (Cout_pad, K) x (K, N*Mo) matmul, grid=(1,)) to amortize per-step cost.
    # TODO(synk): for production image sizes add an H row-strip grid axis with
    # a dilation-aware halo and set vmem_limit_bytes (v7x VMEM is 64 MiB).
    return pl.pallas_call(
        kernel,
        out_shape=jax.ShapeDtypeStruct((N, Cout_pad, Lp), out_dtype),
        grid=(N,),
        in_specs=in_specs,
        out_specs=pl.BlockSpec((1, Cout_pad, Lp), lambda n: (n, 0, 0)),
        compiler_params=pltpu.CompilerParams(dimension_semantics=("parallel",)),
        cost_estimate=cost,
    )(*inputs)


# ------------------------------ XLA glue ops ---------------------------------

def max_pool_2x2(x):
    """F.max_pool2d(kernel=2, stride=2, ceil_mode=True) on NCHW."""
    # TODO(synk): fuse into the preceding conv's epilogue (reduce before store).
    N, C, H, W = x.shape
    Hc = -(-H // 2) * 2
    Wc = -(-W // 2) * 2
    if (Hc, Wc) != (H, W):
        x = jnp.pad(x, ((0, 0), (0, 0), (0, Hc - H), (0, Wc - W)),
                    constant_values=-jnp.inf)
    return x.reshape(N, C, Hc // 2, 2, Wc // 2, 2).max(axis=(3, 5))


def upsample_bilinear(x, out_h, out_w):
    """F.interpolate(mode='bilinear', align_corners=False) on NCHW."""
    # TODO(synk): fold into the decoder conv's input build (fixed per-size
    # interpolation weights applied on the canonical tile).
    N, C, H, W = x.shape

    def coords(in_size, out_size):
        scale = in_size / out_size
        src = jnp.maximum(
            (jnp.arange(out_size, dtype=jnp.float32) + 0.5) * scale - 0.5, 0.0)
        i0 = jnp.minimum(jnp.floor(src).astype(jnp.int32), in_size - 1)
        i1 = jnp.minimum(i0 + 1, in_size - 1)
        w1 = src - i0.astype(jnp.float32)
        return i0, i1, w1

    hi0, hi1, hw1 = coords(H, out_h)
    wi0, wi1, ww1 = coords(W, out_w)
    x_h = (x[:, :, hi0, :] * (1.0 - hw1)[None, None, :, None]
           + x[:, :, hi1, :] * hw1[None, None, :, None])
    x_hw = (x_h[:, :, :, wi0] * (1.0 - ww1)[None, None, None, :]
            + x_h[:, :, :, wi1] * ww1[None, None, None, :])
    return x_hw


# --------------------------- parameters & forward ----------------------------

def init_rsu_params(key, height, in_ch, mid_ch, out_ch):
    assert height >= 2
    keys = iter(jax.random.split(key, 4 * height + 8))

    def conv_w(cin, cout, k=3):
        return jax.random.normal(next(keys), (k, k, cin, cout), jnp.float32) * 0.1

    def bn(cout):
        # BatchNorm folded to (scale, shift); inference-mode running stats.
        gamma = 1.0 + 0.1 * jax.random.normal(next(keys), (cout,), jnp.float32)
        beta = 0.1 * jax.random.normal(next(keys), (cout,), jnp.float32)
        mean = 0.1 * jax.random.normal(next(keys), (cout,), jnp.float32)
        var = 1.0 + 0.1 * jnp.abs(jax.random.normal(next(keys), (cout,), jnp.float32))
        eps = 1e-5
        scale = gamma / jnp.sqrt(var + eps)
        shift = beta - mean * scale
        return scale, shift

    params = {"conv_in": {"w": conv_w(in_ch, out_ch), "bn": bn(out_ch)}}

    enc = [{"w": conv_w(out_ch, mid_ch), "down": False}]          # flag=False
    for _ in range(height - 2):
        enc.append({"w": conv_w(mid_ch, mid_ch), "down": True})   # flag=True
    enc.append({"w": conv_w(mid_ch, mid_ch), "bn": bn(mid_ch), "dil": 2})
    params["enc"] = enc

    dec = [{"w": conv_w(mid_ch * 2, mid_ch), "up": False}]        # flag=False
    for i in range(height - 2):
        oc = mid_ch if i < height - 3 else out_ch
        dec.append({"w": conv_w(mid_ch * 2, oc), "up": True})     # flag=True
    params["dec"] = dec
    return params


def rsu_forward(params, x_nchw):
    N, in_ch, H, W = x_nchw.shape
    out_ch = int(params["conv_in"]["w"].shape[-1])
    ones = lambda c: jnp.ones((c,), jnp.float32)
    zeros = lambda c: jnp.zeros((c,), jnp.float32)

    x_buf = to_canonical(x_nchw)

    s, b = params["conv_in"]["bn"]
    x_in = conv_layer([x_buf], [in_ch], params["conv_in"]["w"], s, b,
                      H=H, W=W, act="relu")                 # ConvBNReLU

    x, x_c = x_in, out_ch
    cur_h, cur_w = H, W
    enc_outs = []
    for layer in params["enc"]:
        w = layer["w"]
        cin_real, cout = int(w.shape[2]), int(w.shape[3])
        if "bn" in layer:                 # final encoder: ConvBNReLU, dilation=2
            s, b = layer["bn"]
            x = conv_layer([x], [cin_real], w, s, b, H=cur_h, W=cur_w,
                           dilation=layer["dil"], act="relu")
        else:                             # DownConvBNReLU: (pool) + LeakyReLU(conv)
            if layer["down"]:
                pooled = max_pool_2x2(from_canonical(x, cur_h, cur_w))
                cur_h, cur_w = int(pooled.shape[2]), int(pooled.shape[3])
                x = to_canonical(pooled)
            x = conv_layer([x], [cin_real], w, ones(cout), zeros(cout),
                           H=cur_h, W=cur_w, act="leaky_relu")
        x_c = cout
        enc_outs.append((x, x_c, cur_h, cur_w))

    x, x_c, cur_h, cur_w = enc_outs.pop()
    n_dec = len(params["dec"])
    for di, layer in enumerate(params["dec"]):    # UpConvBNReLU decoders
        x2, x2_c, h2, w2_ = enc_outs.pop()
        if layer["up"]:
            xs = from_canonical(x, cur_h, cur_w).astype(jnp.float32)
            xs = upsample_bilinear(xs, h2, w2_)
            x = to_canonical(xs)
            cur_h, cur_w = h2, w2_
        w = layer["w"]
        cout = int(w.shape[3])
        is_last = di == n_dec - 1
        # torch.cat([x, x2], dim=1) fused into the conv via the input list;
        # the final `x + x_in` residual fused via `residual=`.
        x = conv_layer([x, x2], [x_c, x2_c], w, ones(cout), zeros(cout),
                       H=cur_h, W=cur_w, act="leaky_relu",
                       residual=x_in if is_last else None,
                       out_dtype=jnp.float32 if is_last else jnp.bfloat16)
        x_c = cout

    return from_canonical(x, H, W, C=out_ch)


# ---------------------------------- main -------------------------------------

if __name__ == "__main__":
    key = jax.random.PRNGKey(0)
    k_param, k_x = jax.random.split(key)

    height, in_ch, mid_ch, out_ch = 3, 4, 8, 8
    N, H, W = 2, 16, 16

    params = init_rsu_params(k_param, height, in_ch, mid_ch, out_ch)
    x_nchw = jax.random.normal(k_x, (N, in_ch, H, W), jnp.float32)  # PyTorch NCHW

    fwd = jax.jit(lambda x: rsu_forward(params, x))
    y_nchw = fwd(x_nchw)
    jax.block_until_ready(y_nchw)

    assert y_nchw.shape == (N, out_ch, H, W), y_nchw.shape
    assert jnp.all(jnp.isfinite(y_nchw))
    print("KERNEL_OK")
</pallas_src>

<mosaic_0001>
module attributes {stable_mosaic.version = 11 : i64} {
  func.func @_conv_bn_act_kernel(%arg0: i32, %arg1: memref<1x16x640xbf16, #tpu.memory_space<vmem>>, %arg2: memref<16x144xbf16, #tpu.memory_space<vmem>>, %arg3: memref<16x1xf32, #tpu.memory_space<vmem>>, %arg4: memref<1x384xf32, #tpu.memory_space<vmem>>, %arg5: memref<1x16x640xbf16, #tpu.memory_space<vmem>>) attributes {dimension_semantics = [#tpu.dimension_semantics<parallel>], iteration_bounds = array<i64: 2>, scalar_prefetch = 0 : i64, scratch_operands = 0 : i64, tpu.core_type = #tpu.core_type<tc>, window_params = [{transform_indices = @transform_0, window_bounds = array<i64: 1, 16, 640>}, {pipeline_mode = #tpu.pipeline_mode<synchronous>, transform_indices = @transform_1, window_bounds = array<i64: 16, 144>}, {pipeline_mode = #tpu.pipeline_mode<synchronous>, transform_indices = @transform_2, window_bounds = array<i64: 16, 1>}, {pipeline_mode = #tpu.pipeline_mode<synchronous>, transform_indices = @transform_3, window_bounds = array<i64: 1, 384>}, {transform_indices = @transform_4, window_bounds = array<i64: 1, 16, 640>}]} {
    %c0 = arith.constant 0 : index
    %c0_0 = arith.constant 0 : index
    %c0_1 = arith.constant 0 : index
    %0 = vector.load %arg1[%c0, %c0_0, %c0_1] : memref<1x16x640xbf16, #tpu.memory_space<vmem>>, vector<1x16x640xbf16>
    %1 = vector.shape_cast %0 : vector<1x16x640xbf16> to vector<16x640xbf16>
    %2 = vector.extract_strided_slice %1 {offsets = [0, 103], sizes = [16, 384], strides = [1, 1]} : vector<16x640xbf16> to vector<16x384xbf16>
    %3 = vector.extract_strided_slice %1 {offsets = [0, 104], sizes = [16, 384], strides = [1, 1]} : vector<16x640xbf16> to vector<16x384xbf16>
    %4 = vector.extract_strided_slice %1 {offsets = [0, 105], sizes = [16, 384], strides = [1, 1]} : vector<16x640xbf16> to vector<16x384xbf16>
    %5 = vector.extract_strided_slice %1 {offsets = [0, 127], sizes = [16, 384], strides = [1, 1]} : vector<16x640xbf16> to vector<16x384xbf16>
    %6 = vector.extract_strided_slice %1 {offsets = [0, 128], sizes = [16, 384], strides = [1, 1]} : vector<16x640xbf16> to vector<16x384xbf16>
    %7 = vector.extract_strided_slice %1 {offsets = [0, 129], sizes = [16, 384], strides = [1, 1]} : vector<16x640xbf16> to vector<16x384xbf16>
    %8 = vector.extract_strided_slice %1 {offsets = [0, 151], sizes = [16, 384], strides = [1, 1]} : vector<16x640xbf16> to vector<16x384xbf16>
    %9 = vector.extract_strided_slice %1 {offsets = [0, 152], sizes = [16, 384], strides = [1, 1]} : vector<16x640xbf16> to vector<16x384xbf16>
    %10 = vector.extract_strided_slice %1 {offsets = [0, 153], sizes = [16, 384], strides = [1, 1]} : vector<16x640xbf16> to vector<16x384xbf16>
    %11 = tpu.concatenate %2, %3, %4, %5, %6, %7, %8, %9, %10 in 0 : vector<16x384xbf16>, vector<16x384xbf16>, vector<16x384xbf16>, vector<16x384xbf16>, vector<16x384xbf16>, vector<16x384xbf16>, vector<16x384xbf16>, vector<16x384xbf16>, vector<16x384xbf16> -> vector<144x384xbf16>
    %c0_2 = arith.constant 0 : index
    %c0_3 = arith.constant 0 : index
    %12 = vector.load %arg2[%c0_2, %c0_3] : memref<16x144xbf16, #tpu.memory_space<vmem>>, vector<16x144xbf16>
    %cst = arith.constant dense<0.000000e+00> : vector<16x384xf32>
    %13 = tpu.matmul %12, %11, %cst {dimension_numbers = #tpu.dot_dimension_numbers<[1], [0], [0], [1], [0, 0, 1, 1], [], []>} : vector<16x144xbf16>, vector<144x384xbf16>, vector<16x384xf32> -> vector<16x384xf32>
    %c0_4 = arith.constant 0 : index
    %c0_5 = arith.constant 0 : index
    %14 = vector.load %arg3[%c0_4, %c0_5] : memref<16x1xf32, #tpu.memory_space<vmem>>, vector<16x1xf32>
    %15 = vector.broadcast %14 : vector<16x1xf32> to vector<16x384xf32>
    %16 = arith.addf %13, %15 : vector<16x384xf32>
    %cst_6 = arith.constant 0.000000e+00 : f32
    %17 = vector.broadcast %cst_6 : f32 to vector<16x384xf32>
    %18 = arith.cmpf ogt, %16, %17 : vector<16x384xf32>
    %cst_7 = arith.constant 0.00999999977 : f32
    %19 = vector.broadcast %cst_7 : f32 to vector<16x384xf32>
    %20 = arith.mulf %19, %16 : vector<16x384xf32>
    %21 = arith.select %18, %16, %20 : vector<16x384xi1>, vector<16x384xf32>
    %c0_8 = arith.constant 0 : index
    %c0_9 = arith.constant 0 : index
    %22 = vector.load %arg4[%c0_8, %c0_9] : memref<1x384xf32, #tpu.memory_space<vmem>>, vector<1x384xf32>
    %23 = vector.broadcast %22 : vector<1x384xf32> to vector<16x384xf32>
    %24 = arith.mulf %21, %23 : vector<16x384xf32>
    %cst_10 = arith.constant 0.000000e+00 : bf16
    %25 = vector.broadcast %cst_10 : bf16 to vector<16x640xbf16>
    %c0_11 = arith.constant 0 : index
    %c0_12 = arith.constant 0 : index
    %c0_13 = arith.constant 0 : index
    %26 = vector.load %arg5[%c0_11, %c0_12, %c0_13] : memref<1x16x640xbf16, #tpu.memory_space<vmem>>, vector<1x16x640xbf16>
    %27 = vector.shape_cast %26 : vector<1x16x640xbf16> to vector<16x640xbf16>
    %28 = vector.shape_cast %25 : vector<16x640xbf16> to vector<1x16x640xbf16>
    tpu.vector_store %arg5[%c0_11, %c0_12, %c0_13], %28 {strides = array<i32>} : memref<1x16x640xbf16, #tpu.memory_space<vmem>>, vector<1x16x640xbf16>,
    %29 = arith.truncf %24 : vector<16x384xf32> to vector<16x384xbf16>
    %c0_14 = arith.constant 0 : index
    %c0_15 = arith.constant 0 : index
    %c128 = arith.constant 128 : index
    %30 = vector.load %arg5[%c0_14, %c0_15, %c128] : memref<1x16x640xbf16, #tpu.memory_space<vmem>>, vector<1x16x384xbf16>
    %31 = vector.shape_cast %30 : vector<1x16x384xbf16> to vector<16x384xbf16>
    %32 = vector.shape_cast %29 : vector<16x384xbf16> to vector<1x16x384xbf16>
    tpu.vector_store %arg5[%c0_14, %c0_15, %c128], %32 {strides = array<i32>} : memref<1x16x640xbf16, #tpu.memory_space<vmem>>, vector<1x16x384xbf16>,
    return
  }
  func.func @transform_0(%arg0: i32) -> (i32, i32, i32) {
    %c0_i32 = arith.constant 0 : i32
    %c0_i32_0 = arith.constant 0 : i32
    %c0_i32_1 = arith.constant 0 : i32
    return %arg0, %c0_i32, %c0_i32_0 : i32, i32, i32
  }
  func.func @transform_1(%arg0: i32) -> (i32, i32) {
    %c0_i32 = arith.constant 0 : i32
    %c0_i32_0 = arith.constant 0 : i32
    %c0_i32_1 = arith.constant 0 : i32
    return %c0_i32, %c0_i32_0 : i32, i32
  }
  func.func @transform_2(%arg0: i32) -> (i32, i32) {
    %c0_i32 = arith.constant 0 : i32
    %c0_i32_0 = arith.constant 0 : i32
    %c0_i32_1 = arith.constant 0 : i32
    return %c0_i32, %c0_i32_0 : i32, i32
  }
  func.func @transform_3(%arg0: i32) -> (i32, i32) {
    %c0_i32 = arith.constant 0 : i32
    %c0_i32_0 = arith.constant 0 : i32
    %c0_i32_1 = arith.constant 0 : i32
    return %c0_i32, %c0_i32_0 : i32, i32
  }
  func.func @transform_4(%arg0: i32) -> (i32, i32, i32) {
    %c0_i32 = arith.constant 0 : i32
    %c0_i32_0 = arith.constant 0 : i32
    %c0_i32_1 = arith.constant 0 : i32
    return %arg0, %c0_i32, %c0_i32_0 : i32, i32, i32
  }
}

module attributes {stable_mosaic.version = 11 : i64} {
  func.func @_conv_bn_act_kernel(%arg0: i32, %arg1: memref<1x16x640xbf16, #tpu.memory_space<vmem>>, %arg2: memref<16x144xbf16, #tpu.memory_space<vmem>>, %arg3: memref<16x1xf32, #tpu.memory_space<vmem>>, %arg4: memref<1x384xf32, #tpu.memory_space<vmem>>, %arg5: memref<1x16x640xbf16, #tpu.memory_space<vmem>>) attributes {dimension_semantics = [#tpu.dimension_semantics<parallel>], iteration_bounds = array<i64: 2>, scalar_prefetch = 0 : i64, scratch_operands = 0 : i64, tpu.core_type = #tpu.core_type<tc>, window_params = [{transform_indices = @transform_0, window_bounds = array<i64: 1, 16, 640>}, {pipeline_mode = #tpu.pipeline_mode<synchronous>, transform_indices = @transform_1, window_bounds = array<i64: 16, 144>}, {pipeline_mode = #tpu.pipeline_mode<synchronous>, transform_indices = @transform_2, window_bounds = array<i64: 16, 1>}, {pipeline_mode = #tpu.pipeline_mode<synchronous>, transform_indices = @transform_3, window_bounds = array<i64: 1, 384>}, {transform_indices = @transform_4, window_bounds = array<i64: 1, 16, 640>}]} {
    %c0 = arith.constant 0 : index
    %c0_0 = arith.constant 0 : index
    %c0_1 = arith.constant 0 : index
    %0 = vector.load %arg1[%c0, %c0_0, %c0_1] : memref<1x16x640xbf16, #tpu.memory_space<vmem>>, vector<1x16x640xbf16>
    %1 = vector.shape_cast %0 : vector<1x16x640xbf16> to vector<16x640xbf16>
    %2 = vector.extract_strided_slice %1 {offsets = [0, 103], sizes = [16, 384], strides = [1, 1]} : vector<16x640xbf16> to vector<16x384xbf16>
    %3 = vector.extract_strided_slice %1 {offsets = [0, 104], sizes = [16, 384], strides = [1, 1]} : vector<16x640xbf16> to vector<16x384xbf16>
    %4 = vector.extract_strided_slice %1 {offsets = [0, 105], sizes = [16, 384], strides = [1, 1]} : vector<16x640xbf16> to vector<16x384xbf16>
    %5 = vector.extract_strided_slice %1 {offsets = [0, 127], sizes = [16, 384], strides = [1, 1]} : vector<16x640xbf16> to vector<16x384xbf16>
    %6 = vector.extract_strided_slice %1 {offsets = [0, 128], sizes = [16, 384], strides = [1, 1]} : vector<16x640xbf16> to vector<16x384xbf16>
    %7 = vector.extract_strided_slice %1 {offsets = [0, 129], sizes = [16, 384], strides = [1, 1]} : vector<16x640xbf16> to vector<16x384xbf16>
    %8 = vector.extract_strided_slice %1 {offsets = [0, 151], sizes = [16, 384], strides = [1, 1]} : vector<16x640xbf16> to vector<16x384xbf16>
    %9 = vector.extract_strided_slice %1 {offsets = [0, 152], sizes = [16, 384], strides = [1, 1]} : vector<16x640xbf16> to vector<16x384xbf16>
    %10 = vector.extract_strided_slice %1 {offsets = [0, 153], sizes = [16, 384], strides = [1, 1]} : vector<16x640xbf16> to vector<16x384xbf16>
    %11 = tpu.concatenate %2, %3, %4, %5, %6, %7, %8, %9, %10 in 0 : vector<16x384xbf16>, vector<16x384xbf16>, vector<16x384xbf16>, vector<16x384xbf16>, vector<16x384xbf16>, vector<16x384xbf16>, vector<16x384xbf16>, vector<16x384xbf16>, vector<16x384xbf16> -> vector<144x384xbf16>
    %c0_2 = arith.constant 0 : index
    %c0_3 = arith.constant 0 : index
    %12 = vector.load %arg2[%c0_2, %c0_3] : memref<16x144xbf16, #tpu.memory_space<vmem>>, vector<16x144xbf16>
    %cst = arith.constant dense<0.000000e+00> : vector<16x384xf32>
    %13 = tpu.matmul %12, %11, %cst {dimension_numbers = #tpu.dot_dimension_numbers<[1], [0], [0], [1], [0, 0, 1, 1], [], []>} : vector<16x144xbf16>, vector<144x384xbf16>, vector<16x384xf32> -> vector<16x384xf32>
    %c0_4 = arith.constant 0 : index
    %c0_5 = arith.constant 0 : index
    %14 = vector.load %arg3[%c0_4, %c0_5] : memref<16x1xf32, #tpu.memory_space<vmem>>, vector<16x1xf32>
    %15 = vector.broadcast %14 : vector<16x1xf32> to vector<16x384xf32>
    %16 = arith.addf %13, %15 : vector<16x384xf32>
    %cst_6 = arith.constant 0.000000e+00 : f32
    %17 = vector.broadcast %cst_6 : f32 to vector<16x384xf32>
    %18 = arith.maximumf %16, %17 : vector<16x384xf32>
    %c0_7 = arith.constant 0 : index
    %c0_8 = arith.constant 0 : index
    %19 = vector.load %arg4[%c0_7, %c0_8] : memref<1x384xf32, #tpu.memory_space<vmem>>, vector<1x384xf32>
    %20 = vector.broadcast %19 : vector<1x384xf32> to vector<16x384xf32>
    %21 = arith.mulf %18, %20 : vector<16x384xf32>
    %cst_9 = arith.constant 0.000000e+00 : bf16
    %22 = vector.broadcast %cst_9 : bf16 to vector<16x640xbf16>
    %c0_10 = arith.constant 0 : index
    %c0_11 = arith.constant 0 : index
    %c0_12 = arith.constant 0 : index
    %23 = vector.load %arg5[%c0_10, %c0_11, %c0_12] : memref<1x16x640xbf16, #tpu.memory_space<vmem>>, vector<1x16x640xbf16>
    %24 = vector.shape_cast %23 : vector<1x16x640xbf16> to vector<16x640xbf16>
    %25 = vector.shape_cast %22 : vector<16x640xbf16> to vector<1x16x640xbf16>
    tpu.vector_store %arg5[%c0_10, %c0_11, %c0_12], %25 {strides = array<i32>} : memref<1x16x640xbf16, #tpu.memory_space<vmem>>, vector<1x16x640xbf16>,
    %26 = arith.truncf %21 : vector<16x384xf32> to vector<16x384xbf16>
    %c0_13 = arith.constant 0 : index
    %c0_14 = arith.constant 0 : index
    %c128 = arith.constant 128 : index
    %27 = vector.load %arg5[%c0_13, %c0_14, %c128] : memref<1x16x640xbf16, #tpu.memory_space<vmem>>, vector<1x16x384xbf16>
    %28 = vector.shape_cast %27 : vector<1x16x384xbf16> to vector<16x384xbf16>
    %29 = vector.shape_cast %26 : vector<16x384xbf16> to vector<1x16x384xbf16>
    tpu.vector_store %arg5[%c0_13, %c0_14, %c128], %29 {strides = array<i32>} : memref<1x16x640xbf16, #tpu.memory_space<vmem>>, vector<1x16x384xbf16>,
    return
  }
  func.func @transform_0(%arg0: i32) -> (i32, i32, i32) {
    %c0_i32 = arith.constant 0 : i32
    %c0_i32_0 = arith.constant 0 : i32
    %c0_i32_1 = arith.constant 0 : i32
    return %arg0, %c0_i32, %c0_i32_0 : i32, i32, i32
  }
  func.func @transform_1(%arg0: i32) -> (i32, i32) {
    %c0_i32 = arith.constant 0 : i32
    %c0_i32_0 = arith.constant 0 : i32
    %c0_i32_1 = arith.constant 0 : i32
    return %c0_i32, %c0_i32_0 : i32, i32
  }
  func.func @transform_2(%arg0: i32) -> (i32, i32) {
    %c0_i32 = arith.constant 0 : i32
    %c0_i32_0 = arith.constant 0 : i32
    %c0_i32_1 = arith.constant 0 : i32
    return %c0_i32, %c0_i32_0 : i32, i32
  }
  func.func @transform_3(%arg0: i32) -> (i32, i32) {
    %c0_i32 = arith.constant 0 : i32
    %c0_i32_0 = arith.constant 0 : i32
    %c0_i32_1 = arith.constant 0 : i32
    return %c0_i32, %c0_i32_0 : i32, i32
  }
  func.func @transform_4(%arg0: i32) -> (i32, i32, i32) {
    %c0_i32 = arith.constant 0 : i32
    %c0_i32_0 = arith.constant 0 : i32
    %c0_i32_1 = arith.constant 0 : i32
    return %arg0, %c0_i32, %c0_i32_0 : i32, i32, i32
  }
}

module attributes {stable_mosaic.version = 11 : i64} {
  func.func @_conv_bn_act_kernel(%arg0: i32, %arg1: memref<1x16x384xbf16, #tpu.memory_space<vmem>>, %arg2: memref<16x144xbf16, #tpu.memory_space<vmem>>, %arg3: memref<16x1xf32, #tpu.memory_space<vmem>>, %arg4: memref<1x128xf32, #tpu.memory_space<vmem>>, %arg5: memref<1x16x384xbf16, #tpu.memory_space<vmem>>) attributes {dimension_semantics = [#tpu.dimension_semantics<parallel>], iteration_bounds = array<i64: 2>, scalar_prefetch = 0 : i64, scratch_operands = 0 : i64, tpu.core_type = #tpu.core_type<tc>, window_params = [{transform_indices = @transform_0, window_bounds = array<i64: 1, 16, 384>}, {pipeline_mode = #tpu.pipeline_mode<synchronous>, transform_indices = @transform_1, window_bounds = array<i64: 16, 144>}, {pipeline_mode = #tpu.pipeline_mode<synchronous>, transform_indices = @transform_2, window_bounds = array<i64: 16, 1>}, {pipeline_mode = #tpu.pipeline_mode<synchronous>, transform_indices = @transform_3, window_bounds = array<i64: 1, 128>}, {transform_indices = @transform_4, window_bounds = array<i64: 1, 16, 384>}]} {
    %c0 = arith.constant 0 : index
    %c0_0 = arith.constant 0 : index
    %c0_1 = arith.constant 0 : index
    %0 = vector.load %arg1[%c0, %c0_0, %c0_1] : memref<1x16x384xbf16, #tpu.memory_space<vmem>>, vector<1x16x384xbf16>
    %1 = vector.shape_cast %0 : vector<1x16x384xbf16> to vector<16x384xbf16>
    %2 = vector.extract_strided_slice %1 {offsets = [0, 111], sizes = [16, 128], strides = [1, 1]} : vector<16x384xbf16> to vector<16x128xbf16>
    %3 = vector.extract_strided_slice %1 {offsets = [0, 112], sizes = [16, 128], strides = [1, 1]} : vector<16x384xbf16> to vector<16x128xbf16>
    %4 = vector.extract_strided_slice %1 {offsets = [0, 113], sizes = [16, 128], strides = [1, 1]} : vector<16x384xbf16> to vector<16x128xbf16>
    %5 = vector.extract_strided_slice %1 {offsets = [0, 127], sizes = [16, 128], strides = [1, 1]} : vector<16x384xbf16> to vector<16x128xbf16>
    %6 = vector.extract_strided_slice %1 {offsets = [0, 128], sizes = [16, 128], strides = [1, 1]} : vector<16x384xbf16> to vector<16x128xbf16>
    %7 = vector.extract_strided_slice %1 {offsets = [0, 129], sizes = [16, 128], strides = [1, 1]} : vector<16x384xbf16> to vector<16x128xbf16>
    %8 = vector.extract_strided_slice %1 {offsets = [0, 143], sizes = [16, 128], strides = [1, 1]} : vector<16x384xbf16> to vector<16x128xbf16>
    %9 = vector.extract_strided_slice %1 {offsets = [0, 144], sizes = [16, 128], strides = [1, 1]} : vector<16x384xbf16> to vector<16x128xbf16>
    %10 = vector.extract_strided_slice %1 {offsets = [0, 145], sizes = [16, 128], strides = [1, 1]} : vector<16x384xbf16> to vector<16x128xbf16>
    %11 = tpu.concatenate %2, %3, %4, %5, %6, %7, %8, %9, %10 in 0 : vector<16x128xbf16>, vector<16x128xbf16>, vector<16x128xbf16>, vector<16x128xbf16>, vector<16x128xbf16>, vector<16x128xbf16>, vector<16x128xbf16>, vector<16x128xbf16>, vector<16x128xbf16> -> vector<144x128xbf16>
    %c0_2 = arith.constant 0 : index
    %c0_3 = arith.constant 0 : index
    %12 = vector.load %arg2[%c0_2, %c0_3] : memref<16x144xbf16, #tpu.memory_space<vmem>>, vector<16x144xbf16>
    %cst = arith.constant dense<0.000000e+00> : vector<16x128xf32>
    %13 = tpu.matmul %12, %11, %cst {dimension_numbers = #tpu.dot_dimension_numbers<[1], [0], [0], [1], [0, 0, 1, 1], [], []>} : vector<16x144xbf16>, vector<144x128xbf16>, vector<16x128xf32> -> vector<16x128xf32>
    %c0_4 = arith.constant 0 : index
    %c0_5 = arith.constant 0 : index
    %14 = vector.load %arg3[%c0_4, %c0_5] : memref<16x1xf32, #tpu.memory_space<vmem>>, vector<16x1xf32>
    %15 = vector.broadcast %14 : vector<16x1xf32> to vector<16x128xf32>
    %16 = arith.addf %13, %15 : vector<16x128xf32>
    %cst_6 = arith.constant 0.000000e+00 : f32
    %17 = vector.broadcast %cst_6 : f32 to vector<16x128xf32>
    %18 = arith.cmpf ogt, %16, %17 : vector<16x128xf32>
    %cst_7 = arith.constant 0.00999999977 : f32
    %19 = vector.broadcast %cst_7 : f32 to vector<16x128xf32>
    %20 = arith.mulf %19, %16 : vector<16x128xf32>
    %21 = arith.select %18, %16, %20 : vector<16x128xi1>, vector<16x128xf32>
    %c0_8 = arith.constant 0 : index
    %c0_9 = arith.constant 0 : index
    %22 = vector.load %arg4[%c0_8, %c0_9] : memref<1x128xf32, #tpu.memory_space<vmem>>, vector<1x128xf32>
    %23 = vector.broadcast %22 : vector<1x128xf32> to vector<16x128xf32>
    %24 = arith.mulf %21, %23 : vector<16x128xf32>
    %cst_10 = arith.constant 0.000000e+00 : bf16
    %25 = vector.broadcast %cst_10 : bf16 to vector<16x384xbf16>
    %c0_11 = arith.constant 0 : index
    %c0_12 = arith.constant 0 : index
    %c0_13 = arith.constant 0 : index
    %26 = vector.load %arg5[%c0_11, %c0_12, %c0_13] : memref<1x16x384xbf16, #tpu.memory_space<vmem>>, vector<1x16x384xbf16>
    %27 = vector.shape_cast %26 : vector<1x16x384xbf16> to vector<16x384xbf16>
    %28 = vector.shape_cast %25 : vector<16x384xbf16> to vector<1x16x384xbf16>
    tpu.vector_store %arg5[%c0_11, %c0_12, %c0_13], %28 {strides = array<i32>} : memref<1x16x384xbf16, #tpu.memory_space<vmem>>, vector<1x16x384xbf16>,
    %29 = arith.truncf %24 : vector<16x128xf32> to vector<16x128xbf16>
    %c0_14 = arith.constant 0 : index
    %c0_15 = arith.constant 0 : index
    %c128 = arith.constant 128 : index
    %30 = vector.load %arg5[%c0_14, %c0_15, %c128] : memref<1x16x384xbf16, #tpu.memory_space<vmem>>, vector<1x16x128xbf16>
    %31 = vector.shape_cast %30 : vector<1x16x128xbf16> to vector<16x128xbf16>
    %32 = vector.shape_cast %29 : vector<16x128xbf16> to vector<1x16x128xbf16>
    tpu.vector_store %arg5[%c0_14, %c0_15, %c128], %32 {strides = array<i32>} : memref<1x16x384xbf16, #tpu.memory_space<vmem>>, vector<1x16x128xbf16>,
    return
  }
  func.func @transform_0(%arg0: i32) -> (i32, i32, i32) {
    %c0_i32 = arith.constant 0 : i32
    %c0_i32_0 = arith.constant 0 : i32
    %c0_i32_1 = arith.constant 0 : i32
    return %arg0, %c0_i32, %c0_i32_0 : i32, i32, i32
  }
  func.func @transform_1(%arg0: i32) -> (i32, i32) {
    %c0_i32 = arith.constant 0 : i32
    %c0_i32_0 = arith.constant 0 : i32
    %c0_i32_1 = arith.constant 0 : i32
    return %c0_i32, %c0_i32_0 : i32, i32
  }
  func.func @transform_2(%arg0: i32) -> (i32, i32) {
    %c0_i32 = arith.constant 0 : i32
    %c0_i32_0 = arith.constant 0 : i32
    %c0_i32_1 = arith.constant 0 : i32
    return %c0_i32, %c0_i32_0 : i32, i32
  }
  func.func @transform_3(%arg0: i32) -> (i32, i32) {
    %c0_i32 = arith.constant 0 : i32
    %c0_i32_0 = arith.constant 0 : i32
    %c0_i32_1 = arith.constant 0 : i32
    return %c0_i32, %c0_i32_0 : i32, i32
  }
  func.func @transform_4(%arg0: i32) -> (i32, i32, i32) {
    %c0_i32 = arith.constant 0 : i32
    %c0_i32_0 = arith.constant 0 : i32
    %c0_i32_1 = arith.constant 0 : i32
    return %arg0, %c0_i32, %c0_i32_0 : i32, i32, i32
  }
}

module attributes {stable_mosaic.version = 11 : i64} {
  func.func @_conv_bn_act_kernel(%arg0: i32, %arg1: memref<1x16x384xbf16, #tpu.memory_space<vmem>>, %arg2: memref<16x144xbf16, #tpu.memory_space<vmem>>, %arg3: memref<16x1xf32, #tpu.memory_space<vmem>>, %arg4: memref<1x128xf32, #tpu.memory_space<vmem>>, %arg5: memref<1x16x384xbf16, #tpu.memory_space<vmem>>) attributes {dimension_semantics = [#tpu.dimension_semantics<parallel>], iteration_bounds = array<i64: 2>, scalar_prefetch = 0 : i64, scratch_operands = 0 : i64, tpu.core_type = #tpu.core_type<tc>, window_params = [{transform_indices = @transform_0, window_bounds = array<i64: 1, 16, 384>}, {pipeline_mode = #tpu.pipeline_mode<synchronous>, transform_indices = @transform_1, window_bounds = array<i64: 16, 144>}, {pipeline_mode = #tpu.pipeline_mode<synchronous>, transform_indices = @transform_2, window_bounds = array<i64: 16, 1>}, {pipeline_mode = #tpu.pipeline_mode<synchronous>, transform_indices = @transform_3, window_bounds = array<i64: 1, 128>}, {transform_indices = @transform_4, window_bounds = array<i64: 1, 16, 384>}]} {
    %c0 = arith.constant 0 : index
    %c0_0 = arith.constant 0 : index
    %c0_1 = arith.constant 0 : index
    %0 = vector.load %arg1[%c0, %c0_0, %c0_1] : memref<1x16x384xbf16, #tpu.memory_space<vmem>>, vector<1x16x384xbf16>
    %1 = vector.shape_cast %0 : vector<1x16x384xbf16> to vector<16x384xbf16>
    %2 = vector.extract_strided_slice %1 {offsets = [0, 94], sizes = [16, 128], strides = [1, 1]} : vector<16x384xbf16> to vector<16x128xbf16>
    %3 = vector.extract_strided_slice %1 {offsets = [0, 96], sizes = [16, 128], strides = [1, 1]} : vector<16x384xbf16> to vector<16x128xbf16>
    %4 = vector.extract_strided_slice %1 {offsets = [0, 98], sizes = [16, 128], strides = [1, 1]} : vector<16x384xbf16> to vector<16x128xbf16>
    %5 = vector.extract_strided_slice %1 {offsets = [0, 126], sizes = [16, 128], strides = [1, 1]} : vector<16x384xbf16> to vector<16x128xbf16>
    %6 = vector.extract_strided_slice %1 {offsets = [0, 128], sizes = [16, 128], strides = [1, 1]} : vector<16x384xbf16> to vector<16x128xbf16>
    %7 = vector.extract_strided_slice %1 {offsets = [0, 130], sizes = [16, 128], strides = [1, 1]} : vector<16x384xbf16> to vector<16x128xbf16>
    %8 = vector.extract_strided_slice %1 {offsets = [0, 158], sizes = [16, 128], strides = [1, 1]} : vector<16x384xbf16> to vector<16x128xbf16>
    %9 = vector.extract_strided_slice %1 {offsets = [0, 160], sizes = [16, 128], strides = [1, 1]} : vector<16x384xbf16> to vector<16x128xbf16>
    %10 = vector.extract_strided_slice %1 {offsets = [0, 162], sizes = [16, 128], strides = [1, 1]} : vector<16x384xbf16> to vector<16x128xbf16>
    %11 = tpu.concatenate %2, %3, %4, %5, %6, %7, %8, %9, %10 in 0 : vector<16x128xbf16>, vector<16x128xbf16>, vector<16x128xbf16>, vector<16x128xbf16>, vector<16x128xbf16>, vector<16x128xbf16>, vector<16x128xbf16>, vector<16x128xbf16>, vector<16x128xbf16> -> vector<144x128xbf16>
    %c0_2 = arith.constant 0 : index
    %c0_3 = arith.constant 0 : index
    %12 = vector.load %arg2[%c0_2, %c0_3] : memref<16x144xbf16, #tpu.memory_space<vmem>>, vector<16x144xbf16>
    %cst = arith.constant dense<0.000000e+00> : vector<16x128xf32>
    %13 = tpu.matmul %12, %11, %cst {dimension_numbers = #tpu.dot_dimension_numbers<[1], [0], [0], [1], [0, 0, 1, 1], [], []>} : vector<16x144xbf16>, vector<144x128xbf16>, vector<16x128xf32> -> vector<16x128xf32>
    %c0_4 = arith.constant 0 : index
    %c0_5 = arith.constant 0 : index
    %14 = vector.load %arg3[%c0_4, %c0_5] : memref<16x1xf32, #tpu.memory_space<vmem>>, vector<16x1xf32>
    %15 = vector.broadcast %14 : vector<16x1xf32> to vector<16x128xf32>
    %16 = arith.addf %13, %15 : vector<16x128xf32>
    %cst_6 = arith.constant 0.000000e+00 : f32
    %17 = vector.broadcast %cst_6 : f32 to vector<16x128xf32>
    %18 = arith.maximumf %16, %17 : vector<16x128xf32>
    %c0_7 = arith.constant 0 : index
    %c0_8 = arith.constant 0 : index
    %19 = vector.load %arg4[%c0_7, %c0_8] : memref<1x128xf32, #tpu.memory_space<vmem>>, vector<1x128xf32>
    %20 = vector.broadcast %19 : vector<1x128xf32> to vector<16x128xf32>
    %21 = arith.mulf %18, %20 : vector<16x128xf32>
    %cst_9 = arith.constant 0.000000e+00 : bf16
    %22 = vector.broadcast %cst_9 : bf16 to vector<16x384xbf16>
    %c0_10 = arith.constant 0 : index
    %c0_11 = arith.constant 0 : index
    %c0_12 = arith.constant 0 : index
    %23 = vector.load %arg5[%c0_10, %c0_11, %c0_12] : memref<1x16x384xbf16, #tpu.memory_space<vmem>>, vector<1x16x384xbf16>
    %24 = vector.shape_cast %23 : vector<1x16x384xbf16> to vector<16x384xbf16>
    %25 = vector.shape_cast %22 : vector<16x384xbf16> to vector<1x16x384xbf16>
    tpu.vector_store %arg5[%c0_10, %c0_11, %c0_12], %25 {strides = array<i32>} : memref<1x16x384xbf16, #tpu.memory_space<vmem>>, vector<1x16x384xbf16>,
    %26 = arith.truncf %21 : vector<16x128xf32> to vector<16x128xbf16>
    %c0_13 = arith.constant 0 : index
    %c0_14 = arith.constant 0 : index
    %c128 = arith.constant 128 : index
    %27 = vector.load %arg5[%c0_13, %c0_14, %c128] : memref<1x16x384xbf16, #tpu.memory_space<vmem>>, vector<1x16x128xbf16>
    %28 = vector.shape_cast %27 : vector<1x16x128xbf16> to vector<16x128xbf16>
    %29 = vector.shape_cast %26 : vector<16x128xbf16> to vector<1x16x128xbf16>
    tpu.vector_store %arg5[%c0_13, %c0_14, %c128], %29 {strides = array<i32>} : memref<1x16x384xbf16, #tpu.memory_space<vmem>>, vector<1x16x128xbf16>,
    return
  }
  func.func @transform_0(%arg0: i32) -> (i32, i32, i32) {
    %c0_i32 = arith.constant 0 : i32
    %c0_i32_0 = arith.constant 0 : i32
    %c0_i32_1 = arith.constant 0 : i32
    return %arg0, %c0_i32, %c0_i32_0 : i32, i32, i32
  }
  func.func @transform_1(%arg0: i32) -> (i32, i32) {
    %c0_i32 = arith.constant 0 : i32
    %c0_i32_0 = arith.constant 0 : i32
    %c0_i32_1 = arith.constant 0 : i32
    return %c0_i32, %c0_i32_0 : i32, i32
  }
  func.func @transform_2(%arg0: i32) -> (i32, i32) {
    %c0_i32 = arith.constant 0 : i32
    %c0_i32_0 = arith.constant 0 : i32
    %c0_i32_1 = arith.constant 0 : i32
    return %c0_i32, %c0_i32_0 : i32, i32
  }
  func.func @transform_3(%arg0: i32) -> (i32, i32) {
    %c0_i32 = arith.constant 0 : i32
    %c0_i32_0 = arith.constant 0 : i32
    %c0_i32_1 = arith.constant 0 : i32
    return %c0_i32, %c0_i32_0 : i32, i32
  }
  func.func @transform_4(%arg0: i32) -> (i32, i32, i32) {
    %c0_i32 = arith.constant 0 : i32
    %c0_i32_0 = arith.constant 0 : i32
    %c0_i32_1 = arith.constant 0 : i32
    return %arg0, %c0_i32, %c0_i32_0 : i32, i32, i32
  }
}

module attributes {stable_mosaic.version = 11 : i64} {
  func.func @_conv_bn_act_kernel(%arg0: i32, %arg1: memref<1x32x384xbf16, #tpu.memory_space<vmem>>, %arg2: memref<16x288xbf16, #tpu.memory_space<vmem>>, %arg3: memref<16x1xf32, #tpu.memory_space<vmem>>, %arg4: memref<1x128xf32, #tpu.memory_space<vmem>>, %arg5: memref<1x16x384xbf16, #tpu.memory_space<vmem>>) attributes {dimension_semantics = [#tpu.dimension_semantics<parallel>], iteration_bounds = array<i64: 2>, scalar_prefetch = 0 : i64, scratch_operands = 0 : i64, tpu.core_type = #tpu.core_type<tc>, window_params = [{transform_indices = @transform_0, window_bounds = array<i64: 1, 32, 384>}, {pipeline_mode = #tpu.pipeline_mode<synchronous>, transform_indices = @transform_1, window_bounds = array<i64: 16, 288>}, {pipeline_mode = #tpu.pipeline_mode<synchronous>, transform_indices = @transform_2, window_bounds = array<i64: 16, 1>}, {pipeline_mode = #tpu.pipeline_mode<synchronous>, transform_indices = @transform_3, window_bounds = array<i64: 1, 128>}, {transform_indices = @transform_4, window_bounds = array<i64: 1, 16, 384>}]} {
    %c0 = arith.constant 0 : index
    %c0_0 = arith.constant 0 : index
    %c0_1 = arith.constant 0 : index
    %0 = vector.load %arg1[%c0, %c0_0, %c0_1] : memref<1x32x384xbf16, #tpu.memory_space<vmem>>, vector<1x32x384xbf16>
    %1 = vector.shape_cast %0 : vector<1x32x384xbf16> to vector<32x384xbf16>
    %2 = vector.extract_strided_slice %1 {offsets = [0, 111], sizes = [32, 128], strides = [1, 1]} : vector<32x384xbf16> to vector<32x128xbf16>
    %3 = vector.extract_strided_slice %1 {offsets = [0, 112], sizes = [32, 128], strides = [1, 1]} : vector<32x384xbf16> to vector<32x128xbf16>
    %4 = vector.extract_strided_slice %1 {offsets = [0, 113], sizes = [32, 128], strides = [1, 1]} : vector<32x384xbf16> to vector<32x128xbf16>
    %5 = vector.extract_strided_slice %1 {offsets = [0, 127], sizes = [32, 128], strides = [1, 1]} : vector<32x384xbf16> to vector<32x128xbf16>
    %6 = vector.extract_strided_slice %1 {offsets = [0, 128], sizes = [32, 128], strides = [1, 1]} : vector<32x384xbf16> to vector<32x128xbf16>
    %7 = vector.extract_strided_slice %1 {offsets = [0, 129], sizes = [32, 128], strides = [1, 1]} : vector<32x384xbf16> to vector<32x128xbf16>
    %8 = vector.extract_strided_slice %1 {offsets = [0, 143], sizes = [32, 128], strides = [1, 1]} : vector<32x384xbf16> to vector<32x128xbf16>
    %9 = vector.extract_strided_slice %1 {offsets = [0, 144], sizes = [32, 128], strides = [1, 1]} : vector<32x384xbf16> to vector<32x128xbf16>
    %10 = vector.extract_strided_slice %1 {offsets = [0, 145], sizes = [32, 128], strides = [1, 1]} : vector<32x384xbf16> to vector<32x128xbf16>
    %11 = tpu.concatenate %2, %3, %4, %5, %6, %7, %8, %9, %10 in 0 : vector<32x128xbf16>, vector<32x128xbf16>, vector<32x128xbf16>, vector<32x128xbf16>, vector<32x128xbf16>, vector<32x128xbf16>, vector<32x128xbf16>, vector<32x128xbf16>, vector<32x128xbf16> -> vector<288x128xbf16>
    %c0_2 = arith.constant 0 : index
    %c0_3 = arith.constant 0 : index
    %12 = vector.load %arg2[%c0_2, %c0_3] : memref<16x288xbf16, #tpu.memory_space<vmem>>, vector<16x288xbf16>
    %cst = arith.constant dense<0.000000e+00> : vector<16x128xf32>
    %13 = tpu.matmul %12, %11, %cst {dimension_numbers = #tpu.dot_dimension_numbers<[1], [0], [0], [1], [0, 0, 1, 1], [], []>} : vector<16x288xbf16>, vector<288x128xbf16>, vector<16x128xf32> -> vector<16x128xf32>
    %c0_4 = arith.constant 0 : index
    %c0_5 = arith.constant 0 : index
    %14 = vector.load %arg3[%c0_4, %c0_5] : memref<16x1xf32, #tpu.memory_space<vmem>>, vector<16x1xf32>
    %15 = vector.broadcast %14 : vector<16x1xf32> to vector<16x128xf32>
    %16 = arith.addf %13, %15 : vector<16x128xf32>
    %cst_6 = arith.constant 0.000000e+00 : f32
    %17 = vector.broadcast %cst_6 : f32 to vector<16x128xf32>
    %18 = arith.cmpf ogt, %16, %17 : vector<16x128xf32>
    %cst_7 = arith.constant 0.00999999977 : f32
    %19 = vector.broadcast %cst_7 : f32 to vector<16x128xf32>
    %20 = arith.mulf %19, %16 : vector<16x128xf32>
    %21 = arith.select %18, %16, %20 : vector<16x128xi1>, vector<16x128xf32>
    %c0_8 = arith.constant 0 : index
    %c0_9 = arith.constant 0 : index
    %22 = vector.load %arg4[%c0_8, %c0_9] : memref<1x128xf32, #tpu.memory_space<vmem>>, vector<1x128xf32>
    %23 = vector.broadcast %22 : vector<1x128xf32> to vector<16x128xf32>
    %24 = arith.mulf %21, %23 : vector<16x128xf32>
    %cst_10 = arith.constant 0.000000e+00 : bf16
    %25 = vector.broadcast %cst_10 : bf16 to vector<16x384xbf16>
    %c0_11 = arith.constant 0 : index
    %c0_12 = arith.constant 0 : index
    %c0_13 = arith.constant 0 : index
    %26 = vector.load %arg5[%c0_11, %c0_12, %c0_13] : memref<1x16x384xbf16, #tpu.memory_space<vmem>>, vector<1x16x384xbf16>
    %27 = vector.shape_cast %26 : vector<1x16x384xbf16> to vector<16x384xbf16>
    %28 = vector.shape_cast %25 : vector<16x384xbf16> to vector<1x16x384xbf16>
    tpu.vector_store %arg5[%c0_11, %c0_12, %c0_13], %28 {strides = array<i32>} : memref<1x16x384xbf16, #tpu.memory_space<vmem>>, vector<1x16x384xbf16>,
    %29 = arith.truncf %24 : vector<16x128xf32> to vector<16x128xbf16>
    %c0_14 = arith.constant 0 : index
    %c0_15 = arith.constant 0 : index
    %c128 = arith.constant 128 : index
    %30 = vector.load %arg5[%c0_14, %c0_15, %c128] : memref<1x16x384xbf16, #tpu.memory_space<vmem>>, vector<1x16x128xbf16>
    %31 = vector.shape_cast %30 : vector<1x16x128xbf16> to vector<16x128xbf16>
    %32 = vector.shape_cast %29 : vector<16x128xbf16> to vector<1x16x128xbf16>
    tpu.vector_store %arg5[%c0_14, %c0_15, %c128], %32 {strides = array<i32>} : memref<1x16x384xbf16, #tpu.memory_space<vmem>>, vector<1x16x128xbf16>,
    return
  }
  func.func @transform_0(%arg0: i32) -> (i32, i32, i32) {
    %c0_i32 = arith.constant 0 : i32
    %c0_i32_0 = arith.constant 0 : i32
    %c0_i32_1 = arith.constant 0 : i32
    return %arg0, %c0_i32, %c0_i32_0 : i32, i32, i32
  }
  func.func @transform_1(%arg0: i32) -> (i32, i32) {
    %c0_i32 = arith.constant 0 : i32
    %c0_i32_0 = arith.constant 0 : i32
    %c0_i32_1 = arith.constant 0 : i32
    return %c0_i32, %c0_i32_0 : i32, i32
  }
  func.func @transform_2(%arg0: i32) -> (i32, i32) {
    %c0_i32 = arith.constant 0 : i32
    %c0_i32_0 = arith.constant 0 : i32
    %c0_i32_1 = arith.constant 0 : i32
    return %c0_i32, %c0_i32_0 : i32, i32
  }
  func.func @transform_3(%arg0: i32) -> (i32, i32) {
    %c0_i32 = arith.constant 0 : i32
    %c0_i32_0 = arith.constant 0 : i32
    %c0_i32_1 = arith.constant 0 : i32
    return %c0_i32, %c0_i32_0 : i32, i32
  }
  func.func @transform_4(%arg0: i32) -> (i32, i32, i32) {
    %c0_i32 = arith.constant 0 : i32
    %c0_i32_0 = arith.constant 0 : i32
    %c0_i32_1 = arith.constant 0 : i32
    return %arg0, %c0_i32, %c0_i32_0 : i32, i32, i32
  }
}

module attributes {stable_mosaic.version = 11 : i64} {
  func.func @_conv_bn_act_kernel(%arg0: i32, %arg1: memref<1x32x640xbf16, #tpu.memory_space<vmem>>, %arg2: memref<16x288xbf16, #tpu.memory_space<vmem>>, %arg3: memref<16x1xf32, #tpu.memory_space<vmem>>, %arg4: memref<1x384xf32, #tpu.memory_space<vmem>>, %arg5: memref<1x16x640xbf16, #tpu.memory_space<vmem>>, %arg6: memref<1x16x640xf32, #tpu.memory_space<vmem>>) attributes {dimension_semantics = [#tpu.dimension_semantics<parallel>], iteration_bounds = array<i64: 2>, scalar_prefetch = 0 : i64, scratch_operands = 0 : i64, tpu.core_type = #tpu.core_type<tc>, window_params = [{transform_indices = @transform_0, window_bounds = array<i64: 1, 32, 640>}, {pipeline_mode = #tpu.pipeline_mode<synchronous>, transform_indices = @transform_1, window_bounds = array<i64: 16, 288>}, {pipeline_mode = #tpu.pipeline_mode<synchronous>, transform_indices = @transform_2, window_bounds = array<i64: 16, 1>}, {pipeline_mode = #tpu.pipeline_mode<synchronous>, transform_indices = @transform_3, window_bounds = array<i64: 1, 384>}, {transform_indices = @transform_4, window_bounds = array<i64: 1, 16, 640>}, {transform_indices = @transform_5, window_bounds = array<i64: 1, 16, 640>}]} {
    %c0 = arith.constant 0 : index
    %c0_0 = arith.constant 0 : index
    %c0_1 = arith.constant 0 : index
    %0 = vector.load %arg1[%c0, %c0_0, %c0_1] : memref<1x32x640xbf16, #tpu.memory_space<vmem>>, vector<1x32x640xbf16>
    %1 = vector.shape_cast %0 : vector<1x32x640xbf16> to vector<32x640xbf16>
    %2 = vector.extract_strided_slice %1 {offsets = [0, 103], sizes = [32, 384], strides = [1, 1]} : vector<32x640xbf16> to vector<32x384xbf16>
    %3 = vector.extract_strided_slice %1 {offsets = [0, 104], sizes = [32, 384], strides = [1, 1]} : vector<32x640xbf16> to vector<32x384xbf16>
    %4 = vector.extract_strided_slice %1 {offsets = [0, 105], sizes = [32, 384], strides = [1, 1]} : vector<32x640xbf16> to vector<32x384xbf16>
    %5 = vector.extract_strided_slice %1 {offsets = [0, 127], sizes = [32, 384], strides = [1, 1]} : vector<32x640xbf16> to vector<32x384xbf16>
    %6 = vector.extract_strided_slice %1 {offsets = [0, 128], sizes = [32, 384], strides = [1, 1]} : vector<32x640xbf16> to vector<32x384xbf16>
    %7 = vector.extract_strided_slice %1 {offsets = [0, 129], sizes = [32, 384], strides = [1, 1]} : vector<32x640xbf16> to vector<32x384xbf16>
    %8 = vector.extract_strided_slice %1 {offsets = [0, 151], sizes = [32, 384], strides = [1, 1]} : vector<32x640xbf16> to vector<32x384xbf16>
    %9 = vector.extract_strided_slice %1 {offsets = [0, 152], sizes = [32, 384], strides = [1, 1]} : vector<32x640xbf16> to vector<32x384xbf16>
    %10 = vector.extract_strided_slice %1 {offsets = [0, 153], sizes = [32, 384], strides = [1, 1]} : vector<32x640xbf16> to vector<32x384xbf16>
    %11 = tpu.concatenate %2, %3, %4, %5, %6, %7, %8, %9, %10 in 0 : vector<32x384xbf16>, vector<32x384xbf16>, vector<32x384xbf16>, vector<32x384xbf16>, vector<32x384xbf16>, vector<32x384xbf16>, vector<32x384xbf16>, vector<32x384xbf16>, vector<32x384xbf16> -> vector<288x384xbf16>
    %c0_2 = arith.constant 0 : index
    %c0_3 = arith.constant 0 : index
    %12 = vector.load %arg2[%c0_2, %c0_3] : memref<16x288xbf16, #tpu.memory_space<vmem>>, vector<16x288xbf16>
    %cst = arith.constant dense<0.000000e+00> : vector<16x384xf32>
    %13 = tpu.matmul %12, %11, %cst {dimension_numbers = #tpu.dot_dimension_numbers<[1], [0], [0], [1], [0, 0, 1, 1], [], []>} : vector<16x288xbf16>, vector<288x384xbf16>, vector<16x384xf32> -> vector<16x384xf32>
    %c0_4 = arith.constant 0 : index
    %c0_5 = arith.constant 0 : index
    %14 = vector.load %arg3[%c0_4, %c0_5] : memref<16x1xf32, #tpu.memory_space<vmem>>, vector<16x1xf32>
    %15 = vector.broadcast %14 : vector<16x1xf32> to vector<16x384xf32>
    %16 = arith.addf %13, %15 : vector<16x384xf32>
    %cst_6 = arith.constant 0.000000e+00 : f32
    %17 = vector.broadcast %cst_6 : f32 to vector<16x384xf32>
    %18 = arith.cmpf ogt, %16, %17 : vector<16x384xf32>
    %cst_7 = arith.constant 0.00999999977 : f32
    %19 = vector.broadcast %cst_7 : f32 to vector<16x384xf32>
    %20 = arith.mulf %19, %16 : vector<16x384xf32>
    %21 = arith.select %18, %16, %20 : vector<16x384xi1>, vector<16x384xf32>
    %c0_8 = arith.constant 0 : index
    %c0_9 = arith.constant 0 : index
    %22 = vector.load %arg4[%c0_8, %c0_9] : memref<1x384xf32, #tpu.memory_space<vmem>>, vector<1x384xf32>
    %23 = vector.broadcast %22 : vector<1x384xf32> to vector<16x384xf32>
    %24 = arith.mulf %21, %23 : vector<16x384xf32>
    %c0_10 = arith.constant 0 : index
    %c0_11 = arith.constant 0 : index
    %c0_12 = arith.constant 0 : index
    %25 = vector.load %arg5[%c0_10, %c0_11, %c0_12] : memref<1x16x640xbf16, #tpu.memory_space<vmem>>, vector<1x16x640xbf16>
    %26 = vector.shape_cast %25 : vector<1x16x640xbf16> to vector<16x640xbf16>
    %27 = vector.extract_strided_slice %26 {offsets = [0, 128], sizes = [16, 384], strides = [1, 1]} : vector<16x640xbf16> to vector<16x384xbf16>
    %28 = arith.extf %27 : vector<16x384xbf16> to vector<16x384xf32>
    %29 = arith.addf %24, %28 : vector<16x384xf32>
    %cst_13 = arith.constant 0.000000e+00 : f32
    %30 = vector.broadcast %cst_13 : f32 to vector<16x640xf32>
    %c0_14 = arith.constant 0 : index
    %c0_15 = arith.constant 0 : index
    %c0_16 = arith.constant 0 : index
    %31 = vector.load %arg6[%c0_14, %c0_15, %c0_16] : memref<1x16x640xf32, #tpu.memory_space<vmem>>, vector<1x16x640xf32>
    %32 = vector.shape_cast %31 : vector<1x16x640xf32> to vector<16x640xf32>
    %33 = vector.shape_cast %30 : vector<16x640xf32> to vector<1x16x640xf32>
    tpu.vector_store %arg6[%c0_14, %c0_15, %c0_16], %33 {strides = array<i32>} : memref<1x16x640xf32, #tpu.memory_space<vmem>>, vector<1x16x640xf32>,
    %c0_17 = arith.constant 0 : index
    %c0_18 = arith.constant 0 : index
    %c128 = arith.constant 128 : index
    %34 = vector.load %arg6[%c0_17, %c0_18, %c128] : memref<1x16x640xf32, #tpu.memory_space<vmem>>, vector<1x16x384xf32>
    %35 = vector.shape_cast %34 : vector<1x16x384xf32> to vector<16x384xf32>
    %36 = vector.shape_cast %29 : vector<16x384xf32> to vector<1x16x384xf32>
    tpu.vector_store %arg6[%c0_17, %c0_18, %c128], %36 {strides = array<i32>} : memref<1x16x640xf32, #tpu.memory_space<vmem>>, vector<1x16x384xf32>,
    return
  }
  func.func @transform_0(%arg0: i32) -> (i32, i32, i32) {
    %c0_i32 = arith.constant 0 : i32
    %c0_i32_0 = arith.constant 0 : i32
    %c0_i32_1 = arith.constant 0 : i32
    return %arg0, %c0_i32, %c0_i32_0 : i32, i32, i32
  }
  func.func @transform_1(%arg0: i32) -> (i32, i32) {
    %c0_i32 = arith.constant 0 : i32
    %c0_i32_0 = arith.constant 0 : i32
    %c0_i32_1 = arith.constant 0 : i32
    return %c0_i32, %c0_i32_0 : i32, i32
  }
  func.func @transform_2(%arg0: i32) -> (i32, i32) {
    %c0_i32 = arith.constant 0 : i32
    %c0_i32_0 = arith.constant 0 : i32
    %c0_i32_1 = arith.constant 0 : i32
    return %c0_i32, %c0_i32_0 : i32, i32
  }
  func.func @transform_3(%arg0: i32) -> (i32, i32) {
    %c0_i32 = arith.constant 0 : i32
    %c0_i32_0 = arith.constant 0 : i32
    %c0_i32_1 = arith.constant 0 : i32
    return %c0_i32, %c0_i32_0 : i32, i32
  }
  func.func @transform_4(%arg0: i32) -> (i32, i32, i32) {
    %c0_i32 = arith.constant 0 : i32
    %c0_i32_0 = arith.constant 0 : i32
    %c0_i32_1 = arith.constant 0 : i32
    return %arg0, %c0_i32, %c0_i32_0 : i32, i32, i32
  }
  func.func @transform_5(%arg0: i32) -> (i32, i32, i32) {
    %c0_i32 = arith.constant 0 : i32
    %c0_i32_0 = arith.constant 0 : i32
    %c0_i32_1 = arith.constant 0 : i32
    return %arg0, %c0_i32, %c0_i32_0 : i32, i32, i32
  }
}

</mosaic_0001>

<llo_original>
// kernel: _lambda_.7
$region0: #{_lambda_.7}
  #allocation0 [shape = 'u32[]', space=smem, size = 0x4, offset = 0x4, fixed_abs, tag = 'smem constant byte address 0x4 - core index']
  #allocation1 [shape = 'u32[144,128]{1,0:T(1,128)}', space=vmem, size = 0x12000, scoped, tag = 'internal scratch']
  %s0 = inlined_call_operand.vmem [shape: bf16[2,16,640], index: 0, kind: input, shape index: {}]
  %s1 = inlined_call_operand.vmem [shape: bf16[16,144], index: 1, kind: input, shape index: {}]
  %s2 = inlined_call_operand.vmem [shape: f32[16,1], index: 2, kind: input, shape index: {}]
  %s3 = inlined_call_operand.vmem [shape: f32[1,384], index: 3, kind: input, shape index: {}]
  %s4 = inlined_call_operand.vmem [shape: bf16[2,16,640], index: 4, kind: output, shape index: {}]
  %s5 = sld [smem:[#allocation0]]
  $region49: #{_lambda_.7} parent=0
    _
  %s7 = ssub.s32 1, %s5
  %s8 = scalar_select 0, %s7, %s5
  loop: start=0, step=1, limit=4
  $region2: #{_lambda_.7} parent=0 // loop_pre_header
    _
  $region3: #{_lambda_.7} parent=0 // loop_header
    %s10 = sphi 0, %s14
    %p11 = scmp.ge.s32.totalorder %s10, 4
    %s20 = sphi 0, %s22
    %s23 = sphi 0, %s20
    %s24 = sphi 0, %s23
    %s40 = sphi 0, %s24
    %s44 = sphi 0, %s44
    %s46 = sphi 0, %s44
    %s47 = sphi 0, %s46
    %s61 = sphi 0, %s47
    %s65 = sphi 0, %s65
    %s67 = sphi 0, %s65
    %s68 = sphi 0, %s67
    %s82 = sphi 0, %s68
    %s86 = sphi 0, %s86
    %s88 = sphi 0, %s86
    %s89 = sphi 0, %s88
    %s103 = sphi 0, %s89
    %s109 = sphi 0, %s111
    %s112 = sphi 0, %s109
    %s113 = sphi 0, %s112
    %s129 = sphi 0, %s113
  $region4: #{_lambda_.7} parent=0 // loop_header_branch
    %13 = sbr.rel (%p11) target = $region8
  $region5: #{_lambda_.7} parent=0 // loop_body
    %s15 = ssub.s32 %s10, 1
    %s16 = ssub.s32 %s10, 2
    %s17 = sadd.s32 %s10, 1
    %s18 = ssub.s32 %s10, %s17
    %p19 = scmp.eq.s32.totalorder %s18, 0
    %s21 = sadd.s32 %s20, 1
    %s22 = scalar_select %p19, %s20, %s21
    %p25 = pneg %p19
    %p26 = scmp.eq.s32.totalorder %s10, 1
    %p27 = por %p25, %p26
    %p28 = scmp.ne.s32.totalorder %s20, %s23
    %p29 = scmp.eq.s32.totalorder %s10, 0
    %p30 = por %p28, %p29
    %p31 = scmp.ne.s32.totalorder %s20, %s23
    %p32 = scmp.eq.s32.totalorder %s15, 1
    %p33 = por %p31, %p32
    %p34 = scmp.ne.s32.totalorder %s23, %s24
    %p35 = scmp.eq.s32.totalorder %s15, 0
    %p36 = por %p34, %p35
    %p37 = scmp.ne.s32.totalorder %s23, %s24
    %p38 = scmp.eq.s32.totalorder %s16, 1
    %p39 = por %p37, %p38
    %p41 = scmp.ne.s32.totalorder %s24, %s40
    %p42 = scmp.eq.s32.totalorder %s16, 0
    %p43 = por %p41, %p42
    %s45 = sadd.s32 %s44, 1
    %p48 = scmp.eq.s32.totalorder %s10, 1
    %p49 = scmp.ne.s32.totalorder %s44, %s46
    %p50 = scmp.eq.s32.totalorder %s10, 0
    %p51 = por %p49, %p50
    %p52 = scmp.ne.s32.totalorder %s44, %s46
    %p53 = scmp.eq.s32.totalorder %s15, 1
    %p54 = por %p52, %p53
    %p55 = scmp.ne.s32.totalorder %s46, %s47
    %p56 = scmp.eq.s32.totalorder %s15, 0
    %p57 = por %p55, %p56
    %p58 = scmp.ne.s32.totalorder %s46, %s47
    %p59 = scmp.eq.s32.totalorder %s16, 1
    %p60 = por %p58, %p59
    %p62 = scmp.ne.s32.totalorder %s47, %s61
    %p63 = scmp.eq.s32.totalorder %s16, 0
    %p64 = por %p62, %p63
    %s66 = sadd.s32 %s65, 1
    %p69 = scmp.eq.s32.totalorder %s10, 1
    %p70 = scmp.ne.s32.totalorder %s65, %s67
    %p71 = scmp.eq.s32.totalorder %s10, 0
    %p72 = por %p70, %p71
    %p73 = scmp.ne.s32.totalorder %s65, %s67
    %p74 = scmp.eq.s32.totalorder %s15, 1
    %p75 = por %p73, %p74
    %p76 = scmp.ne.s32.totalorder %s67, %s68
    %p77 = scmp.eq.s32.totalorder %s15, 0
    %p78 = por %p76, %p77
    %p79 = scmp.ne.s32.totalorder %s67, %s68
    %p80 = scmp.eq.s32.totalorder %s16, 1
    %p81 = por %p79, %p80
    %p83 = scmp.ne.s32.totalorder %s68, %s82
    %p84 = scmp.eq.s32.totalorder %s16, 0
    %p85 = por %p83, %p84
    %s87 = sadd.s32 %s86, 1
    %p90 = scmp.eq.s32.totalorder %s10, 1
    %p91 = scmp.ne.s32.totalorder %s86, %s88
    %p92 = scmp.eq.s32.totalorder %s10, 0
    %p93 = por %p91, %p92
    %p94 = scmp.ne.s32.totalorder %s86, %s88
    %p95 = scmp.eq.s32.totalorder %s15, 1
    %p96 = por %p94, %p95
    %p97 = scmp.ne.s32.totalorder %s88, %s89
    %p98 = scmp.eq.s32.totalorder %s15, 0
    %p99 = por %p97, %p98
    %p100 = scmp.ne.s32.totalorder %s88, %s89
    %p101 = scmp.eq.s32.totalorder %s16, 1
    %p102 = por %p100, %p101
    %p104 = scmp.ne.s32.totalorder %s89, %s103
    %p105 = scmp.eq.s32.totalorder %s16, 0
    %p106 = por %p104, %p105
    %s107 = ssub.s32 %s10, %s17
    %p108 = scmp.eq.s32.totalorder %s107, 0
    %s110 = sadd.s32 %s109, 1
    %s111 = scalar_select %p108, %s109, %s110
    %p114 = pneg %p108
    %p115 = scmp.eq.s32.totalorder %s10, 1
    %p116 = por %p114, %p115
    %p117 = scmp.ne.s32.totalorder %s109, %s112
    %p118 = scmp.eq.s32.totalorder %s10, 0
    %p119 = por %p117, %p118
    %p120 = scmp.ne.s32.totalorder %s109, %s112
    %p121 = scmp.eq.s32.totalorder %s15, 1
    %p122 = por %p120, %p121
    %p123 = scmp.ne.s32.totalorder %s112, %s113
    %p124 = scmp.eq.s32.totalorder %s15, 0
    %p125 = por %p123, %p124
    %p126 = scmp.ne.s32.totalorder %s112, %s113
    %p127 = scmp.eq.s32.totalorder %s16, 1
    %p128 = por %p126, %p127
    %p130 = scmp.ne.s32.totalorder %s113, %s129
    %p131 = scmp.eq.s32.totalorder %s16, 0
    %p132 = por %p130, %p131
    %p133 = scmp.le.s32.totalorder 1, %s10
    %p134 = scmp.lt.s32.totalorder %s10, 3
    %p135 = pnand %p133, %p134
    %p136 = pneg %p135
    // Predicated region
    $region9: #{_lambda_.7} parent=5 // pred_check
      _
    $region10: #{_lambda_.7} parent=5 // pred_check_branch
      %138 = sbr.rel (%p135) target = $region12
    $region11: #{_lambda_.7} parent=5 // pred_region
      %s139 = ssub.s32 %s10, 1
      // Predicated region
      $region13: #{_lambda_.7} parent=11 // pred_check
        %p140 = pneg %p57
      $region14: #{_lambda_.7} parent=11 // pred_check_branch
        %142 = sbr.rel (%p140) target = $region16
      $region15: #{_lambda_.7} parent=11 // pred_region
        _
      $region16: #{_lambda_.7} parent=11 // pred_fallthru
        _
      // Predicated region
      $region17: #{_lambda_.7} parent=11 // pred_check
        %p143 = pneg %p78
      $region18: #{_lambda_.7} parent=11 // pred_check_branch
        %145 = sbr.rel (%p143) target = $region20
      $region19: #{_lambda_.7} parent=11 // pred_region
        _
      $region20: #{_lambda_.7} parent=11 // pred_fallthru
        _
      // Predicated region
      $region21: #{_lambda_.7} parent=11 // pred_check
        %p146 = pneg %p99
      $region22: #{_lambda_.7} parent=11 // pred_check_branch
        %148 = sbr.rel (%p146) target = $region24
      $region23: #{_lambda_.7} parent=11 // pred_region
        _
      $region24: #{_lambda_.7} parent=11 // pred_fallthru
        _
    $region12: #{_lambda_.7} parent=5 // pred_fallthru
      _
    %p149 = scmp.lt.s32.totalorder %s10, 2
    // Predicated region
    $region25: #{_lambda_.7} parent=5 // pred_check
      %p150 = pneg %p149
    $region26: #{_lambda_.7} parent=5 // pred_check_branch
      %152 = sbr.rel (%p150) target = $region28
    $region27: #{_lambda_.7} parent=5 // pred_region
      // Predicated region
      $region29: #{_lambda_.7} parent=27 // pred_check
        %p153 = pneg %p30
      $region30: #{_lambda_.7} parent=27 // pred_check_branch
        %155 = sbr.rel (%p153) target = $region32
      $region31: #{_lambda_.7} parent=27 // pred_region
        %p156 = scmp.lt.s32.totalorder %s10, 1
        %s157 = scalar_select %p156, %s10, 1
        %s158 = smul.addr %s157, 10
        %s159 = smul.addr %s158, 4
        %s160 = scalar_lea.vmem %s0, %s159
      $region32: #{_lambda_.7} parent=27 // pred_fallthru
        _
    $region28: #{_lambda_.7} parent=5 // pred_fallthru
      _
    %p161 = scmp.le.s32.totalorder 1, %s10
    %p162 = scmp.lt.s32.totalorder %s10, 3
    %p163 = pnand %p161, %p162
    %p164 = pneg %p163
    // Predicated region
    $region33: #{_lambda_.7} parent=5 // pred_check
      _
    $region34: #{_lambda_.7} parent=5 // pred_check_branch
      %166 = sbr.rel (%p163) target = $region36
    $region35: #{_lambda_.7} parent=5 // pred_region
      %s167 = ssub.s32 %s10, 1
      %p168 = scmp.lt.s32.totalorder %s15, 1
      %s169 = scalar_select %p168, %s15, 1
      %s170 = smul.addr %s169, 10
      %s171 = smul.addr %s170, 4
      %s172 = scalar_lea.vmem %s0, %s171
      %p173 = pneg %p36
      %p174 = pneg %p33
      %p175 = pneg %p57
      %p176 = pneg %p54
      %p177 = pneg %p78
      %p178 = pneg %p75
      %p179 = pneg %p99
      %p180 = pneg %p96
      %p181 = pneg %p125
      %p182 = pneg %p122
      %p183 = scmp.lt.s32.totalorder %s15, 1
      %s184 = scalar_select %p183, %s15, 1
      %s185 = smul.addr %s184, 10
      %s186 = smul.addr %s185, 4
      %s187 = scalar_lea.vmem %s4, %s186
      %p188 = scmp.lt.s32.totalorder %s15, 1
      %s189 = scalar_select %p188, %s15, 1
      %s190 = smul.addr %s189, 10
      %s191 = smul.addr %s190, 4
      %s192 = scalar_lea.vmem %s0, %s191
      %p193 = scmp.lt.s32.totalorder %s15, 1
      %s194 = scalar_select %p193, %s15, 1
      %s195 = smul.addr %s194, 10
      %s196 = smul.addr %s195, 4
      %s197 = scalar_lea.vmem %s4, %s196
      %v199 = vld [vmem:[%s192] sm:$0xff]
      %v200 = vld [vmem:[%s192 + $0x8] sm:$0xff]
      %v201 = vld [vmem:[%s192 + $0x10] sm:$0xf]
      %v202 = vld [vmem:[%s192 + $0x14] sm:$0xff]
      %v203 = vld [vmem:[%s192 + $0x1c] sm:$0xff]
      %v204 = vld [vmem:[%s192 + $0x24] sm:$0xf]
      %v209 = vunpack.c.l.b16 %v199
      %v210 = vunpack.c.h.b16 %v199
      %v211 = vunpack.c.l.b16 %v200
      %v212 = vunpack.c.h.b16 %v200
      %v213 = vunpack.c.l.b16 %v202
      %v214 = vunpack.c.h.b16 %v202
      %v215 = vunpack.c.l.b16 %v203
      %v216 = vunpack.c.h.b16 %v203
      %v217 = vpack.c.b16 %v213, %v209
      %v218 = vpack.c.b16 %v214, %v210
      %v219 = vpack.c.b16 %v215, %v211
      %v220 = vpack.c.b16 %v216, %v212
      %221 = vrot.lane.b32.xlu0 %v217, 127
      %v222 = vpop.permute.xlu0 %221
      %223 = vrot.lane.b32.xlu0 %v218, 127
      %v224 = vpop.permute.xlu0 %223
      %225 = vrot.lane.b32.xlu0 %v219, 127
      %v226 = vpop.permute.xlu0 %225
      %227 = vrot.lane.b32.xlu0 %v220, 127
      %v228 = vpop.permute.xlu0 %227
      %vm229 = vcmask 1039360
      %v230 = vsel %vm229, %v222, %v224
      %v231 = vsel %vm229, %v224, %v226
      %v232 = vsel %vm229, %v226, %v228
      %233 = vrot.lane.b32.xlu0 %v217, 126
      %v234 = vpop.permute.xlu0 %233
      %235 = vrot.lane.b32.xlu0 %v218, 126
      %v236 = vpop.permute.xlu0 %235
      %237 = vrot.lane.b32.xlu0 %v219, 126
      %v238 = vpop.permute.xlu0 %237
      %239 = vrot.lane.b32.xlu0 %v220, 126
      %v240 = vpop.permute.xlu0 %239
      %vm241 = vcmask 1031168
      %v242 = vsel %vm241, %v234, %v236
      %v243 = vsel %vm241, %v236, %v238
      %v244 = vsel %vm241, %v238, %v240
      %245 = vrot.lane.b32.xlu0 %v217, 104
      %v246 = vpop.permute.xlu0 %245
      %247 = vrot.lane.b32.xlu0 %v218, 104
      %v248 = vpop.permute.xlu0 %247
      %249 = vrot.lane.b32.xlu0 %v219, 104
      %v250 = vpop.permute.xlu0 %249
      %251 = vrot.lane.b32.xlu0 %v220, 104
      %v252 = vpop.permute.xlu0 %251
      %vm253 = vcmask 850944
      %v254 = vsel %vm253, %v246, %v248
      %v255 = vsel %vm253, %v248, %v250
      %v256 = vsel %vm253, %v250, %v252
      %257 = vrot.lane.b32.xlu0 %v218, 103
      %v258 = vpop.permute.xlu0 %257
      %259 = vrot.lane.b32.xlu0 %v219, 103
      %v260 = vpop.permute.xlu0 %259
      %261 = vrot.lane.b32.xlu0 %v220, 103
      %v262 = vpop.permute.xlu0 %261
      %vm263 = vcmask 842752
      %v264 = vsel %vm263, %v258, %v260
      %v265 = vsel %vm263, %v260, %v262
      %v268 = vunpack.c.l.b16 %v201
      %v269 = vunpack.c.l.b16 %v204
      %v270 = vpack.c.b16 %v269, %v268
      %271 = vrot.lane.b32.xlu0 %v218, 102
      %v272 = vpop.permute.xlu0 %271
      %273 = vrot.lane.b32.xlu0 %v219, 102
      %v274 = vpop.permute.xlu0 %273
      %275 = vrot.lane.b32.xlu0 %v220, 102
      %v276 = vpop.permute.xlu0 %275
      %277 = vrot.lane.b32.xlu0 %v270, 102
      %v278 = vpop.permute.xlu0 %277
      %vm279 = vcmask 834560
      %v280 = vsel %vm279, %v272, %v274
      %v281 = vsel %vm279, %v274, %v276
      %v282 = vsel %vm279, %v276, %v278
      %283 = vrot.lane.b32.xlu0 %v218, 80
      %v284 = vpop.permute.xlu0 %283
      %285 = vrot.lane.b32.xlu0 %v219, 80
      %v286 = vpop.permute.xlu0 %285
      %287 = vrot.lane.b32.xlu0 %v220, 80
      %v288 = vpop.permute.xlu0 %287
      %289 = vrot.lane.b32.xlu0 %v270, 80
      %v290 = vpop.permute.xlu0 %289
      %vm291 = vcmask 654336
      %v292 = vsel %vm291, %v284, %v286
      %v293 = vsel %vm291, %v286, %v288
      %v294 = vsel %vm291, %v288, %v290
      %295 = vrot.lane.b32.xlu0 %v218, 79
      %v296 = vpop.permute.xlu0 %295
      %297 = vrot.lane.b32.xlu0 %v219, 79
      %v298 = vpop.permute.xlu0 %297
      %299 = vrot.lane.b32.xlu0 %v220, 79
      %v300 = vpop.permute.xlu0 %299
      %301 = vrot.lane.b32.xlu0 %v270, 79
      %v302 = vpop.permute.xlu0 %301
      %vm303 = vcmask 646144
      %v304 = vsel %vm303, %v296, %v298
      %v305 = vsel %vm303, %v298, %v300
      %v306 = vsel %vm303, %v300, %v302
      %307 = vrot.lane.b32.xlu0 %v218, 78
      %v308 = vpop.permute.xlu0 %307
      %309 = vrot.lane.b32.xlu0 %v219, 78
      %v310 = vpop.permute.xlu0 %309
      %311 = vrot.lane.b32.xlu0 %v220, 78
      %v312 = vpop.permute.xlu0 %311
      %313 = vrot.lane.b32.xlu0 %v270, 78
      %v314 = vpop.permute.xlu0 %313
      %vm315 = vcmask 637952
      %v316 = vsel %vm315, %v308, %v310
      %v317 = vsel %vm315, %v310, %v312
      %v318 = vsel %vm315, %v312, %v314
      %v319 = vld [vmem:[%s1] sm:$0xff]
      %v320 = vld [vmem:[%s1 + $0x8] sm:$0xff]
      %v321 = vld [vmem:[%s2] sm:$0xff]
      %v322 = vld [vmem:[%s2 + $0x8] sm:$0xff]
      %324 = vset.pattern.permute.xlu0 0
      %325 = vperm.xlu0 %324, %v321
      %v326 = vpop.permute.xlu0 %325
      %329 = vset.pattern.permute.xlu0 0
      %330 = vperm.xlu0 %329, %v322
      %v331 = vpop.permute.xlu0 %330
      %v335 = vunpack.c.l.b16 %v319
      %v336 = vunpack.c.h.b16 %v319
      %v337 = vunpack.c.l.b16 %v320
      %v338 = vunpack.c.h.b16 %v320
      %v339 = vpack.c.b16 %v337, %v335
      %v340 = vpack.c.b16 %v338, %v336
      %342 = vrot.lane.b32.xlu0 %v217, 25
      %v343 = vpop.permute.xlu0 %342
      %344 = vrot.lane.b32.xlu0 %v218, 25
      %v345 = vpop.permute.xlu0 %344
      %346 = vrot.lane.b32.xlu0 %v219, 25
      %v347 = vpop.permute.xlu0 %346
      %348 = vrot.lane.b32.xlu0 %v220, 25
      %v349 = vpop.permute.xlu0 %348
      %350 = vrot.lane.b32.xlu0 %v230, 25
      %v351 = vpop.permute.xlu0 %350
      %352 = vrot.lane.b32.xlu0 %v231, 25
      %v353 = vpop.permute.xlu0 %352
      %354 = vrot.lane.b32.xlu0 %v232, 25
      %v355 = vpop.permute.xlu0 %354
      %356 = vrot.lane.b32.xlu0 %v228, 25
      %v357 = vpop.permute.xlu0 %356
      %358 = vrot.lane.b32.xlu0 %v242, 25
      %v359 = vpop.permute.xlu0 %358
      %360 = vrot.lane.b32.xlu0 %v243, 25
      %v361 = vpop.permute.xlu0 %360
      %362 = vrot.lane.b32.xlu0 %v244, 25
      %v363 = vpop.permute.xlu0 %362
      %364 = vrot.lane.b32.xlu0 %v240, 25
      %v365 = vpop.permute.xlu0 %364
      %366 = vrot.lane.b32.xlu0 %v254, 25
      %v367 = vpop.permute.xlu0 %366
      %368 = vrot.lane.b32.xlu0 %v255, 25
      %v369 = vpop.permute.xlu0 %368
      %370 = vrot.lane.b32.xlu0 %v256, 25
      %v371 = vpop.permute.xlu0 %370
      %372 = vrot.lane.b32.xlu0 %v252, 25
      %v373 = vpop.permute.xlu0 %372
      %374 = vrot.lane.b32.xlu0 %v258, 25
      %v375 = vpop.permute.xlu0 %374
      %376 = vrot.lane.b32.xlu0 %v264, 25
      %v377 = vpop.permute.xlu0 %376
      %378 = vrot.lane.b32.xlu0 %v265, 25
      %v379 = vpop.permute.xlu0 %378
      %380 = vrot.lane.b32.xlu0 %v262, 25
      %v381 = vpop.permute.xlu0 %380
      %382 = vrot.lane.b32.xlu0 %v272, 25
      %v383 = vpop.permute.xlu0 %382
      %384 = vrot.lane.b32.xlu0 %v280, 25
      %v385 = vpop.permute.xlu0 %384
      %386 = vrot.lane.b32.xlu0 %v281, 25
      %v387 = vpop.permute.xlu0 %386
      %388 = vrot.lane.b32.xlu0 %v282, 25
      %v389 = vpop.permute.xlu0 %388
      %390 = vrot.lane.b32.xlu0 %v284, 25
      %v391 = vpop.permute.xlu0 %390
      %392 = vrot.lane.b32.xlu0 %v292, 25
      %v393 = vpop.permute.xlu0 %392
      %394 = vrot.lane.b32.xlu0 %v293, 25
      %v395 = vpop.permute.xlu0 %394
      %396 = vrot.lane.b32.xlu0 %v294, 25
      %v397 = vpop.permute.xlu0 %396
      %398 = vrot.lane.b32.xlu0 %v296, 25
      %v399 = vpop.permute.xlu0 %398
      %400 = vrot.lane.b32.xlu0 %v304, 25
      %v401 = vpop.permute.xlu0 %400
      %402 = vrot.lane.b32.xlu0 %v305, 25
      %v403 = vpop.permute.xlu0 %402
      %404 = vrot.lane.b32.xlu0 %v306, 25
      %v405 = vpop.permute.xlu0 %404
      %406 = vrot.lane.b32.xlu0 %v308, 25
      %v407 = vpop.permute.xlu0 %406
      %408 = vrot.lane.b32.xlu0 %v316, 25
      %v409 = vpop.permute.xlu0 %408
      %410 = vrot.lane.b32.xlu0 %v317, 25
      %v411 = vpop.permute.xlu0 %410
      %412 = vrot.lane.b32.xlu0 %v318, 25
      %v413 = vpop.permute.xlu0 %412
      %vm414 = vcmask 203776
      %v415 = vsel %vm414, %v343, %v345
      %v416 = vsel %vm414, %v345, %v347
      %v417 = vsel %vm414, %v347, %v349
      %v418 = vsel %vm414, %v351, %v353
      %v419 = vsel %vm414, %v353, %v355
      %v420 = vsel %vm414, %v355, %v357
      %v421 = vsel %vm414, %v359, %v361
      %v422 = vsel %vm414, %v361, %v363
      %v423 = vsel %vm414, %v363, %v365
      %v424 = vsel %vm414, %v367, %v369
      %v425 = vsel %vm414, %v369, %v371
      %v426 = vsel %vm414, %v371, %v373
      %v427 = vsel %vm414, %v375, %v377
      %v428 = vsel %vm414, %v377, %v379
      %v429 = vsel %vm414, %v379, %v381
      %v430 = vsel %vm414, %v383, %v385
      %v431 = vsel %vm414, %v385, %v387
      %v432 = vsel %vm414, %v387, %v389
      %v433 = vsel %vm414, %v391, %v393
      %v434 = vsel %vm414, %v393, %v395
      %v435 = vsel %vm414, %v395, %v397
      %v436 = vsel %vm414, %v399, %v401
      %v437 = vsel %vm414, %v401, %v403
      %v438 = vsel %vm414, %v403, %v405
      %v439 = vsel %vm414, %v407, %v409
      %v440 = vsel %vm414, %v409, %v411
      %v441 = vsel %vm414, %v411, %v413
      %vm469 = vcmask 130048
      %v471 = vsel %vm469, %v340, 0
      %473 = vmatprep.subr.bf16.mxu0 %v416
      %474 = vmatpush1.bf16.msra.mxu0 %v415
      %475 = vmatprep.subr.bf16.mxu0 %v419
      %476 = vmatpush1.bf16.msra.mxu0 %v418
      %477 = vmatprep.subr.bf16.mxu0 %v422
      %478 = vmatpush1.bf16.msra.mxu0 %v421
      %479 = vmatprep.subr.bf16.mxu0 %v425
      %480 = vmatpush1.bf16.msra.mxu0 %v424
      %481 = vmatprep.subr.bf16.mxu0 %v428
      %482 = vmatpush1.bf16.msra.mxu0 %v427
      %483 = vmatprep.subr.bf16.mxu0 %v431
      %484 = vmatpush1.bf16.msra.mxu0 %v430
      %485 = vmatprep.subr.bf16.mxu0 %v434
      %486 = vmatpush1.bf16.msra.mxu0 %v433
      %487 = vmatprep.subr.bf16.mxu0 %v437
      %488 = vmatpush1.bf16.msra.mxu0 %v436
      %489 = vmatprep.subr.bf16.mxu0 %v440
      %490 = vmatpush1.bf16.msra.mxu0 %v439
      %491 = vmatprep.subr.bf16.mxu0 0
      %492 = vmatpush1.bf16.msra.mxu0 0
      %493 = vmatprep.subr.bf16.mxu0 0
      %494 = vmatpush1.bf16.msra.mxu0 0
      %495 = vmatprep.subr.bf16.mxu0 0
      %496 = vmatpush1.bf16.msra.mxu0 0
      %497 = vmatprep.subr.bf16.mxu0 0
      %498 = vmatpush1.bf16.msra.mxu0 0
      %499 = vmatprep.subr.bf16.mxu0 0
      %500 = vmatpush1.bf16.msra.mxu0 0
      %501 = vmatprep.subr.bf16.mxu0 0
      %502 = vmatpush1.bf16.msra.mxu0 0
      %503 = vmatprep.subr.bf16.mxu0 0
      %504 = vmatpush1.bf16.msra.mxu0 0
      %505 = vmatprep.mubr.bf16.mxu0 %v471
      %506 = vmatmul.mubr.bf16.gmra.mrb[0].mxu0 %v339
      %v507 = vpop.f32.mrb[0].mxu0
      %v508 = vadd.f32 %v326, %v507
      %v509 = vpop.f32.mrb[0].mxu0
      %v510 = vadd.f32 %v326, %v509
      %v511 = vpop.f32.mrb[0].mxu0
      %v512 = vadd.f32 %v331, %v511
      %v513 = vpop.f32.mrb[0].mxu0
      %v514 = vadd.f32 %v331, %v513
      %515 = vdwg.mxu0
      %516 = vmatprep.subr.bf16.mxu0 0
      %517 = vmatpush1.bf16.msra.mxu0 %v417
      %518 = vmatprep.subr.bf16.mxu0 0
      %519 = vmatpush1.bf16.msra.mxu0 %v420
      %520 = vmatprep.subr.bf16.mxu0 0
      %521 = vmatpush1.bf16.msra.mxu0 %v423
      %522 = vmatprep.subr.bf16.mxu0 0
      %523 = vmatpush1.bf16.msra.mxu0 %v426
      %524 = vmatprep.subr.bf16.mxu0 0
      %525 = vmatpush1.bf16.msra.mxu0 %v429
      %526 = vmatprep.subr.bf16.mxu0 0
      %527 = vmatpush1.bf16.msra.mxu0 %v432
      %528 = vmatprep.subr.bf16.mxu0 0
      %529 = vmatpush1.bf16.msra.mxu0 %v435
      %530 = vmatprep.subr.bf16.mxu0 0
      %531 = vmatpush1.bf16.msra.mxu0 %v438
      %532 = vmatprep.subr.bf16.mxu0 0
      %533 = vmatpush1.bf16.msra.mxu0 %v441
      %534 = vmatprep.subr.bf16.mxu0 0
      %535 = vmatpush1.bf16.msra.mxu0 0
      %536 = vmatprep.subr.bf16.mxu0 0
      %537 = vmatpush1.bf16.msra.mxu0 0
      %538 = vmatprep.subr.bf16.mxu0 0
      %539 = vmatpush1.bf16.msra.mxu0 0
      %540 = vmatprep.subr.bf16.mxu0 0
      %541 = vmatpush1.bf16.msra.mxu0 0
      %542 = vmatprep.subr.bf16.mxu0 0
      %543 = vmatpush1.bf16.msra.mxu0 0
      %544 = vmatprep.subr.bf16.mxu0 0
      %545 = vmatpush1.bf16.msra.mxu0 0
      %546 = vmatprep.subr.bf16.mxu0 0
      %547 = vmatpush1.bf16.msra.mxu0 0
      %548 = vmatprep.mubr.bf16.mxu0 %v471
      %549 = vmatmul.mubr.bf16.gmra.mrb[0].mxu0 %v339
      %v550 = vpop.f32.mrb[0].mxu0
      %v551 = vadd.f32 %v326, %v550
      %v552 = vpop.f32.mrb[0].mxu0
      %v553 = vpop.f32.mrb[0].mxu0
      %v554 = vadd.f32 %v331, %v553
      %v555 = vpop.f32.mrb[0].mxu0
      %556 = vdwg.mxu0
      %vm557 = vcmp.gt.f32.partialorder %v508, 0.0
      %vm558 = vcmp.gt.f32.partialorder %v510, 0.0
      %vm559 = vcmp.gt.f32.partialorder %v551, 0.0
      %vm560 = vcmp.gt.f32.partialorder %v512, 0.0
      %vm561 = vcmp.gt.f32.partialorder %v514, 0.0
      %vm562 = vcmp.gt.f32.partialorder %v554, 0.0
      %v563 = vmul.f32 %v508, 0.01
      %v564 = vmul.f32 %v510, 0.01
      %v565 = vmul.f32 %v551, 0.01
      %v566 = vmul.f32 %v512, 0.01
      %v567 = vmul.f32 %v514, 0.01
      %v568 = vmul.f32 %v554, 0.01
      %v569 = vsel %vm557, %v508, %v563
      %v570 = vsel %vm558, %v510, %v564
      %v571 = vsel %vm559, %v551, %v565
      %v572 = vsel %vm560, %v512, %v566
      %v573 = vsel %vm561, %v514, %v567
      %v574 = vsel %vm562, %v554, %v568
      %v575 = vld [vmem:[%s3] sm:$0x7]
      %v577 = vlaneseq
      %v578 = vshrl.u32 %v577, 7
      %v579 = vsub.s32 0, %v578
      %v580 = vrot.slane %v575, %v579
      %v581 = vlaneseq
      %v582 = vshrl.u32 %v581, 7
      %v583 = vsub.s32 1, %v582
      %v584 = vrot.slane %v575, %v583
      %v585 = vlaneseq
      %v586 = vshrl.u32 %v585, 7
      %v587 = vsub.s32 2, %v586
      %v588 = vrot.slane %v575, %v587
      %v592 = vmul.f32 %v569, %v580
      %v593 = vmul.f32 %v570, %v584
      %v594 = vmul.f32 %v571, %v588
      %v595 = vmul.f32 %v572, %v580
      %v596 = vmul.f32 %v573, %v584
      %v597 = vmul.f32 %v574, %v588
      %598 = vst [vmem:[%s197] sm:$0xff] 0
      %599 = vst [vmem:[%s197 + $0x8] sm:$0xff] 0
      %600 = vst [vmem:[%s197 + $0x10] sm:$0xf] 0
      %601 = vst [vmem:[%s197 + $0x14] sm:$0xff] 0
      %602 = vst [vmem:[%s197 + $0x1c] sm:$0xff] 0
      %603 = vst [vmem:[%s197 + $0x24] sm:$0xf] 0
      %v604 = vpack.c.bf16 %v595, %v592
      %v605 = vpack.c.bf16 %v596, %v593
      %v606 = vpack.c.bf16 %v597, %v594
      %v610 = vunpack.c.l.b16 %v604
      %v611 = vunpack.c.l.b16 %v605
      %v612 = vunpack.c.l.b16 %v606
      %v613 = vunpack.c.h.b16 %v604
      %v614 = vunpack.c.h.b16 %v605
      %v615 = vunpack.c.h.b16 %v606
      %v616 = vpack.c.b16 %v611, %v610
      %v617 = vpack.c.b16 %v612, %v612
      %v618 = vpack.c.b16 %v614, %v613
      %v619 = vpack.c.b16 %v615, %v615
      %624 = vst [vmem:[%s197 + $0x4] sm:$0xff] %v616
      %625 = vst [vmem:[%s197 + $0xc] sm:$0xf] %v617
      %626 = vst [vmem:[%s197 + $0x18] sm:$0xff] %v618
      %627 = vst [vmem:[%s197 + $0x20] sm:$0xf] %v619
      %p628 = scmp.lt.s32.totalorder %s15, 1
      %s629 = scalar_select %p628, %s15, 1
      %s630 = smul.addr %s629, 10
      %s631 = smul.addr %s630, 4
      %s632 = scalar_lea.vmem %s4, %s631
      // Predicated region
      $region37: #{_lambda_.7} parent=35 // pred_check
        %p633 = pneg %p122
      $region38: #{_lambda_.7} parent=35 // pred_check_branch
        %635 = sbr.rel (%p633) target = $region40
      $region39: #{_lambda_.7} parent=35 // pred_region
        _
      $region40: #{_lambda_.7} parent=35 // pred_fallthru
        _
    $region36: #{_lambda_.7} parent=5 // pred_fallthru
      _
    %p636 = scmp.le.s32.totalorder 2, %s10
    // Predicated region
    $region41: #{_lambda_.7} parent=5 // pred_check
      %p637 = pneg %p636
    $region42: #{_lambda_.7} parent=5 // pred_check_branch
      %639 = sbr.rel (%p637) target = $region44
    $region43: #{_lambda_.7} parent=5 // pred_region
      %s640 = ssub.s32 %s10, 2
      // Predicated region
      $region45: #{_lambda_.7} parent=43 // pred_check
        %p641 = pneg %p128
      $region46: #{_lambda_.7} parent=43 // pred_check_branch
        %643 = sbr.rel (%p641) target = $region48
      $region47: #{_lambda_.7} parent=43 // pred_region
        %p644 = scmp.lt.s32.totalorder %s16, 1
        %s645 = scalar_select %p644, %s16, 1
        %s646 = smul.addr %s645, 10
        %s647 = smul.addr %s646, 4
        %s648 = scalar_lea.vmem %s4, %s647
      $region48: #{_lambda_.7} parent=43 // pred_fallthru
        _
    $region44: #{_lambda_.7} parent=5 // pred_fallthru
      _
  $region6: #{_lambda_.7} parent=0 // loop_footer
    %s14 = sadd.s32 1, %s10
  $region7: #{_lambda_.7} parent=0 // loop_footer_branch
    %9 = sbr.rel target = $region3
  $region8: #{_lambda_.7} parent=0 // loop_exit
    _

// kernel: _lambda_.6
$region0: #{_lambda_.6}
  #allocation0 [shape = 'u32[]', space=smem, size = 0x4, offset = 0x4, fixed_abs, tag = 'smem constant byte address 0x4 - core index']
  #allocation1 [shape = 'u32[144,128]{1,0:T(1,128)}', space=vmem, size = 0x12000, scoped, tag = 'internal scratch']
  %s0 = inlined_call_operand.vmem [shape: bf16[2,16,640], index: 0, kind: input, shape index: {}]
  %s1 = inlined_call_operand.vmem [shape: bf16[16,144], index: 1, kind: input, shape index: {}]
  %s2 = inlined_call_operand.vmem [shape: f32[16,1], index: 2, kind: input, shape index: {}]
  %s3 = inlined_call_operand.vmem [shape: f32[1,384], index: 3, kind: input, shape index: {}]
  %s4 = inlined_call_operand.vmem [shape: bf16[2,16,640], index: 4, kind: output, shape index: {}]
  %s5 = sld [smem:[#allocation0]]
  $region49: #{_lambda_.6} parent=0
    _
  %s7 = ssub.s32 1, %s5
  %s8 = scalar_select 0, %s7, %s5
  loop: start=0, step=1, limit=4
  $region2: #{_lambda_.6} parent=0 // loop_pre_header
    _
  $region3: #{_lambda_.6} parent=0 // loop_header
    %s10 = sphi 0, %s14
    %p11 = scmp.ge.s32.totalorder %s10, 4
    %s20 = sphi 0, %s22
    %s23 = sphi 0, %s20
    %s24 = sphi 0, %s23
    %s40 = sphi 0, %s24
    %s44 = sphi 0, %s44
    %s46 = sphi 0, %s44
    %s47 = sphi 0, %s46
    %s61 = sphi 0, %s47
    %s65 = sphi 0, %s65
    %s67 = sphi 0, %s65
    %s68 = sphi 0, %s67
    %s82 = sphi 0, %s68
    %s86 = sphi 0, %s86
    %s88 = sphi 0, %s86
    %s89 = sphi 0, %s88
    %s103 = sphi 0, %s89
    %s109 = sphi 0, %s111
    %s112 = sphi 0, %s109
    %s113 = sphi 0, %s112
    %s129 = sphi 0, %s113
  $region4: #{_lambda_.6} parent=0 // loop_header_branch
    %13 = sbr.rel (%p11) target = $region8
  $region5: #{_lambda_.6} parent=0 // loop_body
    %s15 = ssub.s32 %s10, 1
    %s16 = ssub.s32 %s10, 2
    %s17 = sadd.s32 %s10, 1
    %s18 = ssub.s32 %s10, %s17
    %p19 = scmp.eq.s32.totalorder %s18, 0
    %s21 = sadd.s32 %s20, 1
    %s22 = scalar_select %p19, %s20, %s21
    %p25 = pneg %p19
    %p26 = scmp.eq.s32.totalorder %s10, 1
    %p27 = por %p25, %p26
    %p28 = scmp.ne.s32.totalorder %s20, %s23
    %p29 = scmp.eq.s32.totalorder %s10, 0
    %p30 = por %p28, %p29
    %p31 = scmp.ne.s32.totalorder %s20, %s23
    %p32 = scmp.eq.s32.totalorder %s15, 1
    %p33 = por %p31, %p32
    %p34 = scmp.ne.s32.totalorder %s23, %s24
    %p35 = scmp.eq.s32.totalorder %s15, 0
    %p36 = por %p34, %p35
    %p37 = scmp.ne.s32.totalorder %s23, %s24
    %p38 = scmp.eq.s32.totalorder %s16, 1
    %p39 = por %p37, %p38
    %p41 = scmp.ne.s32.totalorder %s24, %s40
    %p42 = scmp.eq.s32.totalorder %s16, 0
    %p43 = por %p41, %p42
    %s45 = sadd.s32 %s44, 1
    %p48 = scmp.eq.s32.totalorder %s10, 1
    %p49 = scmp.ne.s32.totalorder %s44, %s46
    %p50 = scmp.eq.s32.totalorder %s10, 0
    %p51 = por %p49, %p50
    %p52 = scmp.ne.s32.totalorder %s44, %s46
    %p53 = scmp.eq.s32.totalorder %s15, 1
    %p54 = por %p52, %p53
    %p55 = scmp.ne.s32.totalorder %s46, %s47
    %p56 = scmp.eq.s32.totalorder %s15, 0
    %p57 = por %p55, %p56
    %p58 = scmp.ne.s32.totalorder %s46, %s47
    %p59 = scmp.eq.s32.totalorder %s16, 1
    %p60 = por %p58, %p59
    %p62 = scmp.ne.s32.totalorder %s47, %s61
    %p63 = scmp.eq.s32.totalorder %s16, 0
    %p64 = por %p62, %p63
    %s66 = sadd.s32 %s65, 1
    %p69 = scmp.eq.s32.totalorder %s10, 1
    %p70 = scmp.ne.s32.totalorder %s65, %s67
    %p71 = scmp.eq.s32.totalorder %s10, 0
    %p72 = por %p70, %p71
    %p73 = scmp.ne.s32.totalorder %s65, %s67
    %p74 = scmp.eq.s32.totalorder %s15, 1
    %p75 = por %p73, %p74
    %p76 = scmp.ne.s32.totalorder %s67, %s68
    %p77 = scmp.eq.s32.totalorder %s15, 0
    %p78 = por %p76, %p77
    %p79 = scmp.ne.s32.totalorder %s67, %s68
    %p80 = scmp.eq.s32.totalorder %s16, 1
    %p81 = por %p79, %p80
    %p83 = scmp.ne.s32.totalorder %s68, %s82
    %p84 = scmp.eq.s32.totalorder %s16, 0
    %p85 = por %p83, %p84
    %s87 = sadd.s32 %s86, 1
    %p90 = scmp.eq.s32.totalorder %s10, 1
    %p91 = scmp.ne.s32.totalorder %s86, %s88
    %p92 = scmp.eq.s32.totalorder %s10, 0
    %p93 = por %p91, %p92
    %p94 = scmp.ne.s32.totalorder %s86, %s88
    %p95 = scmp.eq.s32.totalorder %s15, 1
    %p96 = por %p94, %p95
    %p97 = scmp.ne.s32.totalorder %s88, %s89
    %p98 = scmp.eq.s32.totalorder %s15, 0
    %p99 = por %p97, %p98
    %p100 = scmp.ne.s32.totalorder %s88, %s89
    %p101 = scmp.eq.s32.totalorder %s16, 1
    %p102 = por %p100, %p101
    %p104 = scmp.ne.s32.totalorder %s89, %s103
    %p105 = scmp.eq.s32.totalorder %s16, 0
    %p106 = por %p104, %p105
    %s107 = ssub.s32 %s10, %s17
    %p108 = scmp.eq.s32.totalorder %s107, 0
    %s110 = sadd.s32 %s109, 1
    %s111 = scalar_select %p108, %s109, %s110
    %p114 = pneg %p108
    %p115 = scmp.eq.s32.totalorder %s10, 1
    %p116 = por %p114, %p115
    %p117 = scmp.ne.s32.totalorder %s109, %s112
    %p118 = scmp.eq.s32.totalorder %s10, 0
    %p119 = por %p117, %p118
    %p120 = scmp.ne.s32.totalorder %s109, %s112
    %p121 = scmp.eq.s32.totalorder %s15, 1
    %p122 = por %p120, %p121
    %p123 = scmp.ne.s32.totalorder %s112, %s113
    %p124 = scmp.eq.s32.totalorder %s15, 0
    %p125 = por %p123, %p124
    %p126 = scmp.ne.s32.totalorder %s112, %s113
    %p127 = scmp.eq.s32.totalorder %s16, 1
    %p128 = por %p126, %p127
    %p130 = scmp.ne.s32.totalorder %s113, %s129
    %p131 = scmp.eq.s32.totalorder %s16, 0
    %p132 = por %p130, %p131
    %p133 = scmp.le.s32.totalorder 1, %s10
    %p134 = scmp.lt.s32.totalorder %s10, 3
    %p135 = pnand %p133, %p134
    %p136 = pneg %p135
    // Predicated region
    $region9: #{_lambda_.6} parent=5 // pred_check
      _
    $region10: #{_lambda_.6} parent=5 // pred_check_branch
      %138 = sbr.rel (%p135) target = $region12
    $region11: #{_lambda_.6} parent=5 // pred_region
      %s139 = ssub.s32 %s10, 1
      // Predicated region
      $region13: #{_lambda_.6} parent=11 // pred_check
        %p140 = pneg %p57
      $region14: #{_lambda_.6} parent=11 // pred_check_branch
        %142 = sbr.rel (%p140) target = $region16
      $region15: #{_lambda_.6} parent=11 // pred_region
        _
      $region16: #{_lambda_.6} parent=11 // pred_fallthru
        _
      // Predicated region
      $region17: #{_lambda_.6} parent=11 // pred_check
        %p143 = pneg %p78
      $region18: #{_lambda_.6} parent=11 // pred_check_branch
        %145 = sbr.rel (%p143) target = $region20
      $region19: #{_lambda_.6} parent=11 // pred_region
        _
      $region20: #{_lambda_.6} parent=11 // pred_fallthru
        _
      // Predicated region
      $region21: #{_lambda_.6} parent=11 // pred_check
        %p146 = pneg %p99
      $region22: #{_lambda_.6} parent=11 // pred_check_branch
        %148 = sbr.rel (%p146) target = $region24
      $region23: #{_lambda_.6} parent=11 // pred_region
        _
      $region24: #{_lambda_.6} parent=11 // pred_fallthru
        _
    $region12: #{_lambda_.6} parent=5 // pred_fallthru
      _
    %p149 = scmp.lt.s32.totalorder %s10, 2
    // Predicated region
    $region25: #{_lambda_.6} parent=5 // pred_check
      %p150 = pneg %p149
    $region26: #{_lambda_.6} parent=5 // pred_check_branch
      %152 = sbr.rel (%p150) target = $region28
    $region27: #{_lambda_.6} parent=5 // pred_region
      // Predicated region
      $region29: #{_lambda_.6} parent=27 // pred_check
        %p153 = pneg %p30
      $region30: #{_lambda_.6} parent=27 // pred_check_branch
        %155 = sbr.rel (%p153) target = $region32
      $region31: #{_lambda_.6} parent=27 // pred_region
        %p156 = scmp.lt.s32.totalorder %s10, 1
        %s157 = scalar_select %p156, %s10, 1
        %s158 = smul.addr %s157, 10
        %s159 = smul.addr %s158, 4
        %s160 = scalar_lea.vmem %s0, %s159
      $region32: #{_lambda_.6} parent=27 // pred_fallthru
        _
    $region28: #{_lambda_.6} parent=5 // pred_fallthru
      _
    %p161 = scmp.le.s32.totalorder 1, %s10
    %p162 = scmp.lt.s32.totalorder %s10, 3
    %p163 = pnand %p161, %p162
    %p164 = pneg %p163
    // Predicated region
    $region33: #{_lambda_.6} parent=5 // pred_check
      _
    $region34: #{_lambda_.6} parent=5 // pred_check_branch
      %166 = sbr.rel (%p163) target = $region36
    $region35: #{_lambda_.6} parent=5 // pred_region
      %s167 = ssub.s32 %s10, 1
      %p168 = scmp.lt.s32.totalorder %s15, 1
      %s169 = scalar_select %p168, %s15, 1
      %s170 = smul.addr %s169, 10
      %s171 = smul.addr %s170, 4
      %s172 = scalar_lea.vmem %s0, %s171
      %p173 = pneg %p36
      %p174 = pneg %p33
      %p175 = pneg %p57
      %p176 = pneg %p54
      %p177 = pneg %p78
      %p178 = pneg %p75
      %p179 = pneg %p99
      %p180 = pneg %p96
      %p181 = pneg %p125
      %p182 = pneg %p122
      %p183 = scmp.lt.s32.totalorder %s15, 1
      %s184 = scalar_select %p183, %s15, 1
      %s185 = smul.addr %s184, 10
      %s186 = smul.addr %s185, 4
      %s187 = scalar_lea.vmem %s4, %s186
      %p188 = scmp.lt.s32.totalorder %s15, 1
      %s189 = scalar_select %p188, %s15, 1
      %s190 = smul.addr %s189, 10
      %s191 = smul.addr %s190, 4
      %s192 = scalar_lea.vmem %s0, %s191
      %p193 = scmp.lt.s32.totalorder %s15, 1
      %s194 = scalar_select %p193, %s15, 1
      %s195 = smul.addr %s194, 10
      %s196 = smul.addr %s195, 4
      %s197 = scalar_lea.vmem %s4, %s196
      %v199 = vld [vmem:[%s192] sm:$0xff]
      %v200 = vld [vmem:[%s192 + $0x8] sm:$0xff]
      %v201 = vld [vmem:[%s192 + $0x10] sm:$0xf]
      %v202 = vld [vmem:[%s192 + $0x14] sm:$0xff]
      %v203 = vld [vmem:[%s192 + $0x1c] sm:$0xff]
      %v204 = vld [vmem:[%s192 + $0x24] sm:$0xf]
      %v209 = vunpack.c.l.b16 %v199
      %v210 = vunpack.c.h.b16 %v199
      %v211 = vunpack.c.l.b16 %v200
      %v212 = vunpack.c.h.b16 %v200
      %v213 = vunpack.c.l.b16 %v202
      %v214 = vunpack.c.h.b16 %v202
      %v215 = vunpack.c.l.b16 %v203
      %v216 = vunpack.c.h.b16 %v203
      %v217 = vpack.c.b16 %v213, %v209
      %v218 = vpack.c.b16 %v214, %v210
      %v219 = vpack.c.b16 %v215, %v211
      %v220 = vpack.c.b16 %v216, %v212
      %221 = vrot.lane.b32.xlu0 %v217, 127
      %v222 = vpop.permute.xlu0 %221
      %223 = vrot.lane.b32.xlu0 %v218, 127
      %v224 = vpop.permute.xlu0 %223
      %225 = vrot.lane.b32.xlu0 %v219, 127
      %v226 = vpop.permute.xlu0 %225
      %227 = vrot.lane.b32.xlu0 %v220, 127
      %v228 = vpop.permute.xlu0 %227
      %vm229 = vcmask 1039360
      %v230 = vsel %vm229, %v222, %v224
      %v231 = vsel %vm229, %v224, %v226
      %v232 = vsel %vm229, %v226, %v228
      %233 = vrot.lane.b32.xlu0 %v217, 126
      %v234 = vpop.permute.xlu0 %233
      %235 = vrot.lane.b32.xlu0 %v218, 126
      %v236 = vpop.permute.xlu0 %235
      %237 = vrot.lane.b32.xlu0 %v219, 126
      %v238 = vpop.permute.xlu0 %237
      %239 = vrot.lane.b32.xlu0 %v220, 126
      %v240 = vpop.permute.xlu0 %239
      %vm241 = vcmask 1031168
      %v242 = vsel %vm241, %v234, %v236
      %v243 = vsel %vm241, %v236, %v238
      %v244 = vsel %vm241, %v238, %v240
      %245 = vrot.lane.b32.xlu0 %v217, 104
      %v246 = vpop.permute.xlu0 %245
      %247 = vrot.lane.b32.xlu0 %v218, 104
      %v248 = vpop.permute.xlu0 %247
      %249 = vrot.lane.b32.xlu0 %v219, 104
      %v250 = vpop.permute.xlu0 %249
      %251 = vrot.lane.b32.xlu0 %v220, 104
      %v252 = vpop.permute.xlu0 %251
      %vm253 = vcmask 850944
      %v254 = vsel %vm253, %v246, %v248
      %v255 = vsel %vm253, %v248, %v250
      %v256 = vsel %vm253, %v250, %v252
      %257 = vrot.lane.b32.xlu0 %v218, 103
      %v258 = vpop.permute.xlu0 %257
      %259 = vrot.lane.b32.xlu0 %v219, 103
      %v260 = vpop.permute.xlu0 %259
      %261 = vrot.lane.b32.xlu0 %v220, 103
      %v262 = vpop.permute.xlu0 %261
      %vm263 = vcmask 842752
      %v264 = vsel %vm263, %v258, %v260
      %v265 = vsel %vm263, %v260, %v262
      %v268 = vunpack.c.l.b16 %v201
      %v269 = vunpack.c.l.b16 %v204
      %v270 = vpack.c.b16 %v269, %v268
      %271 = vrot.lane.b32.xlu0 %v218, 102
      %v272 = vpop.permute.xlu0 %271
      %273 = vrot.lane.b32.xlu0 %v219, 102
      %v274 = vpop.permute.xlu0 %273
      %275 = vrot.lane.b32.xlu0 %v220, 102
      %v276 = vpop.permute.xlu0 %275
      %277 = vrot.lane.b32.xlu0 %v270, 102
      %v278 = vpop.permute.xlu0 %277
      %vm279 = vcmask 834560
      %v280 = vsel %vm279, %v272, %v274
      %v281 = vsel %vm279, %v274, %v276
      %v282 = vsel %vm279, %v276, %v278
      %283 = vrot.lane.b32.xlu0 %v218, 80
      %v284 = vpop.permute.xlu0 %283
      %285 = vrot.lane.b32.xlu0 %v219, 80
      %v286 = vpop.permute.xlu0 %285
      %287 = vrot.lane.b32.xlu0 %v220, 80
      %v288 = vpop.permute.xlu0 %287
      %289 = vrot.lane.b32.xlu0 %v270, 80
      %v290 = vpop.permute.xlu0 %289
      %vm291 = vcmask 654336
      %v292 = vsel %vm291, %v284, %v286
      %v293 = vsel %vm291, %v286, %v288
      %v294 = vsel %vm291, %v288, %v290
      %295 = vrot.lane.b32.xlu0 %v218, 79
      %v296 = vpop.permute.xlu0 %295
      %297 = vrot.lane.b32.xlu0 %v219, 79
      %v298 = vpop.permute.xlu0 %297
      %299 = vrot.lane.b32.xlu0 %v220, 79
      %v300 = vpop.permute.xlu0 %299
      %301 = vrot.lane.b32.xlu0 %v270, 79
      %v302 = vpop.permute.xlu0 %301
      %vm303 = vcmask 646144
      %v304 = vsel %vm303, %v296, %v298
      %v305 = vsel %vm303, %v298, %v300
      %v306 = vsel %vm303, %v300, %v302
      %307 = vrot.lane.b32.xlu0 %v218, 78
      %v308 = vpop.permute.xlu0 %307
      %309 = vrot.lane.b32.xlu0 %v219, 78
      %v310 = vpop.permute.xlu0 %309
      %311 = vrot.lane.b32.xlu0 %v220, 78
      %v312 = vpop.permute.xlu0 %311
      %313 = vrot.lane.b32.xlu0 %v270, 78
      %v314 = vpop.permute.xlu0 %313
      %vm315 = vcmask 637952
      %v316 = vsel %vm315, %v308, %v310
      %v317 = vsel %vm315, %v310, %v312
      %v318 = vsel %vm315, %v312, %v314
      %v319 = vld [vmem:[%s1] sm:$0xff]
      %v320 = vld [vmem:[%s1 + $0x8] sm:$0xff]
      %v321 = vld [vmem:[%s2] sm:$0xff]
      %v322 = vld [vmem:[%s2 + $0x8] sm:$0xff]
      %324 = vset.pattern.permute.xlu0 0
      %325 = vperm.xlu0 %324, %v321
      %v326 = vpop.permute.xlu0 %325
      %329 = vset.pattern.permute.xlu0 0
      %330 = vperm.xlu0 %329, %v322
      %v331 = vpop.permute.xlu0 %330
      %v335 = vunpack.c.l.b16 %v319
      %v336 = vunpack.c.h.b16 %v319
      %v337 = vunpack.c.l.b16 %v320
      %v338 = vunpack.c.h.b16 %v320
      %v339 = vpack.c.b16 %v337, %v335
      %v340 = vpack.c.b16 %v338, %v336
      %342 = vrot.lane.b32.xlu0 %v217, 25
      %v343 = vpop.permute.xlu0 %342
      %344 = vrot.lane.b32.xlu0 %v218, 25
      %v345 = vpop.permute.xlu0 %344
      %346 = vrot.lane.b32.xlu0 %v219, 25
      %v347 = vpop.permute.xlu0 %346
      %348 = vrot.lane.b32.xlu0 %v220, 25
      %v349 = vpop.permute.xlu0 %348
      %350 = vrot.lane.b32.xlu0 %v230, 25
      %v351 = vpop.permute.xlu0 %350
      %352 = vrot.lane.b32.xlu0 %v231, 25
      %v353 = vpop.permute.xlu0 %352
      %354 = vrot.lane.b32.xlu0 %v232, 25
      %v355 = vpop.permute.xlu0 %354
      %356 = vrot.lane.b32.xlu0 %v228, 25
      %v357 = vpop.permute.xlu0 %356
      %358 = vrot.lane.b32.xlu0 %v242, 25
      %v359 = vpop.permute.xlu0 %358
      %360 = vrot.lane.b32.xlu0 %v243, 25
      %v361 = vpop.permute.xlu0 %360
      %362 = vrot.lane.b32.xlu0 %v244, 25
      %v363 = vpop.permute.xlu0 %362
      %364 = vrot.lane.b32.xlu0 %v240, 25
      %v365 = vpop.permute.xlu0 %364
      %366 = vrot.lane.b32.xlu0 %v254, 25
      %v367 = vpop.permute.xlu0 %366
      %368 = vrot.lane.b32.xlu0 %v255, 25
      %v369 = vpop.permute.xlu0 %368
      %370 = vrot.lane.b32.xlu0 %v256, 25
      %v371 = vpop.permute.xlu0 %370
      %372 = vrot.lane.b32.xlu0 %v252, 25
      %v373 = vpop.permute.xlu0 %372
      %374 = vrot.lane.b32.xlu0 %v258, 25
      %v375 = vpop.permute.xlu0 %374
      %376 = vrot.lane.b32.xlu0 %v264, 25
      %v377 = vpop.permute.xlu0 %376
      %378 = vrot.lane.b32.xlu0 %v265, 25
      %v379 = vpop.permute.xlu0 %378
      %380 = vrot.lane.b32.xlu0 %v262, 25
      %v381 = vpop.permute.xlu0 %380
      %382 = vrot.lane.b32.xlu0 %v272, 25
      %v383 = vpop.permute.xlu0 %382
      %384 = vrot.lane.b32.xlu0 %v280, 25
      %v385 = vpop.permute.xlu0 %384
      %386 = vrot.lane.b32.xlu0 %v281, 25
      %v387 = vpop.permute.xlu0 %386
      %388 = vrot.lane.b32.xlu0 %v282, 25
      %v389 = vpop.permute.xlu0 %388
      %390 = vrot.lane.b32.xlu0 %v284, 25
      %v391 = vpop.permute.xlu0 %390
      %392 = vrot.lane.b32.xlu0 %v292, 25
      %v393 = vpop.permute.xlu0 %392
      %394 = vrot.lane.b32.xlu0 %v293, 25
      %v395 = vpop.permute.xlu0 %394
      %396 = vrot.lane.b32.xlu0 %v294, 25
      %v397 = vpop.permute.xlu0 %396
      %398 = vrot.lane.b32.xlu0 %v296, 25
      %v399 = vpop.permute.xlu0 %398
      %400 = vrot.lane.b32.xlu0 %v304, 25
      %v401 = vpop.permute.xlu0 %400
      %402 = vrot.lane.b32.xlu0 %v305, 25
      %v403 = vpop.permute.xlu0 %402
      %404 = vrot.lane.b32.xlu0 %v306, 25
      %v405 = vpop.permute.xlu0 %404
      %406 = vrot.lane.b32.xlu0 %v308, 25
      %v407 = vpop.permute.xlu0 %406
      %408 = vrot.lane.b32.xlu0 %v316, 25
      %v409 = vpop.permute.xlu0 %408
      %410 = vrot.lane.b32.xlu0 %v317, 25
      %v411 = vpop.permute.xlu0 %410
      %412 = vrot.lane.b32.xlu0 %v318, 25
      %v413 = vpop.permute.xlu0 %412
      %vm414 = vcmask 203776
      %v415 = vsel %vm414, %v343, %v345
      %v416 = vsel %vm414, %v345, %v347
      %v417 = vsel %vm414, %v347, %v349
      %v418 = vsel %vm414, %v351, %v353
      %v419 = vsel %vm414, %v353, %v355
      %v420 = vsel %vm414, %v355, %v357
      %v421 = vsel %vm414, %v359, %v361
      %v422 = vsel %vm414, %v361, %v363
      %v423 = vsel %vm414, %v363, %v365
      %v424 = vsel %vm414, %v367, %v369
      %v425 = vsel %vm414, %v369, %v371
      %v426 = vsel %vm414, %v371, %v373
      %v427 = vsel %vm414, %v375, %v377
      %v428 = vsel %vm414, %v377, %v379
      %v429 = vsel %vm414, %v379, %v381
      %v430 = vsel %vm414, %v383, %v385
      %v431 = vsel %vm414, %v385, %v387
      %v432 = vsel %vm414, %v387, %v389
      %v433 = vsel %vm414, %v391, %v393
      %v434 = vsel %vm414, %v393, %v395
      %v435 = vsel %vm414, %v395, %v397
      %v436 = vsel %vm414, %v399, %v401
      %v437 = vsel %vm414, %v401, %v403
      %v438 = vsel %vm414, %v403, %v405
      %v439 = vsel %vm414, %v407, %v409
      %v440 = vsel %vm414, %v409, %v411
      %v441 = vsel %vm414, %v411, %v413
      %vm469 = vcmask 130048
      %v471 = vsel %vm469, %v340, 0
      %473 = vmatprep.subr.bf16.mxu0 %v416
      %474 = vmatpush1.bf16.msra.mxu0 %v415
      %475 = vmatprep.subr.bf16.mxu0 %v419
      %476 = vmatpush1.bf16.msra.mxu0 %v418
      %477 = vmatprep.subr.bf16.mxu0 %v422
      %478 = vmatpush1.bf16.msra.mxu0 %v421
      %479 = vmatprep.subr.bf16.mxu0 %v425
      %480 = vmatpush1.bf16.msra.mxu0 %v424
      %481 = vmatprep.subr.bf16.mxu0 %v428
      %482 = vmatpush1.bf16.msra.mxu0 %v427
      %483 = vmatprep.subr.bf16.mxu0 %v431
      %484 = vmatpush1.bf16.msra.mxu0 %v430
      %485 = vmatprep.subr.bf16.mxu0 %v434
      %486 = vmatpush1.bf16.msra.mxu0 %v433
      %487 = vmatprep.subr.bf16.mxu0 %v437
      %488 = vmatpush1.bf16.msra.mxu0 %v436
      %489 = vmatprep.subr.bf16.mxu0 %v440
      %490 = vmatpush1.bf16.msra.mxu0 %v439
      %491 = vmatprep.subr.bf16.mxu0 0
      %492 = vmatpush1.bf16.msra.mxu0 0
      %493 = vmatprep.subr.bf16.mxu0 0
      %494 = vmatpush1.bf16.msra.mxu0 0
      %495 = vmatprep.subr.bf16.mxu0 0
      %496 = vmatpush1.bf16.msra.mxu0 0
      %497 = vmatprep.subr.bf16.mxu0 0
      %498 = vmatpush1.bf16.msra.mxu0 0
      %499 = vmatprep.subr.bf16.mxu0 0
      %500 = vmatpush1.bf16.msra.mxu0 0
      %501 = vmatprep.subr.bf16.mxu0 0
      %502 = vmatpush1.bf16.msra.mxu0 0
      %503 = vmatprep.subr.bf16.mxu0 0
      %504 = vmatpush1.bf16.msra.mxu0 0
      %505 = vmatprep.mubr.bf16.mxu0 %v471
      %506 = vmatmul.mubr.bf16.gmra.mrb[0].mxu0 %v339
      %v507 = vpop.f32.mrb[0].mxu0
      %v508 = vadd.f32 %v326, %v507
      %v509 = vpop.f32.mrb[0].mxu0
      %v510 = vadd.f32 %v326, %v509
      %v511 = vpop.f32.mrb[0].mxu0
      %v512 = vadd.f32 %v331, %v511
      %v513 = vpop.f32.mrb[0].mxu0
      %v514 = vadd.f32 %v331, %v513
      %515 = vdwg.mxu0
      %516 = vmatprep.subr.bf16.mxu0 0
      %517 = vmatpush1.bf16.msra.mxu0 %v417
      %518 = vmatprep.subr.bf16.mxu0 0
      %519 = vmatpush1.bf16.msra.mxu0 %v420
      %520 = vmatprep.subr.bf16.mxu0 0
      %521 = vmatpush1.bf16.msra.mxu0 %v423
      %522 = vmatprep.subr.bf16.mxu0 0
      %523 = vmatpush1.bf16.msra.mxu0 %v426
      %524 = vmatprep.subr.bf16.mxu0 0
      %525 = vmatpush1.bf16.msra.mxu0 %v429
      %526 = vmatprep.subr.bf16.mxu0 0
      %527 = vmatpush1.bf16.msra.mxu0 %v432
      %528 = vmatprep.subr.bf16.mxu0 0
      %529 = vmatpush1.bf16.msra.mxu0 %v435
      %530 = vmatprep.subr.bf16.mxu0 0
      %531 = vmatpush1.bf16.msra.mxu0 %v438
      %532 = vmatprep.subr.bf16.mxu0 0
      %533 = vmatpush1.bf16.msra.mxu0 %v441
      %534 = vmatprep.subr.bf16.mxu0 0
      %535 = vmatpush1.bf16.msra.mxu0 0
      %536 = vmatprep.subr.bf16.mxu0 0
      %537 = vmatpush1.bf16.msra.mxu0 0
      %538 = vmatprep.subr.bf16.mxu0 0
      %539 = vmatpush1.bf16.msra.mxu0 0
      %540 = vmatprep.subr.bf16.mxu0 0
      %541 = vmatpush1.bf16.msra.mxu0 0
      %542 = vmatprep.subr.bf16.mxu0 0
      %543 = vmatpush1.bf16.msra.mxu0 0
      %544 = vmatprep.subr.bf16.mxu0 0
      %545 = vmatpush1.bf16.msra.mxu0 0
      %546 = vmatprep.subr.bf16.mxu0 0
      %547 = vmatpush1.bf16.msra.mxu0 0
      %548 = vmatprep.mubr.bf16.mxu0 %v471
      %549 = vmatmul.mubr.bf16.gmra.mrb[0].mxu0 %v339
      %v550 = vpop.f32.mrb[0].mxu0
      %v551 = vadd.f32 %v326, %v550
      %v552 = vpop.f32.mrb[0].mxu0
      %v553 = vpop.f32.mrb[0].mxu0
      %v554 = vadd.f32 %v331, %v553
      %v555 = vpop.f32.mrb[0].mxu0
      %556 = vdwg.mxu0
      %v557 = vmax.f32 %v508, 0.0
      %v558 = vmax.f32 %v510, 0.0
      %v559 = vmax.f32 %v551, 0.0
      %v560 = vmax.f32 %v512, 0.0
      %v561 = vmax.f32 %v514, 0.0
      %v562 = vmax.f32 %v554, 0.0
      %v563 = vld [vmem:[%s3] sm:$0x7]
      %v565 = vlaneseq
      %v566 = vshrl.u32 %v565, 7
      %v567 = vsub.s32 0, %v566
      %v568 = vrot.slane %v563, %v567
      %v569 = vlaneseq
      %v570 = vshrl.u32 %v569, 7
      %v571 = vsub.s32 1, %v570
      %v572 = vrot.slane %v563, %v571
      %v573 = vlaneseq
      %v574 = vshrl.u32 %v573, 7
      %v575 = vsub.s32 2, %v574
      %v576 = vrot.slane %v563, %v575
      %v580 = vmul.f32 %v557, %v568
      %v581 = vmul.f32 %v558, %v572
      %v582 = vmul.f32 %v559, %v576
      %v583 = vmul.f32 %v560, %v568
      %v584 = vmul.f32 %v561, %v572
      %v585 = vmul.f32 %v562, %v576
      %586 = vst [vmem:[%s197] sm:$0xff] 0
      %587 = vst [vmem:[%s197 + $0x8] sm:$0xff] 0
      %588 = vst [vmem:[%s197 + $0x10] sm:$0xf] 0
      %589 = vst [vmem:[%s197 + $0x14] sm:$0xff] 0
      %590 = vst [vmem:[%s197 + $0x1c] sm:$0xff] 0
      %591 = vst [vmem:[%s197 + $0x24] sm:$0xf] 0
      %v592 = vpack.c.bf16 %v583, %v580
      %v593 = vpack.c.bf16 %v584, %v581
      %v594 = vpack.c.bf16 %v585, %v582
      %v598 = vunpack.c.l.b16 %v592
      %v599 = vunpack.c.l.b16 %v593
      %v600 = vunpack.c.l.b16 %v594
      %v601 = vunpack.c.h.b16 %v592
      %v602 = vunpack.c.h.b16 %v593
      %v603 = vunpack.c.h.b16 %v594
      %v604 = vpack.c.b16 %v599, %v598
      %v605 = vpack.c.b16 %v600, %v600
      %v606 = vpack.c.b16 %v602, %v601
      %v607 = vpack.c.b16 %v603, %v603
      %612 = vst [vmem:[%s197 + $0x4] sm:$0xff] %v604
      %613 = vst [vmem:[%s197 + $0xc] sm:$0xf] %v605
      %614 = vst [vmem:[%s197 + $0x18] sm:$0xff] %v606
      %615 = vst [vmem:[%s197 + $0x20] sm:$0xf] %v607
      %p616 = scmp.lt.s32.totalorder %s15, 1
      %s617 = scalar_select %p616, %s15, 1
      %s618 = smul.addr %s617, 10
      %s619 = smul.addr %s618, 4
      %s620 = scalar_lea.vmem %s4, %s619
      // Predicated region
      $region37: #{_lambda_.6} parent=35 // pred_check
        %p621 = pneg %p122
      $region38: #{_lambda_.6} parent=35 // pred_check_branch
        %623 = sbr.rel (%p621) target = $region40
      $region39: #{_lambda_.6} parent=35 // pred_region
        _
      $region40: #{_lambda_.6} parent=35 // pred_fallthru
        _
    $region36: #{_lambda_.6} parent=5 // pred_fallthru
      _
    %p624 = scmp.le.s32.totalorder 2, %s10
    // Predicated region
    $region41: #{_lambda_.6} parent=5 // pred_check
      %p625 = pneg %p624
    $region42: #{_lambda_.6} parent=5 // pred_check_branch
      %627 = sbr.rel (%p625) target = $region44
    $region43: #{_lambda_.6} parent=5 // pred_region
      %s628 = ssub.s32 %s10, 2
      // Predicated region
      $region45: #{_lambda_.6} parent=43 // pred_check
        %p629 = pneg %p128
      $region46: #{_lambda_.6} parent=43 // pred_check_branch
        %631 = sbr.rel (%p629) target = $region48
      $region47: #{_lambda_.6} parent=43 // pred_region
        %p632 = scmp.lt.s32.totalorder %s16, 1
        %s633 = scalar_select %p632, %s16, 1
        %s634 = smul.addr %s633, 10
        %s635 = smul.addr %s634, 4
        %s636 = scalar_lea.vmem %s4, %s635
      $region48: #{_lambda_.6} parent=43 // pred_fallthru
        _
    $region44: #{_lambda_.6} parent=5 // pred_fallthru
      _
  $region6: #{_lambda_.6} parent=0 // loop_footer
    %s14 = sadd.s32 1, %s10
  $region7: #{_lambda_.6} parent=0 // loop_footer_branch
    %9 = sbr.rel target = $region3
  $region8: #{_lambda_.6} parent=0 // loop_exit
    _

// kernel: _lambda_.8
$region0: #{_lambda_.8}
  #allocation0 [shape = 'u32[]', space=smem, size = 0x4, offset = 0x4, fixed_abs, tag = 'smem constant byte address 0x4 - core index']
  #allocation1 [shape = 'u32[144,128]{1,0:T(1,128)}', space=vmem, size = 0x12000, scoped, tag = 'internal scratch']
  %s0 = inlined_call_operand.vmem [shape: bf16[2,16,384], index: 0, kind: input, shape index: {}]
  %s1 = inlined_call_operand.vmem [shape: bf16[16,144], index: 1, kind: input, shape index: {}]
  %s2 = inlined_call_operand.vmem [shape: f32[16,1], index: 2, kind: input, shape index: {}]
  %s3 = inlined_call_operand.vmem [shape: f32[1,128], index: 3, kind: input, shape index: {}]
  %s4 = inlined_call_operand.vmem [shape: bf16[2,16,384], index: 4, kind: output, shape index: {}]
  %s5 = sld [smem:[#allocation0]]
  $region49: #{_lambda_.8} parent=0
    _
  %s7 = ssub.s32 1, %s5
  %s8 = scalar_select 0, %s7, %s5
  loop: start=0, step=1, limit=4
  $region2: #{_lambda_.8} parent=0 // loop_pre_header
    _
  $region3: #{_lambda_.8} parent=0 // loop_header
    %s10 = sphi 0, %s14
    %p11 = scmp.ge.s32.totalorder %s10, 4
    %s20 = sphi 0, %s22
    %s23 = sphi 0, %s20
    %s24 = sphi 0, %s23
    %s40 = sphi 0, %s24
    %s44 = sphi 0, %s44
    %s46 = sphi 0, %s44
    %s47 = sphi 0, %s46
    %s61 = sphi 0, %s47
    %s65 = sphi 0, %s65
    %s67 = sphi 0, %s65
    %s68 = sphi 0, %s67
    %s82 = sphi 0, %s68
    %s86 = sphi 0, %s86
    %s88 = sphi 0, %s86
    %s89 = sphi 0, %s88
    %s103 = sphi 0, %s89
    %s109 = sphi 0, %s111
    %s112 = sphi 0, %s109
    %s113 = sphi 0, %s112
    %s129 = sphi 0, %s113
  $region4: #{_lambda_.8} parent=0 // loop_header_branch
    %13 = sbr.rel (%p11) target = $region8
  $region5: #{_lambda_.8} parent=0 // loop_body
    %s15 = ssub.s32 %s10, 1
    %s16 = ssub.s32 %s10, 2
    %s17 = sadd.s32 %s10, 1
    %s18 = ssub.s32 %s10, %s17
    %p19 = scmp.eq.s32.totalorder %s18, 0
    %s21 = sadd.s32 %s20, 1
    %s22 = scalar_select %p19, %s20, %s21
    %p25 = pneg %p19
    %p26 = scmp.eq.s32.totalorder %s10, 1
    %p27 = por %p25, %p26
    %p28 = scmp.ne.s32.totalorder %s20, %s23
    %p29 = scmp.eq.s32.totalorder %s10, 0
    %p30 = por %p28, %p29
    %p31 = scmp.ne.s32.totalorder %s20, %s23
    %p32 = scmp.eq.s32.totalorder %s15, 1
    %p33 = por %p31, %p32
    %p34 = scmp.ne.s32.totalorder %s23, %s24
    %p35 = scmp.eq.s32.totalorder %s15, 0
    %p36 = por %p34, %p35
    %p37 = scmp.ne.s32.totalorder %s23, %s24
    %p38 = scmp.eq.s32.totalorder %s16, 1
    %p39 = por %p37, %p38
    %p41 = scmp.ne.s32.totalorder %s24, %s40
    %p42 = scmp.eq.s32.totalorder %s16, 0
    %p43 = por %p41, %p42
    %s45 = sadd.s32 %s44, 1
    %p48 = scmp.eq.s32.totalorder %s10, 1
    %p49 = scmp.ne.s32.totalorder %s44, %s46
    %p50 = scmp.eq.s32.totalorder %s10, 0
    %p51 = por %p49, %p50
    %p52 = scmp.ne.s32.totalorder %s44, %s46
    %p53 = scmp.eq.s32.totalorder %s15, 1
    %p54 = por %p52, %p53
    %p55 = scmp.ne.s32.totalorder %s46, %s47
    %p56 = scmp.eq.s32.totalorder %s15, 0
    %p57 = por %p55, %p56
    %p58 = scmp.ne.s32.totalorder %s46, %s47
    %p59 = scmp.eq.s32.totalorder %s16, 1
    %p60 = por %p58, %p59
    %p62 = scmp.ne.s32.totalorder %s47, %s61
    %p63 = scmp.eq.s32.totalorder %s16, 0
    %p64 = por %p62, %p63
    %s66 = sadd.s32 %s65, 1
    %p69 = scmp.eq.s32.totalorder %s10, 1
    %p70 = scmp.ne.s32.totalorder %s65, %s67
    %p71 = scmp.eq.s32.totalorder %s10, 0
    %p72 = por %p70, %p71
    %p73 = scmp.ne.s32.totalorder %s65, %s67
    %p74 = scmp.eq.s32.totalorder %s15, 1
    %p75 = por %p73, %p74
    %p76 = scmp.ne.s32.totalorder %s67, %s68
    %p77 = scmp.eq.s32.totalorder %s15, 0
    %p78 = por %p76, %p77
    %p79 = scmp.ne.s32.totalorder %s67, %s68
    %p80 = scmp.eq.s32.totalorder %s16, 1
    %p81 = por %p79, %p80
    %p83 = scmp.ne.s32.totalorder %s68, %s82
    %p84 = scmp.eq.s32.totalorder %s16, 0
    %p85 = por %p83, %p84
    %s87 = sadd.s32 %s86, 1
    %p90 = scmp.eq.s32.totalorder %s10, 1
    %p91 = scmp.ne.s32.totalorder %s86, %s88
    %p92 = scmp.eq.s32.totalorder %s10, 0
    %p93 = por %p91, %p92
    %p94 = scmp.ne.s32.totalorder %s86, %s88
    %p95 = scmp.eq.s32.totalorder %s15, 1
    %p96 = por %p94, %p95
    %p97 = scmp.ne.s32.totalorder %s88, %s89
    %p98 = scmp.eq.s32.totalorder %s15, 0
    %p99 = por %p97, %p98
    %p100 = scmp.ne.s32.totalorder %s88, %s89
    %p101 = scmp.eq.s32.totalorder %s16, 1
    %p102 = por %p100, %p101
    %p104 = scmp.ne.s32.totalorder %s89, %s103
    %p105 = scmp.eq.s32.totalorder %s16, 0
    %p106 = por %p104, %p105
    %s107 = ssub.s32 %s10, %s17
    %p108 = scmp.eq.s32.totalorder %s107, 0
    %s110 = sadd.s32 %s109, 1
    %s111 = scalar_select %p108, %s109, %s110
    %p114 = pneg %p108
    %p115 = scmp.eq.s32.totalorder %s10, 1
    %p116 = por %p114, %p115
    %p117 = scmp.ne.s32.totalorder %s109, %s112
    %p118 = scmp.eq.s32.totalorder %s10, 0
    %p119 = por %p117, %p118
    %p120 = scmp.ne.s32.totalorder %s109, %s112
    %p121 = scmp.eq.s32.totalorder %s15, 1
    %p122 = por %p120, %p121
    %p123 = scmp.ne.s32.totalorder %s112, %s113
    %p124 = scmp.eq.s32.totalorder %s15, 0
    %p125 = por %p123, %p124
    %p126 = scmp.ne.s32.totalorder %s112, %s113
    %p127 = scmp.eq.s32.totalorder %s16, 1
    %p128 = por %p126, %p127
    %p130 = scmp.ne.s32.totalorder %s113, %s129
    %p131 = scmp.eq.s32.totalorder %s16, 0
    %p132 = por %p130, %p131
    %p133 = scmp.le.s32.totalorder 1, %s10
    %p134 = scmp.lt.s32.totalorder %s10, 3
    %p135 = pnand %p133, %p134
    %p136 = pneg %p135
    // Predicated region
    $region9: #{_lambda_.8} parent=5 // pred_check
      _
    $region10: #{_lambda_.8} parent=5 // pred_check_branch
      %138 = sbr.rel (%p135) target = $region12
    $region11: #{_lambda_.8} parent=5 // pred_region
      %s139 = ssub.s32 %s10, 1
      // Predicated region
      $region13: #{_lambda_.8} parent=11 // pred_check
        %p140 = pneg %p57
      $region14: #{_lambda_.8} parent=11 // pred_check_branch
        %142 = sbr.rel (%p140) target = $region16
      $region15: #{_lambda_.8} parent=11 // pred_region
        _
      $region16: #{_lambda_.8} parent=11 // pred_fallthru
        _
      // Predicated region
      $region17: #{_lambda_.8} parent=11 // pred_check
        %p143 = pneg %p78
      $region18: #{_lambda_.8} parent=11 // pred_check_branch
        %145 = sbr.rel (%p143) target = $region20
      $region19: #{_lambda_.8} parent=11 // pred_region
        _
      $region20: #{_lambda_.8} parent=11 // pred_fallthru
        _
      // Predicated region
      $region21: #{_lambda_.8} parent=11 // pred_check
        %p146 = pneg %p99
      $region22: #{_lambda_.8} parent=11 // pred_check_branch
        %148 = sbr.rel (%p146) target = $region24
      $region23: #{_lambda_.8} parent=11 // pred_region
        _
      $region24: #{_lambda_.8} parent=11 // pred_fallthru
        _
    $region12: #{_lambda_.8} parent=5 // pred_fallthru
      _
    %p149 = scmp.lt.s32.totalorder %s10, 2
    // Predicated region
    $region25: #{_lambda_.8} parent=5 // pred_check
      %p150 = pneg %p149
    $region26: #{_lambda_.8} parent=5 // pred_check_branch
      %152 = sbr.rel (%p150) target = $region28
    $region27: #{_lambda_.8} parent=5 // pred_region
      // Predicated region
      $region29: #{_lambda_.8} parent=27 // pred_check
        %p153 = pneg %p30
      $region30: #{_lambda_.8} parent=27 // pred_check_branch
        %155 = sbr.rel (%p153) target = $region32
      $region31: #{_lambda_.8} parent=27 // pred_region
        %p156 = scmp.lt.s32.totalorder %s10, 1
        %s157 = scalar_select %p156, %s10, 1
        %s158 = smul.addr %s157, 6
        %s159 = smul.addr %s158, 4
        %s160 = scalar_lea.vmem %s0, %s159
      $region32: #{_lambda_.8} parent=27 // pred_fallthru
        _
    $region28: #{_lambda_.8} parent=5 // pred_fallthru
      _
    %p161 = scmp.le.s32.totalorder 1, %s10
    %p162 = scmp.lt.s32.totalorder %s10, 3
    %p163 = pnand %p161, %p162
    %p164 = pneg %p163
    // Predicated region
    $region33: #{_lambda_.8} parent=5 // pred_check
      _
    $region34: #{_lambda_.8} parent=5 // pred_check_branch
      %166 = sbr.rel (%p163) target = $region36
    $region35: #{_lambda_.8} parent=5 // pred_region
      %s167 = ssub.s32 %s10, 1
      %p168 = scmp.lt.s32.totalorder %s15, 1
      %s169 = scalar_select %p168, %s15, 1
      %s170 = smul.addr %s169, 6
      %s171 = smul.addr %s170, 4
      %s172 = scalar_lea.vmem %s0, %s171
      %p173 = pneg %p36
      %p174 = pneg %p33
      %p175 = pneg %p57
      %p176 = pneg %p54
      %p177 = pneg %p78
      %p178 = pneg %p75
      %p179 = pneg %p99
      %p180 = pneg %p96
      %p181 = pneg %p125
      %p182 = pneg %p122
      %p183 = scmp.lt.s32.totalorder %s15, 1
      %s184 = scalar_select %p183, %s15, 1
      %s185 = smul.addr %s184, 6
      %s186 = smul.addr %s185, 4
      %s187 = scalar_lea.vmem %s4, %s186
      %p188 = scmp.lt.s32.totalorder %s15, 1
      %s189 = scalar_select %p188, %s15, 1
      %s190 = smul.addr %s189, 6
      %s191 = smul.addr %s190, 4
      %s192 = scalar_lea.vmem %s0, %s191
      %p193 = scmp.lt.s32.totalorder %s15, 1
      %s194 = scalar_select %p193, %s15, 1
      %s195 = smul.addr %s194, 6
      %s196 = smul.addr %s195, 4
      %s197 = scalar_lea.vmem %s4, %s196
      %v199 = vld [vmem:[%s192] sm:$0xff]
      %v200 = vld [vmem:[%s192 + $0x8] sm:$0xf]
      %v201 = vld [vmem:[%s192 + $0xc] sm:$0xff]
      %v202 = vld [vmem:[%s192 + $0x14] sm:$0xf]
      %v205 = vunpack.c.l.b16 %v199
      %v206 = vunpack.c.h.b16 %v199
      %v207 = vunpack.c.l.b16 %v201
      %v208 = vunpack.c.h.b16 %v201
      %v209 = vpack.c.b16 %v207, %v205
      %v210 = vpack.c.b16 %v208, %v206
      %211 = vrot.lane.b32.xlu0 %v209, 127
      %v212 = vpop.permute.xlu0 %211
      %213 = vrot.lane.b32.xlu0 %v210, 127
      %v214 = vpop.permute.xlu0 %213
      %vm215 = vcmask 1039360
      %v216 = vsel %vm215, %v212, %v214
      %217 = vrot.lane.b32.xlu0 %v209, 126
      %v218 = vpop.permute.xlu0 %217
      %219 = vrot.lane.b32.xlu0 %v210, 126
      %v220 = vpop.permute.xlu0 %219
      %vm221 = vcmask 1031168
      %v222 = vsel %vm221, %v218, %v220
      %223 = vrot.lane.b32.xlu0 %v209, 112
      %v224 = vpop.permute.xlu0 %223
      %225 = vrot.lane.b32.xlu0 %v210, 112
      %v226 = vpop.permute.xlu0 %225
      %vm227 = vcmask 916480
      %v228 = vsel %vm227, %v224, %v226
      %229 = vrot.lane.b32.xlu0 %v210, 111
      %v230 = vpop.permute.xlu0 %229
      %v233 = vunpack.c.l.b16 %v200
      %v234 = vunpack.c.l.b16 %v202
      %v235 = vpack.c.b16 %v234, %v233
      %236 = vrot.lane.b32.xlu0 %v210, 110
      %v237 = vpop.permute.xlu0 %236
      %238 = vrot.lane.b32.xlu0 %v235, 110
      %v239 = vpop.permute.xlu0 %238
      %vm240 = vcmask 900096
      %v241 = vsel %vm240, %v237, %v239
      %242 = vrot.lane.b32.xlu0 %v210, 96
      %v243 = vpop.permute.xlu0 %242
      %244 = vrot.lane.b32.xlu0 %v235, 96
      %v245 = vpop.permute.xlu0 %244
      %vm246 = vcmask 785408
      %v247 = vsel %vm246, %v243, %v245
      %248 = vrot.lane.b32.xlu0 %v210, 95
      %v249 = vpop.permute.xlu0 %248
      %250 = vrot.lane.b32.xlu0 %v235, 95
      %v251 = vpop.permute.xlu0 %250
      %vm252 = vcmask 777216
      %v253 = vsel %vm252, %v249, %v251
      %254 = vrot.lane.b32.xlu0 %v210, 94
      %v255 = vpop.permute.xlu0 %254
      %256 = vrot.lane.b32.xlu0 %v235, 94
      %v257 = vpop.permute.xlu0 %256
      %vm258 = vcmask 769024
      %v259 = vsel %vm258, %v255, %v257
      %v260 = vld [vmem:[%s1] sm:$0xff]
      %v261 = vld [vmem:[%s1 + $0x8] sm:$0xff]
      %v262 = vld [vmem:[%s2] sm:$0xff]
      %v263 = vld [vmem:[%s2 + $0x8] sm:$0xff]
      %265 = vset.pattern.permute.xlu0 0
      %266 = vperm.xlu0 %265, %v262
      %v267 = vpop.permute.xlu0 %266
      %270 = vset.pattern.permute.xlu0 0
      %271 = vperm.xlu0 %270, %v263
      %v272 = vpop.permute.xlu0 %271
      %v276 = vunpack.c.l.b16 %v260
      %v277 = vunpack.c.h.b16 %v260
      %v278 = vunpack.c.l.b16 %v261
      %v279 = vunpack.c.h.b16 %v261
      %v280 = vpack.c.b16 %v278, %v276
      %v281 = vpack.c.b16 %v279, %v277
      %283 = vrot.lane.b32.xlu0 %v209, 17
      %v284 = vpop.permute.xlu0 %283
      %285 = vrot.lane.b32.xlu0 %v210, 17
      %v286 = vpop.permute.xlu0 %285
      %287 = vrot.lane.b32.xlu0 %v216, 17
      %v288 = vpop.permute.xlu0 %287
      %289 = vrot.lane.b32.xlu0 %v214, 17
      %v290 = vpop.permute.xlu0 %289
      %291 = vrot.lane.b32.xlu0 %v222, 17
      %v292 = vpop.permute.xlu0 %291
      %293 = vrot.lane.b32.xlu0 %v220, 17
      %v294 = vpop.permute.xlu0 %293
      %295 = vrot.lane.b32.xlu0 %v228, 17
      %v296 = vpop.permute.xlu0 %295
      %297 = vrot.lane.b32.xlu0 %v226, 17
      %v298 = vpop.permute.xlu0 %297
      %299 = vrot.lane.b32.xlu0 %v230, 17
      %v300 = vpop.permute.xlu0 %299
      %301 = vrot.lane.b32.xlu0 %v237, 17
      %v302 = vpop.permute.xlu0 %301
      %303 = vrot.lane.b32.xlu0 %v241, 17
      %v304 = vpop.permute.xlu0 %303
      %305 = vrot.lane.b32.xlu0 %v243, 17
      %v306 = vpop.permute.xlu0 %305
      %307 = vrot.lane.b32.xlu0 %v247, 17
      %v308 = vpop.permute.xlu0 %307
      %309 = vrot.lane.b32.xlu0 %v249, 17
      %v310 = vpop.permute.xlu0 %309
      %311 = vrot.lane.b32.xlu0 %v253, 17
      %v312 = vpop.permute.xlu0 %311
      %313 = vrot.lane.b32.xlu0 %v255, 17
      %v314 = vpop.permute.xlu0 %313
      %315 = vrot.lane.b32.xlu0 %v259, 17
      %v316 = vpop.permute.xlu0 %315
      %vm317 = vcmask 138240
      %v318 = vsel %vm317, %v284, %v286
      %v319 = vsel %vm317, %v288, %v290
      %v320 = vsel %vm317, %v292, %v294
      %v321 = vsel %vm317, %v296, %v298
      %v322 = vsel %vm317, %v302, %v304
      %v323 = vsel %vm317, %v306, %v308
      %v324 = vsel %vm317, %v310, %v312
      %v325 = vsel %vm317, %v314, %v316
      %vm335 = vcmask 130048
      %v337 = vsel %vm335, %v281, 0
      %339 = vmatprep.subr.bf16.mxu0 0
      %340 = vmatpush1.bf16.msra.mxu0 %v318
      %341 = vmatprep.subr.bf16.mxu0 0
      %342 = vmatpush1.bf16.msra.mxu0 %v319
      %343 = vmatprep.subr.bf16.mxu0 0
      %344 = vmatpush1.bf16.msra.mxu0 %v320
      %345 = vmatprep.subr.bf16.mxu0 0
      %346 = vmatpush1.bf16.msra.mxu0 %v321
      %347 = vmatprep.subr.bf16.mxu0 0
      %348 = vmatpush1.bf16.msra.mxu0 %v300
      %349 = vmatprep.subr.bf16.mxu0 0
      %350 = vmatpush1.bf16.msra.mxu0 %v322
      %351 = vmatprep.subr.bf16.mxu0 0
      %352 = vmatpush1.bf16.msra.mxu0 %v323
      %353 = vmatprep.subr.bf16.mxu0 0
      %354 = vmatpush1.bf16.msra.mxu0 %v324
      %355 = vmatprep.subr.bf16.mxu0 0
      %356 = vmatpush1.bf16.msra.mxu0 %v325
      %357 = vmatprep.subr.bf16.mxu0 0
      %358 = vmatpush1.bf16.msra.mxu0 0
      %359 = vmatprep.subr.bf16.mxu0 0
      %360 = vmatpush1.bf16.msra.mxu0 0
      %361 = vmatprep.subr.bf16.mxu0 0
      %362 = vmatpush1.bf16.msra.mxu0 0
      %363 = vmatprep.subr.bf16.mxu0 0
      %364 = vmatpush1.bf16.msra.mxu0 0
      %365 = vmatprep.subr.bf16.mxu0 0
      %366 = vmatpush1.bf16.msra.mxu0 0
      %367 = vmatprep.subr.bf16.mxu0 0
      %368 = vmatpush1.bf16.msra.mxu0 0
      %369 = vmatprep.subr.bf16.mxu0 0
      %370 = vmatpush1.bf16.msra.mxu0 0
      %371 = vmatprep.mubr.bf16.mxu0 %v337
      %372 = vmatmul.mubr.bf16.gmra.mrb[0].mxu0 %v280
      %v373 = vpop.f32.mrb[0].mxu0
      %v374 = vadd.f32 %v267, %v373
      %v375 = vpop.f32.mrb[0].mxu0
      %v376 = vpop.f32.mrb[0].mxu0
      %v377 = vadd.f32 %v272, %v376
      %v378 = vpop.f32.mrb[0].mxu0
      %379 = vdwg.mxu0
      %vm380 = vcmp.gt.f32.partialorder %v374, 0.0
      %vm381 = vcmp.gt.f32.partialorder %v377, 0.0
      %v382 = vmul.f32 %v374, 0.01
      %v383 = vmul.f32 %v377, 0.01
      %v384 = vsel %vm380, %v374, %v382
      %v385 = vsel %vm381, %v377, %v383
      %v386 = vld [vmem:[%s3] sm:$0x1]
      %v388 = vlaneseq
      %v389 = vshrl.u32 %v388, 7
      %v390 = vsub.s32 0, %v389
      %v391 = vrot.slane %v386, %v390
      %v393 = vmul.f32 %v384, %v391
      %v394 = vmul.f32 %v385, %v391
      %395 = vst [vmem:[%s197] sm:$0xff] 0
      %396 = vst [vmem:[%s197 + $0x8] sm:$0xf] 0
      %397 = vst [vmem:[%s197 + $0xc] sm:$0xff] 0
      %398 = vst [vmem:[%s197 + $0x14] sm:$0xf] 0
      %v399 = vpack.c.bf16 %v394, %v393
      %v401 = vunpack.c.l.b16 %v399
      %v402 = vunpack.c.h.b16 %v399
      %v403 = vpack.c.b16 %v401, %v401
      %v404 = vpack.c.b16 %v402, %v402
      %407 = vst [vmem:[%s197 + $0x4] sm:$0xf] %v403
      %408 = vst [vmem:[%s197 + $0x10] sm:$0xf] %v404
      %p409 = scmp.lt.s32.totalorder %s15, 1
      %s410 = scalar_select %p409, %s15, 1
      %s411 = smul.addr %s410, 6
      %s412 = smul.addr %s411, 4
      %s413 = scalar_lea.vmem %s4, %s412
      // Predicated region
      $region37: #{_lambda_.8} parent=35 // pred_check
        %p414 = pneg %p122
      $region38: #{_lambda_.8} parent=35 // pred_check_branch
        %416 = sbr.rel (%p414) target = $region40
      $region39: #{_lambda_.8} parent=35 // pred_region
        _
      $region40: #{_lambda_.8} parent=35 // pred_fallthru
        _
    $region36: #{_lambda_.8} parent=5 // pred_fallthru
      _
    %p417 = scmp.le.s32.totalorder 2, %s10
    // Predicated region
    $region41: #{_lambda_.8} parent=5 // pred_check
      %p418 = pneg %p417
    $region42: #{_lambda_.8} parent=5 // pred_check_branch
      %420 = sbr.rel (%p418) target = $region44
    $region43: #{_lambda_.8} parent=5 // pred_region
      %s421 = ssub.s32 %s10, 2
      // Predicated region
      $region45: #{_lambda_.8} parent=43 // pred_check
        %p422 = pneg %p128
      $region46: #{_lambda_.8} parent=43 // pred_check_branch
        %424 = sbr.rel (%p422) target = $region48
      $region47: #{_lambda_.8} parent=43 // pred_region
        %p425 = scmp.lt.s32.totalorder %s16, 1
        %s426 = scalar_select %p425, %s16, 1
        %s427 = smul.addr %s426, 6
        %s428 = smul.addr %s427, 4
        %s429 = scalar_lea.vmem %s4, %s428
      $region48: #{_lambda_.8} parent=43 // pred_fallthru
        _
    $region44: #{_lambda_.8} parent=5 // pred_fallthru
      _
  $region6: #{_lambda_.8} parent=0 // loop_footer
    %s14 = sadd.s32 1, %s10
  $region7: #{_lambda_.8} parent=0 // loop_footer_branch
    %9 = sbr.rel target = $region3
  $region8: #{_lambda_.8} parent=0 // loop_exit
    _

// kernel: _lambda_.9
$region0: #{_lambda_.9}
  #allocation0 [shape = 'u32[]', space=smem, size = 0x4, offset = 0x4, fixed_abs, tag = 'smem constant byte address 0x4 - core index']
  #allocation1 [shape = 'u32[144,128]{1,0:T(1,128)}', space=vmem, size = 0x12000, scoped, tag = 'internal scratch']
  %s0 = inlined_call_operand.vmem [shape: bf16[2,16,384], index: 0, kind: input, shape index: {}]
  %s1 = inlined_call_operand.vmem [shape: bf16[16,144], index: 1, kind: input, shape index: {}]
  %s2 = inlined_call_operand.vmem [shape: f32[16,1], index: 2, kind: input, shape index: {}]
  %s3 = inlined_call_operand.vmem [shape: f32[1,128], index: 3, kind: input, shape index: {}]
  %s4 = inlined_call_operand.vmem [shape: bf16[2,16,384], index: 4, kind: output, shape index: {}]
  %s5 = sld [smem:[#allocation0]]
  $region49: #{_lambda_.9} parent=0
    _
  %s7 = ssub.s32 1, %s5
  %s8 = scalar_select 0, %s7, %s5
  loop: start=0, step=1, limit=4
  $region2: #{_lambda_.9} parent=0 // loop_pre_header
    _
  $region3: #{_lambda_.9} parent=0 // loop_header
    %s10 = sphi 0, %s14
    %p11 = scmp.ge.s32.totalorder %s10, 4
    %s20 = sphi 0, %s22
    %s23 = sphi 0, %s20
    %s24 = sphi 0, %s23
    %s40 = sphi 0, %s24
    %s44 = sphi 0, %s44
    %s46 = sphi 0, %s44
    %s47 = sphi 0, %s46
    %s61 = sphi 0, %s47
    %s65 = sphi 0, %s65
    %s67 = sphi 0, %s65
    %s68 = sphi 0, %s67
    %s82 = sphi 0, %s68
    %s86 = sphi 0, %s86
    %s88 = sphi 0, %s86
    %s89 = sphi 0, %s88
    %s103 = sphi 0, %s89
    %s109 = sphi 0, %s111
    %s112 = sphi 0, %s109
    %s113 = sphi 0, %s112
    %s129 = sphi 0, %s113
  $region4: #{_lambda_.9} parent=0 // loop_header_branch
    %13 = sbr.rel (%p11) target = $region8
  $region5: #{_lambda_.9} parent=0 // loop_body
    %s15 = ssub.s32 %s10, 1
    %s16 = ssub.s32 %s10, 2
    %s17 = sadd.s32 %s10, 1
    %s18 = ssub.s32 %s10, %s17
    %p19 = scmp.eq.s32.totalorder %s18, 0
    %s21 = sadd.s32 %s20, 1
    %s22 = scalar_select %p19, %s20, %s21
    %p25 = pneg %p19
    %p26 = scmp.eq.s32.totalorder %s10, 1
    %p27 = por %p25, %p26
    %p28 = scmp.ne.s32.totalorder %s20, %s23
    %p29 = scmp.eq.s32.totalorder %s10, 0
    %p30 = por %p28, %p29
    %p31 = scmp.ne.s32.totalorder %s20, %s23
    %p32 = scmp.eq.s32.totalorder %s15, 1
    %p33 = por %p31, %p32
    %p34 = scmp.ne.s32.totalorder %s23, %s24
    %p35 = scmp.eq.s32.totalorder %s15, 0
    %p36 = por %p34, %p35
    %p37 = scmp.ne.s32.totalorder %s23, %s24
    %p38 = scmp.eq.s32.totalorder %s16, 1
    %p39 = por %p37, %p38
    %p41 = scmp.ne.s32.totalorder %s24, %s40
    %p42 = scmp.eq.s32.totalorder %s16, 0
    %p43 = por %p41, %p42
    %s45 = sadd.s32 %s44, 1
    %p48 = scmp.eq.s32.totalorder %s10, 1
    %p49 = scmp.ne.s32.totalorder %s44, %s46
    %p50 = scmp.eq.s32.totalorder %s10, 0
    %p51 = por %p49, %p50
    %p52 = scmp.ne.s32.totalorder %s44, %s46
    %p53 = scmp.eq.s32.totalorder %s15, 1
    %p54 = por %p52, %p53
    %p55 = scmp.ne.s32.totalorder %s46, %s47
    %p56 = scmp.eq.s32.totalorder %s15, 0
    %p57 = por %p55, %p56
    %p58 = scmp.ne.s32.totalorder %s46, %s47
    %p59 = scmp.eq.s32.totalorder %s16, 1
    %p60 = por %p58, %p59
    %p62 = scmp.ne.s32.totalorder %s47, %s61
    %p63 = scmp.eq.s32.totalorder %s16, 0
    %p64 = por %p62, %p63
    %s66 = sadd.s32 %s65, 1
    %p69 = scmp.eq.s32.totalorder %s10, 1
    %p70 = scmp.ne.s32.totalorder %s65, %s67
    %p71 = scmp.eq.s32.totalorder %s10, 0
    %p72 = por %p70, %p71
    %p73 = scmp.ne.s32.totalorder %s65, %s67
    %p74 = scmp.eq.s32.totalorder %s15, 1
    %p75 = por %p73, %p74
    %p76 = scmp.ne.s32.totalorder %s67, %s68
    %p77 = scmp.eq.s32.totalorder %s15, 0
    %p78 = por %p76, %p77
    %p79 = scmp.ne.s32.totalorder %s67, %s68
    %p80 = scmp.eq.s32.totalorder %s16, 1
    %p81 = por %p79, %p80
    %p83 = scmp.ne.s32.totalorder %s68, %s82
    %p84 = scmp.eq.s32.totalorder %s16, 0
    %p85 = por %p83, %p84
    %s87 = sadd.s32 %s86, 1
    %p90 = scmp.eq.s32.totalorder %s10, 1
    %p91 = scmp.ne.s32.totalorder %s86, %s88
    %p92 = scmp.eq.s32.totalorder %s10, 0
    %p93 = por %p91, %p92
    %p94 = scmp.ne.s32.totalorder %s86, %s88
    %p95 = scmp.eq.s32.totalorder %s15, 1
    %p96 = por %p94, %p95
    %p97 = scmp.ne.s32.totalorder %s88, %s89
    %p98 = scmp.eq.s32.totalorder %s15, 0
    %p99 = por %p97, %p98
    %p100 = scmp.ne.s32.totalorder %s88, %s89
    %p101 = scmp.eq.s32.totalorder %s16, 1
    %p102 = por %p100, %p101
    %p104 = scmp.ne.s32.totalorder %s89, %s103
    %p105 = scmp.eq.s32.totalorder %s16, 0
    %p106 = por %p104, %p105
    %s107 = ssub.s32 %s10, %s17
    %p108 = scmp.eq.s32.totalorder %s107, 0
    %s110 = sadd.s32 %s109, 1
    %s111 = scalar_select %p108, %s109, %s110
    %p114 = pneg %p108
    %p115 = scmp.eq.s32.totalorder %s10, 1
    %p116 = por %p114, %p115
    %p117 = scmp.ne.s32.totalorder %s109, %s112
    %p118 = scmp.eq.s32.totalorder %s10, 0
    %p119 = por %p117, %p118
    %p120 = scmp.ne.s32.totalorder %s109, %s112
    %p121 = scmp.eq.s32.totalorder %s15, 1
    %p122 = por %p120, %p121
    %p123 = scmp.ne.s32.totalorder %s112, %s113
    %p124 = scmp.eq.s32.totalorder %s15, 0
    %p125 = por %p123, %p124
    %p126 = scmp.ne.s32.totalorder %s112, %s113
    %p127 = scmp.eq.s32.totalorder %s16, 1
    %p128 = por %p126, %p127
    %p130 = scmp.ne.s32.totalorder %s113, %s129
    %p131 = scmp.eq.s32.totalorder %s16, 0
    %p132 = por %p130, %p131
    %p133 = scmp.le.s32.totalorder 1, %s10
    %p134 = scmp.lt.s32.totalorder %s10, 3
    %p135 = pnand %p133, %p134
    %p136 = pneg %p135
    // Predicated region
    $region9: #{_lambda_.9} parent=5 // pred_check
      _
    $region10: #{_lambda_.9} parent=5 // pred_check_branch
      %138 = sbr.rel (%p135) target = $region12
    $region11: #{_lambda_.9} parent=5 // pred_region
      %s139 = ssub.s32 %s10, 1
      // Predicated region
      $region13: #{_lambda_.9} parent=11 // pred_check
        %p140 = pneg %p57
      $region14: #{_lambda_.9} parent=11 // pred_check_branch
        %142 = sbr.rel (%p140) target = $region16
      $region15: #{_lambda_.9} parent=11 // pred_region
        _
      $region16: #{_lambda_.9} parent=11 // pred_fallthru
        _
      // Predicated region
      $region17: #{_lambda_.9} parent=11 // pred_check
        %p143 = pneg %p78
      $region18: #{_lambda_.9} parent=11 // pred_check_branch
        %145 = sbr.rel (%p143) target = $region20
      $region19: #{_lambda_.9} parent=11 // pred_region
        _
      $region20: #{_lambda_.9} parent=11 // pred_fallthru
        _
      // Predicated region
      $region21: #{_lambda_.9} parent=11 // pred_check
        %p146 = pneg %p99
      $region22: #{_lambda_.9} parent=11 // pred_check_branch
        %148 = sbr.rel (%p146) target = $region24
      $region23: #{_lambda_.9} parent=11 // pred_region
        _
      $region24: #{_lambda_.9} parent=11 // pred_fallthru
        _
    $region12: #{_lambda_.9} parent=5 // pred_fallthru
      _
    %p149 = scmp.lt.s32.totalorder %s10, 2
    // Predicated region
    $region25: #{_lambda_.9} parent=5 // pred_check
      %p150 = pneg %p149
    $region26: #{_lambda_.9} parent=5 // pred_check_branch
      %152 = sbr.rel (%p150) target = $region28
    $region27: #{_lambda_.9} parent=5 // pred_region
      // Predicated region
      $region29: #{_lambda_.9} parent=27 // pred_check
        %p153 = pneg %p30
      $region30: #{_lambda_.9} parent=27 // pred_check_branch
        %155 = sbr.rel (%p153) target = $region32
      $region31: #{_lambda_.9} parent=27 // pred_region
        %p156 = scmp.lt.s32.totalorder %s10, 1
        %s157 = scalar_select %p156, %s10, 1
        %s158 = smul.addr %s157, 6
        %s159 = smul.addr %s158, 4
        %s160 = scalar_lea.vmem %s0, %s159
      $region32: #{_lambda_.9} parent=27 // pred_fallthru
        _
    $region28: #{_lambda_.9} parent=5 // pred_fallthru
      _
    %p161 = scmp.le.s32.totalorder 1, %s10
    %p162 = scmp.lt.s32.totalorder %s10, 3
    %p163 = pnand %p161, %p162
    %p164 = pneg %p163
    // Predicated region
    $region33: #{_lambda_.9} parent=5 // pred_check
      _
    $region34: #{_lambda_.9} parent=5 // pred_check_branch
      %166 = sbr.rel (%p163) target = $region36
    $region35: #{_lambda_.9} parent=5 // pred_region
      %s167 = ssub.s32 %s10, 1
      %p168 = scmp.lt.s32.totalorder %s15, 1
      %s169 = scalar_select %p168, %s15, 1
      %s170 = smul.addr %s169, 6
      %s171 = smul.addr %s170, 4
      %s172 = scalar_lea.vmem %s0, %s171
      %p173 = pneg %p36
      %p174 = pneg %p33
      %p175 = pneg %p57
      %p176 = pneg %p54
      %p177 = pneg %p78
      %p178 = pneg %p75
      %p179 = pneg %p99
      %p180 = pneg %p96
      %p181 = pneg %p125
      %p182 = pneg %p122
      %p183 = scmp.lt.s32.totalorder %s15, 1
      %s184 = scalar_select %p183, %s15, 1
      %s185 = smul.addr %s184, 6
      %s186 = smul.addr %s185, 4
      %s187 = scalar_lea.vmem %s4, %s186
      %p188 = scmp.lt.s32.totalorder %s15, 1
      %s189 = scalar_select %p188, %s15, 1
      %s190 = smul.addr %s189, 6
      %s191 = smul.addr %s190, 4
      %s192 = scalar_lea.vmem %s0, %s191
      %p193 = scmp.lt.s32.totalorder %s15, 1
      %s194 = scalar_select %p193, %s15, 1
      %s195 = smul.addr %s194, 6
      %s196 = smul.addr %s195, 4
      %s197 = scalar_lea.vmem %s4, %s196
      %v199 = vld [vmem:[%s192] sm:$0xff]
      %v200 = vld [vmem:[%s192 + $0x8] sm:$0xf]
      %v201 = vld [vmem:[%s192 + $0xc] sm:$0xff]
      %v202 = vld [vmem:[%s192 + $0x14] sm:$0xf]
      %v205 = vunpack.c.l.b16 %v199
      %v206 = vunpack.c.h.b16 %v199
      %v207 = vunpack.c.l.b16 %v201
      %v208 = vunpack.c.h.b16 %v201
      %v209 = vpack.c.b16 %v207, %v205
      %v210 = vpack.c.b16 %v208, %v206
      %211 = vrot.lane.b32.xlu0 %v209, 126
      %v212 = vpop.permute.xlu0 %211
      %213 = vrot.lane.b32.xlu0 %v210, 126
      %v214 = vpop.permute.xlu0 %213
      %vm215 = vcmask 1031168
      %v216 = vsel %vm215, %v212, %v214
      %217 = vrot.lane.b32.xlu0 %v209, 124
      %v218 = vpop.permute.xlu0 %217
      %219 = vrot.lane.b32.xlu0 %v210, 124
      %v220 = vpop.permute.xlu0 %219
      %vm221 = vcmask 1014784
      %v222 = vsel %vm221, %v218, %v220
      %223 = vrot.lane.b32.xlu0 %v209, 96
      %v224 = vpop.permute.xlu0 %223
      %225 = vrot.lane.b32.xlu0 %v210, 96
      %v226 = vpop.permute.xlu0 %225
      %vm227 = vcmask 785408
      %v228 = vsel %vm227, %v224, %v226
      %229 = vrot.lane.b32.xlu0 %v210, 94
      %v230 = vpop.permute.xlu0 %229
      %v233 = vunpack.c.l.b16 %v200
      %v234 = vunpack.c.l.b16 %v202
      %v235 = vpack.c.b16 %v234, %v233
      %236 = vrot.lane.b32.xlu0 %v210, 92
      %v237 = vpop.permute.xlu0 %236
      %238 = vrot.lane.b32.xlu0 %v235, 92
      %v239 = vpop.permute.xlu0 %238
      %vm240 = vcmask 752640
      %v241 = vsel %vm240, %v237, %v239
      %242 = vrot.lane.b32.xlu0 %v210, 64
      %v243 = vpop.permute.xlu0 %242
      %244 = vrot.lane.b32.xlu0 %v235, 64
      %v245 = vpop.permute.xlu0 %244
      %vm246 = vcmask 523264
      %v247 = vsel %vm246, %v243, %v245
      %248 = vrot.lane.b32.xlu0 %v210, 62
      %v249 = vpop.permute.xlu0 %248
      %250 = vrot.lane.b32.xlu0 %v235, 62
      %v251 = vpop.permute.xlu0 %250
      %vm252 = vcmask 506880
      %v253 = vsel %vm252, %v249, %v251
      %254 = vrot.lane.b32.xlu0 %v210, 60
      %v255 = vpop.permute.xlu0 %254
      %256 = vrot.lane.b32.xlu0 %v235, 60
      %v257 = vpop.permute.xlu0 %256
      %vm258 = vcmask 490496
      %v259 = vsel %vm258, %v255, %v257
      %v260 = vld [vmem:[%s1] sm:$0xff]
      %v261 = vld [vmem:[%s1 + $0x8] sm:$0xff]
      %v262 = vld [vmem:[%s2] sm:$0xff]
      %v263 = vld [vmem:[%s2 + $0x8] sm:$0xff]
      %265 = vset.pattern.permute.xlu0 0
      %266 = vperm.xlu0 %265, %v262
      %v267 = vpop.permute.xlu0 %266
      %270 = vset.pattern.permute.xlu0 0
      %271 = vperm.xlu0 %270, %v263
      %v272 = vpop.permute.xlu0 %271
      %v276 = vunpack.c.l.b16 %v260
      %v277 = vunpack.c.h.b16 %v260
      %v278 = vunpack.c.l.b16 %v261
      %v279 = vunpack.c.h.b16 %v261
      %v280 = vpack.c.b16 %v278, %v276
      %v281 = vpack.c.b16 %v279, %v277
      %283 = vrot.lane.b32.xlu0 %v209, 34
      %v284 = vpop.permute.xlu0 %283
      %285 = vrot.lane.b32.xlu0 %v210, 34
      %v286 = vpop.permute.xlu0 %285
      %287 = vrot.lane.b32.xlu0 %v216, 34
      %v288 = vpop.permute.xlu0 %287
      %289 = vrot.lane.b32.xlu0 %v214, 34
      %v290 = vpop.permute.xlu0 %289
      %291 = vrot.lane.b32.xlu0 %v222, 34
      %v292 = vpop.permute.xlu0 %291
      %293 = vrot.lane.b32.xlu0 %v220, 34
      %v294 = vpop.permute.xlu0 %293
      %295 = vrot.lane.b32.xlu0 %v228, 34
      %v296 = vpop.permute.xlu0 %295
      %297 = vrot.lane.b32.xlu0 %v226, 34
      %v298 = vpop.permute.xlu0 %297
      %299 = vrot.lane.b32.xlu0 %v230, 34
      %v300 = vpop.permute.xlu0 %299
      %301 = vrot.lane.b32.xlu0 %v237, 34
      %v302 = vpop.permute.xlu0 %301
      %303 = vrot.lane.b32.xlu0 %v241, 34
      %v304 = vpop.permute.xlu0 %303
      %305 = vrot.lane.b32.xlu0 %v243, 34
      %v306 = vpop.permute.xlu0 %305
      %307 = vrot.lane.b32.xlu0 %v247, 34
      %v308 = vpop.permute.xlu0 %307
      %309 = vrot.lane.b32.xlu0 %v249, 34
      %v310 = vpop.permute.xlu0 %309
      %311 = vrot.lane.b32.xlu0 %v253, 34
      %v312 = vpop.permute.xlu0 %311
      %313 = vrot.lane.b32.xlu0 %v255, 34
      %v314 = vpop.permute.xlu0 %313
      %315 = vrot.lane.b32.xlu0 %v259, 34
      %v316 = vpop.permute.xlu0 %315
      %vm317 = vcmask 277504
      %v318 = vsel %vm317, %v284, %v286
      %v319 = vsel %vm317, %v288, %v290
      %v320 = vsel %vm317, %v292, %v294
      %v321 = vsel %vm317, %v296, %v298
      %v322 = vsel %vm317, %v302, %v304
      %v323 = vsel %vm317, %v306, %v308
      %v324 = vsel %vm317, %v310, %v312
      %v325 = vsel %vm317, %v314, %v316
      %vm335 = vcmask 130048
      %v337 = vsel %vm335, %v281, 0
      %339 = vmatprep.subr.bf16.mxu0 0
      %340 = vmatpush1.bf16.msra.mxu0 %v318
      %341 = vmatprep.subr.bf16.mxu0 0
      %342 = vmatpush1.bf16.msra.mxu0 %v319
      %343 = vmatprep.subr.bf16.mxu0 0
      %344 = vmatpush1.bf16.msra.mxu0 %v320
      %345 = vmatprep.subr.bf16.mxu0 0
      %346 = vmatpush1.bf16.msra.mxu0 %v321
      %347 = vmatprep.subr.bf16.mxu0 0
      %348 = vmatpush1.bf16.msra.mxu0 %v300
      %349 = vmatprep.subr.bf16.mxu0 0
      %350 = vmatpush1.bf16.msra.mxu0 %v322
      %351 = vmatprep.subr.bf16.mxu0 0
      %352 = vmatpush1.bf16.msra.mxu0 %v323
      %353 = vmatprep.subr.bf16.mxu0 0
      %354 = vmatpush1.bf16.msra.mxu0 %v324
      %355 = vmatprep.subr.bf16.mxu0 0
      %356 = vmatpush1.bf16.msra.mxu0 %v325
      %357 = vmatprep.subr.bf16.mxu0 0
      %358 = vmatpush1.bf16.msra.mxu0 0
      %359 = vmatprep.subr.bf16.mxu0 0
      %360 = vmatpush1.bf16.msra.mxu0 0
      %361 = vmatprep.subr.bf16.mxu0 0
      %362 = vmatpush1.bf16.msra.mxu0 0
      %363 = vmatprep.subr.bf16.mxu0 0
      %364 = vmatpush1.bf16.msra.mxu0 0
      %365 = vmatprep.subr.bf16.mxu0 0
      %366 = vmatpush1.bf16.msra.mxu0 0
      %367 = vmatprep.subr.bf16.mxu0 0
      %368 = vmatpush1.bf16.msra.mxu0 0
      %369 = vmatprep.subr.bf16.mxu0 0
      %370 = vmatpush1.bf16.msra.mxu0 0
      %371 = vmatprep.mubr.bf16.mxu0 %v337
      %372 = vmatmul.mubr.bf16.gmra.mrb[0].mxu0 %v280
      %v373 = vpop.f32.mrb[0].mxu0
      %v374 = vadd.f32 %v267, %v373
      %v375 = vpop.f32.mrb[0].mxu0
      %v376 = vpop.f32.mrb[0].mxu0
      %v377 = vadd.f32 %v272, %v376
      %v378 = vpop.f32.mrb[0].mxu0
      %379 = vdwg.mxu0
      %v380 = vmax.f32 %v374, 0.0
      %v381 = vmax.f32 %v377, 0.0
      %v382 = vld [vmem:[%s3] sm:$0x1]
      %v384 = vlaneseq
      %v385 = vshrl.u32 %v384, 7
      %v386 = vsub.s32 0, %v385
      %v387 = vrot.slane %v382, %v386
      %v389 = vmul.f32 %v380, %v387
      %v390 = vmul.f32 %v381, %v387
      %391 = vst [vmem:[%s197] sm:$0xff] 0
      %392 = vst [vmem:[%s197 + $0x8] sm:$0xf] 0
      %393 = vst [vmem:[%s197 + $0xc] sm:$0xff] 0
      %394 = vst [vmem:[%s197 + $0x14] sm:$0xf] 0
      %v395 = vpack.c.bf16 %v390, %v389
      %v397 = vunpack.c.l.b16 %v395
      %v398 = vunpack.c.h.b16 %v395
      %v399 = vpack.c.b16 %v397, %v397
      %v400 = vpack.c.b16 %v398, %v398
      %403 = vst [vmem:[%s197 + $0x4] sm:$0xf] %v399
      %404 = vst [vmem:[%s197 + $0x10] sm:$0xf] %v400
      %p405 = scmp.lt.s32.totalorder %s15, 1
      %s406 = scalar_select %p405, %s15, 1
      %s407 = smul.addr %s406, 6
      %s408 = smul.addr %s407, 4
      %s409 = scalar_lea.vmem %s4, %s408
      // Predicated region
      $region37: #{_lambda_.9} parent=35 // pred_check
        %p410 = pneg %p122
      $region38: #{_lambda_.9} parent=35 // pred_check_branch
        %412 = sbr.rel (%p410) target = $region40
      $region39: #{_lambda_.9} parent=35 // pred_region
        _
      $region40: #{_lambda_.9} parent=35 // pred_fallthru
        _
    $region36: #{_lambda_.9} parent=5 // pred_fallthru
      _
    %p413 = scmp.le.s32.totalorder 2, %s10
    // Predicated region
    $region41: #{_lambda_.9} parent=5 // pred_check
      %p414 = pneg %p413
    $region42: #{_lambda_.9} parent=5 // pred_check_branch
      %416 = sbr.rel (%p414) target = $region44
    $region43: #{_lambda_.9} parent=5 // pred_region
      %s417 = ssub.s32 %s10, 2
      // Predicated region
      $region45: #{_lambda_.9} parent=43 // pred_check
        %p418 = pneg %p128
      $region46: #{_lambda_.9} parent=43 // pred_check_branch
        %420 = sbr.rel (%p418) target = $region48
      $region47: #{_lambda_.9} parent=43 // pred_region
        %p421 = scmp.lt.s32.totalorder %s16, 1
        %s422 = scalar_select %p421, %s16, 1
        %s423 = smul.addr %s422, 6
        %s424 = smul.addr %s423, 4
        %s425 = scalar_lea.vmem %s4, %s424
      $region48: #{_lambda_.9} parent=43 // pred_fallthru
        _
    $region44: #{_lambda_.9} parent=5 // pred_fallthru
      _
  $region6: #{_lambda_.9} parent=0 // loop_footer
    %s14 = sadd.s32 1, %s10
  $region7: #{_lambda_.9} parent=0 // loop_footer_branch
    %9 = sbr.rel target = $region3
  $region8: #{_lambda_.9} parent=0 // loop_exit
    _

// kernel: _lambda_.10
$region0: #{_lambda_.10}
  #allocation0 [shape = 'u32[]', space=smem, size = 0x4, offset = 0x4, fixed_abs, tag = 'smem constant byte address 0x4 - core index']
  #allocation1 [shape = 'u32[144,128]{1,0:T(1,128)}', space=vmem, size = 0x12000, scoped, tag = 'internal scratch']
  %s0 = inlined_call_operand.vmem [shape: bf16[2,32,384], index: 0, kind: input, shape index: {}]
  %s1 = inlined_call_operand.vmem [shape: bf16[16,288], index: 1, kind: input, shape index: {}]
  %s2 = inlined_call_operand.vmem [shape: f32[16,1], index: 2, kind: input, shape index: {}]
  %s3 = inlined_call_operand.vmem [shape: f32[1,128], index: 3, kind: input, shape index: {}]
  %s4 = inlined_call_operand.vmem [shape: bf16[2,16,384], index: 4, kind: output, shape index: {}]
  %s5 = sld [smem:[#allocation0]]
  $region49: #{_lambda_.10} parent=0
    _
  %s7 = ssub.s32 1, %s5
  %s8 = scalar_select 0, %s7, %s5
  loop: start=0, step=1, limit=4
  $region2: #{_lambda_.10} parent=0 // loop_pre_header
    _
  $region3: #{_lambda_.10} parent=0 // loop_header
    %s10 = sphi 0, %s14
    %p11 = scmp.ge.s32.totalorder %s10, 4
    %s20 = sphi 0, %s22
    %s23 = sphi 0, %s20
    %s24 = sphi 0, %s23
    %s40 = sphi 0, %s24
    %s44 = sphi 0, %s44
    %s46 = sphi 0, %s44
    %s47 = sphi 0, %s46
    %s61 = sphi 0, %s47
    %s65 = sphi 0, %s65
    %s67 = sphi 0, %s65
    %s68 = sphi 0, %s67
    %s82 = sphi 0, %s68
    %s86 = sphi 0, %s86
    %s88 = sphi 0, %s86
    %s89 = sphi 0, %s88
    %s103 = sphi 0, %s89
    %s109 = sphi 0, %s111
    %s112 = sphi 0, %s109
    %s113 = sphi 0, %s112
    %s129 = sphi 0, %s113
  $region4: #{_lambda_.10} parent=0 // loop_header_branch
    %13 = sbr.rel (%p11) target = $region8
  $region5: #{_lambda_.10} parent=0 // loop_body
    %s15 = ssub.s32 %s10, 1
    %s16 = ssub.s32 %s10, 2
    %s17 = sadd.s32 %s10, 1
    %s18 = ssub.s32 %s10, %s17
    %p19 = scmp.eq.s32.totalorder %s18, 0
    %s21 = sadd.s32 %s20, 1
    %s22 = scalar_select %p19, %s20, %s21
    %p25 = pneg %p19
    %p26 = scmp.eq.s32.totalorder %s10, 1
    %p27 = por %p25, %p26
    %p28 = scmp.ne.s32.totalorder %s20, %s23
    %p29 = scmp.eq.s32.totalorder %s10, 0
    %p30 = por %p28, %p29
    %p31 = scmp.ne.s32.totalorder %s20, %s23
    %p32 = scmp.eq.s32.totalorder %s15, 1
    %p33 = por %p31, %p32
    %p34 = scmp.ne.s32.totalorder %s23, %s24
    %p35 = scmp.eq.s32.totalorder %s15, 0
    %p36 = por %p34, %p35
    %p37 = scmp.ne.s32.totalorder %s23, %s24
    %p38 = scmp.eq.s32.totalorder %s16, 1
    %p39 = por %p37, %p38
    %p41 = scmp.ne.s32.totalorder %s24, %s40
    %p42 = scmp.eq.s32.totalorder %s16, 0
    %p43 = por %p41, %p42
    %s45 = sadd.s32 %s44, 1
    %p48 = scmp.eq.s32.totalorder %s10, 1
    %p49 = scmp.ne.s32.totalorder %s44, %s46
    %p50 = scmp.eq.s32.totalorder %s10, 0
    %p51 = por %p49, %p50
    %p52 = scmp.ne.s32.totalorder %s44, %s46
    %p53 = scmp.eq.s32.totalorder %s15, 1
    %p54 = por %p52, %p53
    %p55 = scmp.ne.s32.totalorder %s46, %s47
    %p56 = scmp.eq.s32.totalorder %s15, 0
    %p57 = por %p55, %p56
    %p58 = scmp.ne.s32.totalorder %s46, %s47
    %p59 = scmp.eq.s32.totalorder %s16, 1
    %p60 = por %p58, %p59
    %p62 = scmp.ne.s32.totalorder %s47, %s61
    %p63 = scmp.eq.s32.totalorder %s16, 0
    %p64 = por %p62, %p63
    %s66 = sadd.s32 %s65, 1
    %p69 = scmp.eq.s32.totalorder %s10, 1
    %p70 = scmp.ne.s32.totalorder %s65, %s67
    %p71 = scmp.eq.s32.totalorder %s10, 0
    %p72 = por %p70, %p71
    %p73 = scmp.ne.s32.totalorder %s65, %s67
    %p74 = scmp.eq.s32.totalorder %s15, 1
    %p75 = por %p73, %p74
    %p76 = scmp.ne.s32.totalorder %s67, %s68
    %p77 = scmp.eq.s32.totalorder %s15, 0
    %p78 = por %p76, %p77
    %p79 = scmp.ne.s32.totalorder %s67, %s68
    %p80 = scmp.eq.s32.totalorder %s16, 1
    %p81 = por %p79, %p80
    %p83 = scmp.ne.s32.totalorder %s68, %s82
    %p84 = scmp.eq.s32.totalorder %s16, 0
    %p85 = por %p83, %p84
    %s87 = sadd.s32 %s86, 1
    %p90 = scmp.eq.s32.totalorder %s10, 1
    %p91 = scmp.ne.s32.totalorder %s86, %s88
    %p92 = scmp.eq.s32.totalorder %s10, 0
    %p93 = por %p91, %p92
    %p94 = scmp.ne.s32.totalorder %s86, %s88
    %p95 = scmp.eq.s32.totalorder %s15, 1
    %p96 = por %p94, %p95
    %p97 = scmp.ne.s32.totalorder %s88, %s89
    %p98 = scmp.eq.s32.totalorder %s15, 0
    %p99 = por %p97, %p98
    %p100 = scmp.ne.s32.totalorder %s88, %s89
    %p101 = scmp.eq.s32.totalorder %s16, 1
    %p102 = por %p100, %p101
    %p104 = scmp.ne.s32.totalorder %s89, %s103
    %p105 = scmp.eq.s32.totalorder %s16, 0
    %p106 = por %p104, %p105
    %s107 = ssub.s32 %s10, %s17
    %p108 = scmp.eq.s32.totalorder %s107, 0
    %s110 = sadd.s32 %s109, 1
    %s111 = scalar_select %p108, %s109, %s110
    %p114 = pneg %p108
    %p115 = scmp.eq.s32.totalorder %s10, 1
    %p116 = por %p114, %p115
    %p117 = scmp.ne.s32.totalorder %s109, %s112
    %p118 = scmp.eq.s32.totalorder %s10, 0
    %p119 = por %p117, %p118
    %p120 = scmp.ne.s32.totalorder %s109, %s112
    %p121 = scmp.eq.s32.totalorder %s15, 1
    %p122 = por %p120, %p121
    %p123 = scmp.ne.s32.totalorder %s112, %s113
    %p124 = scmp.eq.s32.totalorder %s15, 0
    %p125 = por %p123, %p124
    %p126 = scmp.ne.s32.totalorder %s112, %s113
    %p127 = scmp.eq.s32.totalorder %s16, 1
    %p128 = por %p126, %p127
    %p130 = scmp.ne.s32.totalorder %s113, %s129
    %p131 = scmp.eq.s32.totalorder %s16, 0
    %p132 = por %p130, %p131
    %p133 = scmp.le.s32.totalorder 1, %s10
    %p134 = scmp.lt.s32.totalorder %s10, 3
    %p135 = pnand %p133, %p134
    %p136 = pneg %p135
    // Predicated region
    $region9: #{_lambda_.10} parent=5 // pred_check
      _
    $region10: #{_lambda_.10} parent=5 // pred_check_branch
      %138 = sbr.rel (%p135) target = $region12
    $region11: #{_lambda_.10} parent=5 // pred_region
      %s139 = ssub.s32 %s10, 1
      // Predicated region
      $region13: #{_lambda_.10} parent=11 // pred_check
        %p140 = pneg %p57
      $region14: #{_lambda_.10} parent=11 // pred_check_branch
        %142 = sbr.rel (%p140) target = $region16
      $region15: #{_lambda_.10} parent=11 // pred_region
        _
      $region16: #{_lambda_.10} parent=11 // pred_fallthru
        _
      // Predicated region
      $region17: #{_lambda_.10} parent=11 // pred_check
        %p143 = pneg %p78
      $region18: #{_lambda_.10} parent=11 // pred_check_branch
        %145 = sbr.rel (%p143) target = $region20
      $region19: #{_lambda_.10} parent=11 // pred_region
        _
      $region20: #{_lambda_.10} parent=11 // pred_fallthru
        _
      // Predicated region
      $region21: #{_lambda_.10} parent=11 // pred_check
        %p146 = pneg %p99
      $region22: #{_lambda_.10} parent=11 // pred_check_branch
        %148 = sbr.rel (%p146) target = $region24
      $region23: #{_lambda_.10} parent=11 // pred_region
        _
      $region24: #{_lambda_.10} parent=11 // pred_fallthru
        _
    $region12: #{_lambda_.10} parent=5 // pred_fallthru
      _
    %p149 = scmp.lt.s32.totalorder %s10, 2
    // Predicated region
    $region25: #{_lambda_.10} parent=5 // pred_check
      %p150 = pneg %p149
    $region26: #{_lambda_.10} parent=5 // pred_check_branch
      %152 = sbr.rel (%p150) target = $region28
    $region27: #{_lambda_.10} parent=5 // pred_region
      // Predicated region
      $region29: #{_lambda_.10} parent=27 // pred_check
        %p153 = pneg %p30
      $region30: #{_lambda_.10} parent=27 // pred_check_branch
        %155 = sbr.rel (%p153) target = $region32
      $region31: #{_lambda_.10} parent=27 // pred_region
        %p156 = scmp.lt.s32.totalorder %s10, 1
        %s157 = scalar_select %p156, %s10, 1
        %s158 = smul.addr %s157, 12
        %s159 = smul.addr %s158, 4
        %s160 = scalar_lea.vmem %s0, %s159
      $region32: #{_lambda_.10} parent=27 // pred_fallthru
        _
    $region28: #{_lambda_.10} parent=5 // pred_fallthru
      _
    %p161 = scmp.le.s32.totalorder 1, %s10
    %p162 = scmp.lt.s32.totalorder %s10, 3
    %p163 = pnand %p161, %p162
    %p164 = pneg %p163
    // Predicated region
    $region33: #{_lambda_.10} parent=5 // pred_check
      _
    $region34: #{_lambda_.10} parent=5 // pred_check_branch
      %166 = sbr.rel (%p163) target = $region36
    $region35: #{_lambda_.10} parent=5 // pred_region
      %s167 = ssub.s32 %s10, 1
      %p168 = scmp.lt.s32.totalorder %s15, 1
      %s169 = scalar_select %p168, %s15, 1
      %s170 = smul.addr %s169, 12
      %s171 = smul.addr %s170, 4
      %s172 = scalar_lea.vmem %s0, %s171
      %p173 = pneg %p36
      %p174 = pneg %p33
      %p175 = pneg %p57
      %p176 = pneg %p54
      %p177 = pneg %p78
      %p178 = pneg %p75
      %p179 = pneg %p99
      %p180 = pneg %p96
      %p181 = pneg %p125
      %p182 = pneg %p122
      %p183 = scmp.lt.s32.totalorder %s15, 1
      %s184 = scalar_select %p183, %s15, 1
      %s185 = smul.addr %s184, 6
      %s186 = smul.addr %s185, 4
      %s187 = scalar_lea.vmem %s4, %s186
      %p188 = scmp.lt.s32.totalorder %s15, 1
      %s189 = scalar_select %p188, %s15, 1
      %s190 = smul.addr %s189, 12
      %s191 = smul.addr %s190, 4
      %s192 = scalar_lea.vmem %s0, %s191
      %p193 = scmp.lt.s32.totalorder %s15, 1
      %s194 = scalar_select %p193, %s15, 1
      %s195 = smul.addr %s194, 6
      %s196 = smul.addr %s195, 4
      %s197 = scalar_lea.vmem %s4, %s196
      %v199 = vld [vmem:[%s192] sm:$0xff]
      %v200 = vld [vmem:[%s192 + $0x8] sm:$0xf]
      %v201 = vld [vmem:[%s192 + $0xc] sm:$0xff]
      %v202 = vld [vmem:[%s192 + $0x14] sm:$0xf]
      %v203 = vld [vmem:[%s192 + $0x18] sm:$0xff]
      %v204 = vld [vmem:[%s192 + $0x20] sm:$0xf]
      %v205 = vld [vmem:[%s192 + $0x24] sm:$0xff]
      %v206 = vld [vmem:[%s192 + $0x2c] sm:$0xf]
      %v211 = vunpack.c.l.b16 %v199
      %v212 = vunpack.c.h.b16 %v199
      %v213 = vunpack.c.l.b16 %v201
      %v214 = vunpack.c.h.b16 %v201
      %v215 = vunpack.c.l.b16 %v203
      %v216 = vunpack.c.h.b16 %v203
      %v217 = vunpack.c.l.b16 %v205
      %v218 = vunpack.c.h.b16 %v205
      %v219 = vpack.c.b16 %v213, %v211
      %v220 = vpack.c.b16 %v214, %v212
      %v221 = vpack.c.b16 %v217, %v215
      %v222 = vpack.c.b16 %v218, %v216
      %223 = vrot.lane.b32.xlu0 %v219, 127
      %v224 = vpop.permute.xlu0 %223
      %225 = vrot.lane.b32.xlu0 %v220, 127
      %v226 = vpop.permute.xlu0 %225
      %227 = vrot.lane.b32.xlu0 %v221, 127
      %v228 = vpop.permute.xlu0 %227
      %229 = vrot.lane.b32.xlu0 %v222, 127
      %v230 = vpop.permute.xlu0 %229
      %vm231 = vcmask 1039360
      %v232 = vsel %vm231, %v224, %v226
      %v233 = vsel %vm231, %v228, %v230
      %234 = vrot.lane.b32.xlu0 %v219, 126
      %v235 = vpop.permute.xlu0 %234
      %236 = vrot.lane.b32.xlu0 %v220, 126
      %v237 = vpop.permute.xlu0 %236
      %238 = vrot.lane.b32.xlu0 %v221, 126
      %v239 = vpop.permute.xlu0 %238
      %240 = vrot.lane.b32.xlu0 %v222, 126
      %v241 = vpop.permute.xlu0 %240
      %vm242 = vcmask 1031168
      %v243 = vsel %vm242, %v235, %v237
      %v244 = vsel %vm242, %v239, %v241
      %245 = vrot.lane.b32.xlu0 %v219, 112
      %v246 = vpop.permute.xlu0 %245
      %247 = vrot.lane.b32.xlu0 %v220, 112
      %v248 = vpop.permute.xlu0 %247
      %249 = vrot.lane.b32.xlu0 %v221, 112
      %v250 = vpop.permute.xlu0 %249
      %251 = vrot.lane.b32.xlu0 %v222, 112
      %v252 = vpop.permute.xlu0 %251
      %vm253 = vcmask 916480
      %v254 = vsel %vm253, %v246, %v248
      %v255 = vsel %vm253, %v250, %v252
      %256 = vrot.lane.b32.xlu0 %v220, 111
      %v257 = vpop.permute.xlu0 %256
      %258 = vrot.lane.b32.xlu0 %v222, 111
      %v259 = vpop.permute.xlu0 %258
      %v264 = vunpack.c.l.b16 %v200
      %v265 = vunpack.c.l.b16 %v202
      %v266 = vunpack.c.l.b16 %v204
      %v267 = vunpack.c.l.b16 %v206
      %v268 = vpack.c.b16 %v265, %v264
      %v269 = vpack.c.b16 %v267, %v266
      %270 = vrot.lane.b32.xlu0 %v220, 110
      %v271 = vpop.permute.xlu0 %270
      %272 = vrot.lane.b32.xlu0 %v268, 110
      %v273 = vpop.permute.xlu0 %272
      %274 = vrot.lane.b32.xlu0 %v222, 110
      %v275 = vpop.permute.xlu0 %274
      %276 = vrot.lane.b32.xlu0 %v269, 110
      %v277 = vpop.permute.xlu0 %276
      %vm278 = vcmask 900096
      %v279 = vsel %vm278, %v271, %v273
      %v280 = vsel %vm278, %v275, %v277
      %281 = vrot.lane.b32.xlu0 %v220, 96
      %v282 = vpop.permute.xlu0 %281
      %283 = vrot.lane.b32.xlu0 %v268, 96
      %v284 = vpop.permute.xlu0 %283
      %285 = vrot.lane.b32.xlu0 %v222, 96
      %v286 = vpop.permute.xlu0 %285
      %287 = vrot.lane.b32.xlu0 %v269, 96
      %v288 = vpop.permute.xlu0 %287
      %vm289 = vcmask 785408
      %v290 = vsel %vm289, %v282, %v284
      %v291 = vsel %vm289, %v286, %v288
      %292 = vrot.lane.b32.xlu0 %v220, 95
      %v293 = vpop.permute.xlu0 %292
      %294 = vrot.lane.b32.xlu0 %v268, 95
      %v295 = vpop.permute.xlu0 %294
      %296 = vrot.lane.b32.xlu0 %v222, 95
      %v297 = vpop.permute.xlu0 %296
      %298 = vrot.lane.b32.xlu0 %v269, 95
      %v299 = vpop.permute.xlu0 %298
      %vm300 = vcmask 777216
      %v301 = vsel %vm300, %v293, %v295
      %v302 = vsel %vm300, %v297, %v299
      %303 = vrot.lane.b32.xlu0 %v220, 94
      %v304 = vpop.permute.xlu0 %303
      %305 = vrot.lane.b32.xlu0 %v268, 94
      %v306 = vpop.permute.xlu0 %305
      %307 = vrot.lane.b32.xlu0 %v222, 94
      %v308 = vpop.permute.xlu0 %307
      %309 = vrot.lane.b32.xlu0 %v269, 94
      %v310 = vpop.permute.xlu0 %309
      %vm311 = vcmask 769024
      %v312 = vsel %vm311, %v304, %v306
      %v313 = vsel %vm311, %v308, %v310
      %v314 = vld [vmem:[%s1] sm:$0xff]
      %v315 = vld [vmem:[%s1 + $0x8] sm:$0xf]
      %v316 = vld [vmem:[%s1 + $0xc] sm:$0xff]
      %v317 = vld [vmem:[%s1 + $0x14] sm:$0xf]
      %v318 = vld [vmem:[%s2] sm:$0xff]
      %v319 = vld [vmem:[%s2 + $0x8] sm:$0xff]
      %321 = vset.pattern.permute.xlu0 0
      %322 = vperm.xlu0 %321, %v318
      %v323 = vpop.permute.xlu0 %322
      %326 = vset.pattern.permute.xlu0 0
      %327 = vperm.xlu0 %326, %v319
      %v328 = vpop.permute.xlu0 %327
      %v334 = vunpack.c.l.b16 %v314
      %v335 = vunpack.c.h.b16 %v314
      %v336 = vunpack.c.l.b16 %v315
      %v337 = vunpack.c.l.b16 %v316
      %v338 = vunpack.c.h.b16 %v316
      %v339 = vunpack.c.l.b16 %v317
      %v340 = vpack.c.b16 %v337, %v334
      %v341 = vpack.c.b16 %v338, %v335
      %v342 = vpack.c.b16 %v339, %v336
      %345 = vrot.lane.b32.xlu0 %v219, 17
      %v346 = vpop.permute.xlu0 %345
      %347 = vrot.lane.b32.xlu0 %v220, 17
      %v348 = vpop.permute.xlu0 %347
      %349 = vrot.lane.b32.xlu0 %v221, 17
      %v350 = vpop.permute.xlu0 %349
      %351 = vrot.lane.b32.xlu0 %v222, 17
      %v352 = vpop.permute.xlu0 %351
      %353 = vrot.lane.b32.xlu0 %v232, 17
      %v354 = vpop.permute.xlu0 %353
      %355 = vrot.lane.b32.xlu0 %v226, 17
      %v356 = vpop.permute.xlu0 %355
      %357 = vrot.lane.b32.xlu0 %v233, 17
      %v358 = vpop.permute.xlu0 %357
      %359 = vrot.lane.b32.xlu0 %v230, 17
      %v360 = vpop.permute.xlu0 %359
      %361 = vrot.lane.b32.xlu0 %v243, 17
      %v362 = vpop.permute.xlu0 %361
      %363 = vrot.lane.b32.xlu0 %v237, 17
      %v364 = vpop.permute.xlu0 %363
      %365 = vrot.lane.b32.xlu0 %v244, 17
      %v366 = vpop.permute.xlu0 %365
      %367 = vrot.lane.b32.xlu0 %v241, 17
      %v368 = vpop.permute.xlu0 %367
      %369 = vrot.lane.b32.xlu0 %v254, 17
      %v370 = vpop.permute.xlu0 %369
      %371 = vrot.lane.b32.xlu0 %v248, 17
      %v372 = vpop.permute.xlu0 %371
      %373 = vrot.lane.b32.xlu0 %v255, 17
      %v374 = vpop.permute.xlu0 %373
      %375 = vrot.lane.b32.xlu0 %v252, 17
      %v376 = vpop.permute.xlu0 %375
      %377 = vrot.lane.b32.xlu0 %v257, 17
      %v378 = vpop.permute.xlu0 %377
      %379 = vrot.lane.b32.xlu0 %v259, 17
      %v380 = vpop.permute.xlu0 %379
      %381 = vrot.lane.b32.xlu0 %v271, 17
      %v382 = vpop.permute.xlu0 %381
      %383 = vrot.lane.b32.xlu0 %v279, 17
      %v384 = vpop.permute.xlu0 %383
      %385 = vrot.lane.b32.xlu0 %v275, 17
      %v386 = vpop.permute.xlu0 %385
      %387 = vrot.lane.b32.xlu0 %v280, 17
      %v388 = vpop.permute.xlu0 %387
      %389 = vrot.lane.b32.xlu0 %v282, 17
      %v390 = vpop.permute.xlu0 %389
      %391 = vrot.lane.b32.xlu0 %v290, 17
      %v392 = vpop.permute.xlu0 %391
      %393 = vrot.lane.b32.xlu0 %v286, 17
      %v394 = vpop.permute.xlu0 %393
      %395 = vrot.lane.b32.xlu0 %v291, 17
      %v396 = vpop.permute.xlu0 %395
      %397 = vrot.lane.b32.xlu0 %v293, 17
      %v398 = vpop.permute.xlu0 %397
      %399 = vrot.lane.b32.xlu0 %v301, 17
      %v400 = vpop.permute.xlu0 %399
      %401 = vrot.lane.b32.xlu0 %v297, 17
      %v402 = vpop.permute.xlu0 %401
      %403 = vrot.lane.b32.xlu0 %v302, 17
      %v404 = vpop.permute.xlu0 %403
      %405 = vrot.lane.b32.xlu0 %v304, 17
      %v406 = vpop.permute.xlu0 %405
      %407 = vrot.lane.b32.xlu0 %v312, 17
      %v408 = vpop.permute.xlu0 %407
      %409 = vrot.lane.b32.xlu0 %v308, 17
      %v410 = vpop.permute.xlu0 %409
      %411 = vrot.lane.b32.xlu0 %v313, 17
      %v412 = vpop.permute.xlu0 %411
      %vm413 = vcmask 138240
      %v414 = vsel %vm413, %v346, %v348
      %v415 = vsel %vm413, %v350, %v352
      %v416 = vsel %vm413, %v354, %v356
      %v417 = vsel %vm413, %v358, %v360
      %v418 = vsel %vm413, %v362, %v364
      %v419 = vsel %vm413, %v366, %v368
      %v420 = vsel %vm413, %v370, %v372
      %v421 = vsel %vm413, %v374, %v376
      %v422 = vsel %vm413, %v382, %v384
      %v423 = vsel %vm413, %v386, %v388
      %v424 = vsel %vm413, %v390, %v392
      %v425 = vsel %vm413, %v394, %v396
      %v426 = vsel %vm413, %v398, %v400
      %v427 = vsel %vm413, %v402, %v404
      %v428 = vsel %vm413, %v406, %v408
      %v429 = vsel %vm413, %v410, %v412
      %vm448 = vcmask 261120
      %v450 = vsel %vm448, %v342, 0
      %452 = vmatprep.subr.bf16.mxu0 0
      %453 = vmatpush1.bf16.msra.mxu0 %v414
      %454 = vmatprep.subr.bf16.mxu0 0
      %455 = vmatpush1.bf16.msra.mxu0 %v415
      %456 = vmatprep.subr.bf16.mxu0 0
      %457 = vmatpush1.bf16.msra.mxu0 %v416
      %458 = vmatprep.subr.bf16.mxu0 0
      %459 = vmatpush1.bf16.msra.mxu0 %v417
      %460 = vmatprep.subr.bf16.mxu0 0
      %461 = vmatpush1.bf16.msra.mxu0 %v418
      %462 = vmatprep.subr.bf16.mxu0 0
      %463 = vmatpush1.bf16.msra.mxu0 %v419
      %464 = vmatprep.subr.bf16.mxu0 0
      %465 = vmatpush1.bf16.msra.mxu0 %v420
      %466 = vmatprep.subr.bf16.mxu0 0
      %467 = vmatpush1.bf16.msra.mxu0 %v421
      %468 = vmatprep.subr.bf16.mxu0 0
      %469 = vmatpush1.bf16.msra.mxu0 %v378
      %470 = vmatprep.subr.bf16.mxu0 0
      %471 = vmatpush1.bf16.msra.mxu0 %v380
      %472 = vmatprep.subr.bf16.mxu0 0
      %473 = vmatpush1.bf16.msra.mxu0 %v422
      %474 = vmatprep.subr.bf16.mxu0 0
      %475 = vmatpush1.bf16.msra.mxu0 %v423
      %476 = vmatprep.subr.bf16.mxu0 0
      %477 = vmatpush1.bf16.msra.mxu0 %v424
      %478 = vmatprep.subr.bf16.mxu0 0
      %479 = vmatpush1.bf16.msra.mxu0 %v425
      %480 = vmatprep.subr.bf16.mxu0 0
      %481 = vmatpush1.bf16.msra.mxu0 %v426
      %482 = vmatprep.subr.bf16.mxu0 0
      %483 = vmatpush1.bf16.msra.mxu0 %v427
      %484 = vmatprep.mubr.bf16.mxu0 %v341
      %485 = vmatmul.mubr.bf16.gmra.mrb[0].mxu0 %v340
      %v486 = vpop.f32.mrb[0].mxu0
      %v487 = vadd.f32 %v323, %v486
      %v488 = vpop.f32.mrb[0].mxu0
      %v489 = vpop.f32.mrb[0].mxu0
      %v490 = vadd.f32 %v328, %v489
      %v491 = vpop.f32.mrb[0].mxu0
      %492 = vdwg.mxu0
      %493 = vmatprep.subr.bf16.mxu0 0
      %494 = vmatpush1.bf16.msra.mxu0 %v428
      %495 = vmatprep.subr.bf16.mxu0 0
      %496 = vmatpush1.bf16.msra.mxu0 %v429
      %497 = vmatprep.subr.bf16.mxu0 0
      %498 = vmatpush1.bf16.msra.mxu0 0
      %499 = vmatprep.subr.bf16.mxu0 0
      %500 = vmatpush1.bf16.msra.mxu0 0
      %501 = vmatprep.subr.bf16.mxu0 0
      %502 = vmatpush1.bf16.msra.mxu0 0
      %503 = vmatprep.subr.bf16.mxu0 0
      %504 = vmatpush1.bf16.msra.mxu0 0
      %505 = vmatprep.subr.bf16.mxu0 0
      %506 = vmatpush1.bf16.msra.mxu0 0
      %507 = vmatprep.subr.bf16.mxu0 0
      %508 = vmatpush1.bf16.msra.mxu0 0
      %509 = vmatprep.subr.bf16.mxu0 0
      %510 = vmatpush1.bf16.msra.mxu0 0
      %511 = vmatprep.subr.bf16.mxu0 0
      %512 = vmatpush1.bf16.msra.mxu0 0
      %513 = vmatprep.subr.bf16.mxu0 0
      %514 = vmatpush1.bf16.msra.mxu0 0
      %515 = vmatprep.subr.bf16.mxu0 0
      %516 = vmatpush1.bf16.msra.mxu0 0
      %517 = vmatprep.subr.bf16.mxu0 0
      %518 = vmatpush1.bf16.msra.mxu0 0
      %519 = vmatprep.subr.bf16.mxu0 0
      %520 = vmatpush1.bf16.msra.mxu0 0
      %521 = vmatprep.subr.bf16.mxu0 0
      %522 = vmatpush1.bf16.msra.mxu0 0
      %523 = vmatprep.subr.bf16.mxu0 0
      %524 = vmatpush1.bf16.msra.mxu0 0
      %525 = vmatprep.mubr.bf16.mxu0 0
      %526 = vmatmul.mubr.bf16.gmra.mrb[0].mxu0 %v450
      %v527 = vpop.f32.mrb[0].mxu0
      %v528 = vadd.f32 %v487, %v527
      %v529 = vpop.f32.mrb[0].mxu0
      %v530 = vpop.f32.mrb[0].mxu0
      %v531 = vadd.f32 %v490, %v530
      %v532 = vpop.f32.mrb[0].mxu0
      %533 = vdwg.mxu0
      %vm534 = vcmp.gt.f32.partialorder %v528, 0.0
      %vm535 = vcmp.gt.f32.partialorder %v531, 0.0
      %v536 = vmul.f32 %v528, 0.01
      %v537 = vmul.f32 %v531, 0.01
      %v538 = vsel %vm534, %v528, %v536
      %v539 = vsel %vm535, %v531, %v537
      %v540 = vld [vmem:[%s3] sm:$0x1]
      %v542 = vlaneseq
      %v543 = vshrl.u32 %v542, 7
      %v544 = vsub.s32 0, %v543
      %v545 = vrot.slane %v540, %v544
      %v547 = vmul.f32 %v538, %v545
      %v548 = vmul.f32 %v539, %v545
      %549 = vst [vmem:[%s197] sm:$0xff] 0
      %550 = vst [vmem:[%s197 + $0x8] sm:$0xf] 0
      %551 = vst [vmem:[%s197 + $0xc] sm:$0xff] 0
      %552 = vst [vmem:[%s197 + $0x14] sm:$0xf] 0
      %v553 = vpack.c.bf16 %v548, %v547
      %v555 = vunpack.c.l.b16 %v553
      %v556 = vunpack.c.h.b16 %v553
      %v557 = vpack.c.b16 %v555, %v555
      %v558 = vpack.c.b16 %v556, %v556
      %561 = vst [vmem:[%s197 + $0x4] sm:$0xf] %v557
      %562 = vst [vmem:[%s197 + $0x10] sm:$0xf] %v558
      %p563 = scmp.lt.s32.totalorder %s15, 1
      %s564 = scalar_select %p563, %s15, 1
      %s565 = smul.addr %s564, 6
      %s566 = smul.addr %s565, 4
      %s567 = scalar_lea.vmem %s4, %s566
      // Predicated region
      $region37: #{_lambda_.10} parent=35 // pred_check
        %p568 = pneg %p122
      $region38: #{_lambda_.10} parent=35 // pred_check_branch
        %570 = sbr.rel (%p568) target = $region40
      $region39: #{_lambda_.10} parent=35 // pred_region
        _
      $region40: #{_lambda_.10} parent=35 // pred_fallthru
        _
    $region36: #{_lambda_.10} parent=5 // pred_fallthru
      _
    %p571 = scmp.le.s32.totalorder 2, %s10
    // Predicated region
    $region41: #{_lambda_.10} parent=5 // pred_check
      %p572 = pneg %p571
    $region42: #{_lambda_.10} parent=5 // pred_check_branch
      %574 = sbr.rel (%p572) target = $region44
    $region43: #{_lambda_.10} parent=5 // pred_region
      %s575 = ssub.s32 %s10, 2
      // Predicated region
      $region45: #{_lambda_.10} parent=43 // pred_check
        %p576 = pneg %p128
      $region46: #{_lambda_.10} parent=43 // pred_check_branch
        %578 = sbr.rel (%p576) target = $region48
      $region47: #{_lambda_.10} parent=43 // pred_region
        %p579 = scmp.lt.s32.totalorder %s16, 1
        %s580 = scalar_select %p579, %s16, 1
        %s581 = smul.addr %s580, 6
        %s582 = smul.addr %s581, 4
        %s583 = scalar_lea.vmem %s4, %s582
      $region48: #{_lambda_.10} parent=43 // pred_fallthru
        _
    $region44: #{_lambda_.10} parent=5 // pred_fallthru
      _
  $region6: #{_lambda_.10} parent=0 // loop_footer
    %s14 = sadd.s32 1, %s10
  $region7: #{_lambda_.10} parent=0 // loop_footer_branch
    %9 = sbr.rel target = $region3
  $region8: #{_lambda_.10} parent=0 // loop_exit
    _

// kernel: _lambda_.11
$region0: #{_lambda_.11}
  #allocation0 [shape = 'u32[]', space=smem, size = 0x4, offset = 0x4, fixed_abs, tag = 'smem constant byte address 0x4 - core index']
  #allocation1 [shape = 'u32[144,128]{1,0:T(1,128)}', space=vmem, size = 0x12000, scoped, tag = 'internal scratch']
  %s0 = inlined_call_operand.vmem [shape: bf16[2,32,640], index: 0, kind: input, shape index: {}]
  %s1 = inlined_call_operand.vmem [shape: bf16[16,288], index: 1, kind: input, shape index: {}]
  %s2 = inlined_call_operand.vmem [shape: f32[16,1], index: 2, kind: input, shape index: {}]
  %s3 = inlined_call_operand.vmem [shape: f32[1,384], index: 3, kind: input, shape index: {}]
  %s4 = inlined_call_operand.vmem [shape: bf16[2,16,640], index: 4, kind: input, shape index: {}]
  %s5 = inlined_call_operand.vmem [shape: f32[2,16,640], index: 5, kind: output, shape index: {}]
  %s6 = sld [smem:[#allocation0]]
  $region53: #{_lambda_.11} parent=0
    _
  %s8 = ssub.s32 1, %s6
  %s9 = scalar_select 0, %s8, %s6
  loop: start=0, step=1, limit=4
  $region2: #{_lambda_.11} parent=0 // loop_pre_header
    _
  $region3: #{_lambda_.11} parent=0 // loop_header
    %s11 = sphi 0, %s15
    %p12 = scmp.ge.s32.totalorder %s11, 4
    %s21 = sphi 0, %s23
    %s24 = sphi 0, %s21
    %s25 = sphi 0, %s24
    %s41 = sphi 0, %s25
    %s45 = sphi 0, %s45
    %s47 = sphi 0, %s45
    %s48 = sphi 0, %s47
    %s62 = sphi 0, %s48
    %s66 = sphi 0, %s66
    %s68 = sphi 0, %s66
    %s69 = sphi 0, %s68
    %s83 = sphi 0, %s69
    %s87 = sphi 0, %s87
    %s89 = sphi 0, %s87
    %s90 = sphi 0, %s89
    %s104 = sphi 0, %s90
    %s110 = sphi 0, %s112
    %s113 = sphi 0, %s110
    %s114 = sphi 0, %s113
    %s130 = sphi 0, %s114
    %s136 = sphi 0, %s138
    %s139 = sphi 0, %s136
    %s140 = sphi 0, %s139
    %s156 = sphi 0, %s140
  $region4: #{_lambda_.11} parent=0 // loop_header_branch
    %14 = sbr.rel (%p12) target = $region8
  $region5: #{_lambda_.11} parent=0 // loop_body
    %s16 = ssub.s32 %s11, 1
    %s17 = ssub.s32 %s11, 2
    %s18 = sadd.s32 %s11, 1
    %s19 = ssub.s32 %s11, %s18
    %p20 = scmp.eq.s32.totalorder %s19, 0
    %s22 = sadd.s32 %s21, 1
    %s23 = scalar_select %p20, %s21, %s22
    %p26 = pneg %p20
    %p27 = scmp.eq.s32.totalorder %s11, 1
    %p28 = por %p26, %p27
    %p29 = scmp.ne.s32.totalorder %s21, %s24
    %p30 = scmp.eq.s32.totalorder %s11, 0
    %p31 = por %p29, %p30
    %p32 = scmp.ne.s32.totalorder %s21, %s24
    %p33 = scmp.eq.s32.totalorder %s16, 1
    %p34 = por %p32, %p33
    %p35 = scmp.ne.s32.totalorder %s24, %s25
    %p36 = scmp.eq.s32.totalorder %s16, 0
    %p37 = por %p35, %p36
    %p38 = scmp.ne.s32.totalorder %s24, %s25
    %p39 = scmp.eq.s32.totalorder %s17, 1
    %p40 = por %p38, %p39
    %p42 = scmp.ne.s32.totalorder %s25, %s41
    %p43 = scmp.eq.s32.totalorder %s17, 0
    %p44 = por %p42, %p43
    %s46 = sadd.s32 %s45, 1
    %p49 = scmp.eq.s32.totalorder %s11, 1
    %p50 = scmp.ne.s32.totalorder %s45, %s47
    %p51 = scmp.eq.s32.totalorder %s11, 0
    %p52 = por %p50, %p51
    %p53 = scmp.ne.s32.totalorder %s45, %s47
    %p54 = scmp.eq.s32.totalorder %s16, 1
    %p55 = por %p53, %p54
    %p56 = scmp.ne.s32.totalorder %s47, %s48
    %p57 = scmp.eq.s32.totalorder %s16, 0
    %p58 = por %p56, %p57
    %p59 = scmp.ne.s32.totalorder %s47, %s48
    %p60 = scmp.eq.s32.totalorder %s17, 1
    %p61 = por %p59, %p60
    %p63 = scmp.ne.s32.totalorder %s48, %s62
    %p64 = scmp.eq.s32.totalorder %s17, 0
    %p65 = por %p63, %p64
    %s67 = sadd.s32 %s66, 1
    %p70 = scmp.eq.s32.totalorder %s11, 1
    %p71 = scmp.ne.s32.totalorder %s66, %s68
    %p72 = scmp.eq.s32.totalorder %s11, 0
    %p73 = por %p71, %p72
    %p74 = scmp.ne.s32.totalorder %s66, %s68
    %p75 = scmp.eq.s32.totalorder %s16, 1
    %p76 = por %p74, %p75
    %p77 = scmp.ne.s32.totalorder %s68, %s69
    %p78 = scmp.eq.s32.totalorder %s16, 0
    %p79 = por %p77, %p78
    %p80 = scmp.ne.s32.totalorder %s68, %s69
    %p81 = scmp.eq.s32.totalorder %s17, 1
    %p82 = por %p80, %p81
    %p84 = scmp.ne.s32.totalorder %s69, %s83
    %p85 = scmp.eq.s32.totalorder %s17, 0
    %p86 = por %p84, %p85
    %s88 = sadd.s32 %s87, 1
    %p91 = scmp.eq.s32.totalorder %s11, 1
    %p92 = scmp.ne.s32.totalorder %s87, %s89
    %p93 = scmp.eq.s32.totalorder %s11, 0
    %p94 = por %p92, %p93
    %p95 = scmp.ne.s32.totalorder %s87, %s89
    %p96 = scmp.eq.s32.totalorder %s16, 1
    %p97 = por %p95, %p96
    %p98 = scmp.ne.s32.totalorder %s89, %s90
    %p99 = scmp.eq.s32.totalorder %s16, 0
    %p100 = por %p98, %p99
    %p101 = scmp.ne.s32.totalorder %s89, %s90
    %p102 = scmp.eq.s32.totalorder %s17, 1
    %p103 = por %p101, %p102
    %p105 = scmp.ne.s32.totalorder %s90, %s104
    %p106 = scmp.eq.s32.totalorder %s17, 0
    %p107 = por %p105, %p106
    %s108 = ssub.s32 %s11, %s18
    %p109 = scmp.eq.s32.totalorder %s108, 0
    %s111 = sadd.s32 %s110, 1
    %s112 = scalar_select %p109, %s110, %s111
    %p115 = pneg %p109
    %p116 = scmp.eq.s32.totalorder %s11, 1
    %p117 = por %p115, %p116
    %p118 = scmp.ne.s32.totalorder %s110, %s113
    %p119 = scmp.eq.s32.totalorder %s11, 0
    %p120 = por %p118, %p119
    %p121 = scmp.ne.s32.totalorder %s110, %s113
    %p122 = scmp.eq.s32.totalorder %s16, 1
    %p123 = por %p121, %p122
    %p124 = scmp.ne.s32.totalorder %s113, %s114
    %p125 = scmp.eq.s32.totalorder %s16, 0
    %p126 = por %p124, %p125
    %p127 = scmp.ne.s32.totalorder %s113, %s114
    %p128 = scmp.eq.s32.totalorder %s17, 1
    %p129 = por %p127, %p128
    %p131 = scmp.ne.s32.totalorder %s114, %s130
    %p132 = scmp.eq.s32.totalorder %s17, 0
    %p133 = por %p131, %p132
    %s134 = ssub.s32 %s11, %s18
    %p135 = scmp.eq.s32.totalorder %s134, 0
    %s137 = sadd.s32 %s136, 1
    %s138 = scalar_select %p135, %s136, %s137
    %p141 = pneg %p135
    %p142 = scmp.eq.s32.totalorder %s11, 1
    %p143 = por %p141, %p142
    %p144 = scmp.ne.s32.totalorder %s136, %s139
    %p145 = scmp.eq.s32.totalorder %s11, 0
    %p146 = por %p144, %p145
    %p147 = scmp.ne.s32.totalorder %s136, %s139
    %p148 = scmp.eq.s32.totalorder %s16, 1
    %p149 = por %p147, %p148
    %p150 = scmp.ne.s32.totalorder %s139, %s140
    %p151 = scmp.eq.s32.totalorder %s16, 0
    %p152 = por %p150, %p151
    %p153 = scmp.ne.s32.totalorder %s139, %s140
    %p154 = scmp.eq.s32.totalorder %s17, 1
    %p155 = por %p153, %p154
    %p157 = scmp.ne.s32.totalorder %s140, %s156
    %p158 = scmp.eq.s32.totalorder %s17, 0
    %p159 = por %p157, %p158
    %p160 = scmp.le.s32.totalorder 1, %s11
    %p161 = scmp.lt.s32.totalorder %s11, 3
    %p162 = pnand %p160, %p161
    %p163 = pneg %p162
    // Predicated region
    $region9: #{_lambda_.11} parent=5 // pred_check
      _
    $region10: #{_lambda_.11} parent=5 // pred_check_branch
      %165 = sbr.rel (%p162) target = $region12
    $region11: #{_lambda_.11} parent=5 // pred_region
      %s166 = ssub.s32 %s11, 1
      // Predicated region
      $region13: #{_lambda_.11} parent=11 // pred_check
        %p167 = pneg %p58
      $region14: #{_lambda_.11} parent=11 // pred_check_branch
        %169 = sbr.rel (%p167) target = $region16
      $region15: #{_lambda_.11} parent=11 // pred_region
        _
      $region16: #{_lambda_.11} parent=11 // pred_fallthru
        _
      // Predicated region
      $region17: #{_lambda_.11} parent=11 // pred_check
        %p170 = pneg %p79
      $region18: #{_lambda_.11} parent=11 // pred_check_branch
        %172 = sbr.rel (%p170) target = $region20
      $region19: #{_lambda_.11} parent=11 // pred_region
        _
      $region20: #{_lambda_.11} parent=11 // pred_fallthru
        _
      // Predicated region
      $region21: #{_lambda_.11} parent=11 // pred_check
        %p173 = pneg %p100
      $region22: #{_lambda_.11} parent=11 // pred_check_branch
        %175 = sbr.rel (%p173) target = $region24
      $region23: #{_lambda_.11} parent=11 // pred_region
        _
      $region24: #{_lambda_.11} parent=11 // pred_fallthru
        _
    $region12: #{_lambda_.11} parent=5 // pred_fallthru
      _
    %p176 = scmp.lt.s32.totalorder %s11, 2
    // Predicated region
    $region25: #{_lambda_.11} parent=5 // pred_check
      %p177 = pneg %p176
    $region26: #{_lambda_.11} parent=5 // pred_check_branch
      %179 = sbr.rel (%p177) target = $region28
    $region27: #{_lambda_.11} parent=5 // pred_region
      // Predicated region
      $region29: #{_lambda_.11} parent=27 // pred_check
        %p180 = pneg %p31
      $region30: #{_lambda_.11} parent=27 // pred_check_branch
        %182 = sbr.rel (%p180) target = $region32
      $region31: #{_lambda_.11} parent=27 // pred_region
        %p183 = scmp.lt.s32.totalorder %s11, 1
        %s184 = scalar_select %p183, %s11, 1
        %s185 = smul.addr %s184, 20
        %s186 = smul.addr %s185, 4
        %s187 = scalar_lea.vmem %s0, %s186
      $region32: #{_lambda_.11} parent=27 // pred_fallthru
        _
      // Predicated region
      $region33: #{_lambda_.11} parent=27 // pred_check
        %p188 = pneg %p120
      $region34: #{_lambda_.11} parent=27 // pred_check_branch
        %190 = sbr.rel (%p188) target = $region36
      $region35: #{_lambda_.11} parent=27 // pred_region
        %p191 = scmp.lt.s32.totalorder %s11, 1
        %s192 = scalar_select %p191, %s11, 1
        %s193 = smul.addr %s192, 10
        %s194 = smul.addr %s193, 4
        %s195 = scalar_lea.vmem %s4, %s194
      $region36: #{_lambda_.11} parent=27 // pred_fallthru
        _
    $region28: #{_lambda_.11} parent=5 // pred_fallthru
      _
    %p196 = scmp.le.s32.totalorder 1, %s11
    %p197 = scmp.lt.s32.totalorder %s11, 3
    %p198 = pnand %p196, %p197
    %p199 = pneg %p198
    // Predicated region
    $region37: #{_lambda_.11} parent=5 // pred_check
      _
    $region38: #{_lambda_.11} parent=5 // pred_check_branch
      %201 = sbr.rel (%p198) target = $region40
    $region39: #{_lambda_.11} parent=5 // pred_region
      %s202 = ssub.s32 %s11, 1
      %p203 = scmp.lt.s32.totalorder %s16, 1
      %s204 = scalar_select %p203, %s16, 1
      %s205 = smul.addr %s204, 20
      %s206 = smul.addr %s205, 4
      %s207 = scalar_lea.vmem %s0, %s206
      %p208 = pneg %p37
      %p209 = pneg %p34
      %p210 = pneg %p58
      %p211 = pneg %p55
      %p212 = pneg %p79
      %p213 = pneg %p76
      %p214 = pneg %p100
      %p215 = pneg %p97
      %p216 = scmp.lt.s32.totalorder %s16, 1
      %s217 = scalar_select %p216, %s16, 1
      %s218 = smul.addr %s217, 10
      %s219 = smul.addr %s218, 4
      %s220 = scalar_lea.vmem %s4, %s219
      %p221 = pneg %p126
      %p222 = pneg %p123
      %p223 = pneg %p152
      %p224 = pneg %p149
      %p225 = scmp.lt.s32.totalorder %s16, 1
      %s226 = scalar_select %p225, %s16, 1
      %s227 = smul.addr %s226, 10
      %s228 = smul.addr %s227, 8
      %s229 = scalar_lea.vmem %s5, %s228
      %p230 = scmp.lt.s32.totalorder %s16, 1
      %s231 = scalar_select %p230, %s16, 1
      %s232 = smul.addr %s231, 20
      %s233 = smul.addr %s232, 4
      %s234 = scalar_lea.vmem %s0, %s233
      %p235 = scmp.lt.s32.totalorder %s16, 1
      %s236 = scalar_select %p235, %s16, 1
      %s237 = smul.addr %s236, 10
      %s238 = smul.addr %s237, 4
      %s239 = scalar_lea.vmem %s4, %s238
      %p240 = scmp.lt.s32.totalorder %s16, 1
      %s241 = scalar_select %p240, %s16, 1
      %s242 = smul.addr %s241, 10
      %s243 = smul.addr %s242, 8
      %s244 = scalar_lea.vmem %s5, %s243
      %v246 = vld [vmem:[%s234] sm:$0xff]
      %v247 = vld [vmem:[%s234 + $0x8] sm:$0xff]
      %v248 = vld [vmem:[%s234 + $0x10] sm:$0xf]
      %v249 = vld [vmem:[%s234 + $0x14] sm:$0xff]
      %v250 = vld [vmem:[%s234 + $0x1c] sm:$0xff]
      %v251 = vld [vmem:[%s234 + $0x24] sm:$0xf]
      %v252 = vld [vmem:[%s234 + $0x28] sm:$0xff]
      %v253 = vld [vmem:[%s234 + $0x30] sm:$0xff]
      %v254 = vld [vmem:[%s234 + $0x38] sm:$0xf]
      %v255 = vld [vmem:[%s234 + $0x3c] sm:$0xff]
      %v256 = vld [vmem:[%s234 + $0x44] sm:$0xff]
      %v257 = vld [vmem:[%s234 + $0x4c] sm:$0xf]
      %v266 = vunpack.c.l.b16 %v246
      %v267 = vunpack.c.h.b16 %v246
      %v268 = vunpack.c.l.b16 %v247
      %v269 = vunpack.c.h.b16 %v247
      %v270 = vunpack.c.l.b16 %v249
      %v271 = vunpack.c.h.b16 %v249
      %v272 = vunpack.c.l.b16 %v250
      %v273 = vunpack.c.h.b16 %v250
      %v274 = vunpack.c.l.b16 %v252
      %v275 = vunpack.c.h.b16 %v252
      %v276 = vunpack.c.l.b16 %v253
      %v277 = vunpack.c.h.b16 %v253
      %v278 = vunpack.c.l.b16 %v255
      %v279 = vunpack.c.h.b16 %v255
      %v280 = vunpack.c.l.b16 %v256
      %v281 = vunpack.c.h.b16 %v256
      %v282 = vpack.c.b16 %v270, %v266
      %v283 = vpack.c.b16 %v271, %v267
      %v284 = vpack.c.b16 %v272, %v268
      %v285 = vpack.c.b16 %v273, %v269
      %v286 = vpack.c.b16 %v278, %v274
      %v287 = vpack.c.b16 %v279, %v275
      %v288 = vpack.c.b16 %v280, %v276
      %v289 = vpack.c.b16 %v281, %v277
      %290 = vrot.lane.b32.xlu0 %v282, 127
      %v291 = vpop.permute.xlu0 %290
      %292 = vrot.lane.b32.xlu0 %v283, 127
      %v293 = vpop.permute.xlu0 %292
      %294 = vrot.lane.b32.xlu0 %v284, 127
      %v295 = vpop.permute.xlu0 %294
      %296 = vrot.lane.b32.xlu0 %v285, 127
      %v297 = vpop.permute.xlu0 %296
      %298 = vrot.lane.b32.xlu0 %v286, 127
      %v299 = vpop.permute.xlu0 %298
      %300 = vrot.lane.b32.xlu0 %v287, 127
      %v301 = vpop.permute.xlu0 %300
      %302 = vrot.lane.b32.xlu0 %v288, 127
      %v303 = vpop.permute.xlu0 %302
      %304 = vrot.lane.b32.xlu0 %v289, 127
      %v305 = vpop.permute.xlu0 %304
      %vm306 = vcmask 1039360
      %v307 = vsel %vm306, %v291, %v293
      %v308 = vsel %vm306, %v293, %v295
      %v309 = vsel %vm306, %v295, %v297
      %v310 = vsel %vm306, %v299, %v301
      %v311 = vsel %vm306, %v301, %v303
      %v312 = vsel %vm306, %v303, %v305
      %313 = vrot.lane.b32.xlu0 %v282, 126
      %v314 = vpop.permute.xlu0 %313
      %315 = vrot.lane.b32.xlu0 %v283, 126
      %v316 = vpop.permute.xlu0 %315
      %317 = vrot.lane.b32.xlu0 %v284, 126
      %v318 = vpop.permute.xlu0 %317
      %319 = vrot.lane.b32.xlu0 %v285, 126
      %v320 = vpop.permute.xlu0 %319
      %321 = vrot.lane.b32.xlu0 %v286, 126
      %v322 = vpop.permute.xlu0 %321
      %323 = vrot.lane.b32.xlu0 %v287, 126
      %v324 = vpop.permute.xlu0 %323
      %325 = vrot.lane.b32.xlu0 %v288, 126
      %v326 = vpop.permute.xlu0 %325
      %327 = vrot.lane.b32.xlu0 %v289, 126
      %v328 = vpop.permute.xlu0 %327
      %vm329 = vcmask 1031168
      %v330 = vsel %vm329, %v314, %v316
      %v331 = vsel %vm329, %v316, %v318
      %v332 = vsel %vm329, %v318, %v320
      %v333 = vsel %vm329, %v322, %v324
      %v334 = vsel %vm329, %v324, %v326
      %v335 = vsel %vm329, %v326, %v328
      %336 = vrot.lane.b32.xlu0 %v282, 104
      %v337 = vpop.permute.xlu0 %336
      %338 = vrot.lane.b32.xlu0 %v283, 104
      %v339 = vpop.permute.xlu0 %338
      %340 = vrot.lane.b32.xlu0 %v284, 104
      %v341 = vpop.permute.xlu0 %340
      %342 = vrot.lane.b32.xlu0 %v285, 104
      %v343 = vpop.permute.xlu0 %342
      %344 = vrot.lane.b32.xlu0 %v286, 104
      %v345 = vpop.permute.xlu0 %344
      %346 = vrot.lane.b32.xlu0 %v287, 104
      %v347 = vpop.permute.xlu0 %346
      %348 = vrot.lane.b32.xlu0 %v288, 104
      %v349 = vpop.permute.xlu0 %348
      %350 = vrot.lane.b32.xlu0 %v289, 104
      %v351 = vpop.permute.xlu0 %350
      %vm352 = vcmask 850944
      %v353 = vsel %vm352, %v337, %v339
      %v354 = vsel %vm352, %v339, %v341
      %v355 = vsel %vm352, %v341, %v343
      %v356 = vsel %vm352, %v345, %v347
      %v357 = vsel %vm352, %v347, %v349
      %v358 = vsel %vm352, %v349, %v351
      %359 = vrot.lane.b32.xlu0 %v283, 103
      %v360 = vpop.permute.xlu0 %359
      %361 = vrot.lane.b32.xlu0 %v284, 103
      %v362 = vpop.permute.xlu0 %361
      %363 = vrot.lane.b32.xlu0 %v285, 103
      %v364 = vpop.permute.xlu0 %363
      %365 = vrot.lane.b32.xlu0 %v287, 103
      %v366 = vpop.permute.xlu0 %365
      %367 = vrot.lane.b32.xlu0 %v288, 103
      %v368 = vpop.permute.xlu0 %367
      %369 = vrot.lane.b32.xlu0 %v289, 103
      %v370 = vpop.permute.xlu0 %369
      %vm371 = vcmask 842752
      %v372 = vsel %vm371, %v360, %v362
      %v373 = vsel %vm371, %v362, %v364
      %v374 = vsel %vm371, %v366, %v368
      %v375 = vsel %vm371, %v368, %v370
      %v380 = vunpack.c.l.b16 %v248
      %v381 = vunpack.c.l.b16 %v251
      %v382 = vunpack.c.l.b16 %v254
      %v383 = vunpack.c.l.b16 %v257
      %v384 = vpack.c.b16 %v381, %v380
      %v385 = vpack.c.b16 %v383, %v382
      %386 = vrot.lane.b32.xlu0 %v283, 102
      %v387 = vpop.permute.xlu0 %386
      %388 = vrot.lane.b32.xlu0 %v284, 102
      %v389 = vpop.permute.xlu0 %388
      %390 = vrot.lane.b32.xlu0 %v285, 102
      %v391 = vpop.permute.xlu0 %390
      %392 = vrot.lane.b32.xlu0 %v384, 102
      %v393 = vpop.permute.xlu0 %392
      %394 = vrot.lane.b32.xlu0 %v287, 102
      %v395 = vpop.permute.xlu0 %394
      %396 = vrot.lane.b32.xlu0 %v288, 102
      %v397 = vpop.permute.xlu0 %396
      %398 = vrot.lane.b32.xlu0 %v289, 102
      %v399 = vpop.permute.xlu0 %398
      %400 = vrot.lane.b32.xlu0 %v385, 102
      %v401 = vpop.permute.xlu0 %400
      %vm402 = vcmask 834560
      %v403 = vsel %vm402, %v387, %v389
      %v404 = vsel %vm402, %v389, %v391
      %v405 = vsel %vm402, %v391, %v393
      %v406 = vsel %vm402, %v395, %v397
      %v407 = vsel %vm402, %v397, %v399
      %v408 = vsel %vm402, %v399, %v401
      %409 = vrot.lane.b32.xlu0 %v283, 80
      %v410 = vpop.permute.xlu0 %409
      %411 = vrot.lane.b32.xlu0 %v284, 80
      %v412 = vpop.permute.xlu0 %411
      %413 = vrot.lane.b32.xlu0 %v285, 80
      %v414 = vpop.permute.xlu0 %413
      %415 = vrot.lane.b32.xlu0 %v384, 80
      %v416 = vpop.permute.xlu0 %415
      %417 = vrot.lane.b32.xlu0 %v287, 80
      %v418 = vpop.permute.xlu0 %417
      %419 = vrot.lane.b32.xlu0 %v288, 80
      %v420 = vpop.permute.xlu0 %419
      %421 = vrot.lane.b32.xlu0 %v289, 80
      %v422 = vpop.permute.xlu0 %421
      %423 = vrot.lane.b32.xlu0 %v385, 80
      %v424 = vpop.permute.xlu0 %423
      %vm425 = vcmask 654336
      %v426 = vsel %vm425, %v410, %v412
      %v427 = vsel %vm425, %v412, %v414
      %v428 = vsel %vm425, %v414, %v416
      %v429 = vsel %vm425, %v418, %v420
      %v430 = vsel %vm425, %v420, %v422
      %v431 = vsel %vm425, %v422, %v424
      %432 = vrot.lane.b32.xlu0 %v283, 79
      %v433 = vpop.permute.xlu0 %432
      %434 = vrot.lane.b32.xlu0 %v284, 79
      %v435 = vpop.permute.xlu0 %434
      %436 = vrot.lane.b32.xlu0 %v285, 79
      %v437 = vpop.permute.xlu0 %436
      %438 = vrot.lane.b32.xlu0 %v384, 79
      %v439 = vpop.permute.xlu0 %438
      %440 = vrot.lane.b32.xlu0 %v287, 79
      %v441 = vpop.permute.xlu0 %440
      %442 = vrot.lane.b32.xlu0 %v288, 79
      %v443 = vpop.permute.xlu0 %442
      %444 = vrot.lane.b32.xlu0 %v289, 79
      %v445 = vpop.permute.xlu0 %444
      %446 = vrot.lane.b32.xlu0 %v385, 79
      %v447 = vpop.permute.xlu0 %446
      %vm448 = vcmask 646144
      %v449 = vsel %vm448, %v433, %v435
      %v450 = vsel %vm448, %v435, %v437
      %v451 = vsel %vm448, %v437, %v439
      %v452 = vsel %vm448, %v441, %v443
      %v453 = vsel %vm448, %v443, %v445
      %v454 = vsel %vm448, %v445, %v447
      %455 = vrot.lane.b32.xlu0 %v283, 78
      %v456 = vpop.permute.xlu0 %455
      %457 = vrot.lane.b32.xlu0 %v284, 78
      %v458 = vpop.permute.xlu0 %457
      %459 = vrot.lane.b32.xlu0 %v285, 78
      %v460 = vpop.permute.xlu0 %459
      %461 = vrot.lane.b32.xlu0 %v384, 78
      %v462 = vpop.permute.xlu0 %461
      %463 = vrot.lane.b32.xlu0 %v287, 78
      %v464 = vpop.permute.xlu0 %463
      %465 = vrot.lane.b32.xlu0 %v288, 78
      %v466 = vpop.permute.xlu0 %465
      %467 = vrot.lane.b32.xlu0 %v289, 78
      %v468 = vpop.permute.xlu0 %467
      %469 = vrot.lane.b32.xlu0 %v385, 78
      %v470 = vpop.permute.xlu0 %469
      %vm471 = vcmask 637952
      %v472 = vsel %vm471, %v456, %v458
      %v473 = vsel %vm471, %v458, %v460
      %v474 = vsel %vm471, %v460, %v462
      %v475 = vsel %vm471, %v464, %v466
      %v476 = vsel %vm471, %v466, %v468
      %v477 = vsel %vm471, %v468, %v470
      %v478 = vld [vmem:[%s1] sm:$0xff]
      %v479 = vld [vmem:[%s1 + $0x8] sm:$0xf]
      %v480 = vld [vmem:[%s1 + $0xc] sm:$0xff]
      %v481 = vld [vmem:[%s1 + $0x14] sm:$0xf]
      %v482 = vld [vmem:[%s2] sm:$0xff]
      %v483 = vld [vmem:[%s2 + $0x8] sm:$0xff]
      %485 = vset.pattern.permute.xlu0 0
      %486 = vperm.xlu0 %485, %v482
      %v487 = vpop.permute.xlu0 %486
      %490 = vset.pattern.permute.xlu0 0
      %491 = vperm.xlu0 %490, %v483
      %v492 = vpop.permute.xlu0 %491
      %v498 = vunpack.c.l.b16 %v478
      %v499 = vunpack.c.h.b16 %v478
      %v500 = vunpack.c.l.b16 %v479
      %v501 = vunpack.c.l.b16 %v480
      %v502 = vunpack.c.h.b16 %v480
      %v503 = vunpack.c.l.b16 %v481
      %v504 = vpack.c.b16 %v501, %v498
      %v505 = vpack.c.b16 %v502, %v499
      %v506 = vpack.c.b16 %v503, %v500
      %509 = vrot.lane.b32.xlu0 %v282, 25
      %v510 = vpop.permute.xlu0 %509
      %511 = vrot.lane.b32.xlu0 %v283, 25
      %v512 = vpop.permute.xlu0 %511
      %513 = vrot.lane.b32.xlu0 %v284, 25
      %v514 = vpop.permute.xlu0 %513
      %515 = vrot.lane.b32.xlu0 %v285, 25
      %v516 = vpop.permute.xlu0 %515
      %517 = vrot.lane.b32.xlu0 %v286, 25
      %v518 = vpop.permute.xlu0 %517
      %519 = vrot.lane.b32.xlu0 %v287, 25
      %v520 = vpop.permute.xlu0 %519
      %521 = vrot.lane.b32.xlu0 %v288, 25
      %v522 = vpop.permute.xlu0 %521
      %523 = vrot.lane.b32.xlu0 %v289, 25
      %v524 = vpop.permute.xlu0 %523
      %525 = vrot.lane.b32.xlu0 %v307, 25
      %v526 = vpop.permute.xlu0 %525
      %527 = vrot.lane.b32.xlu0 %v308, 25
      %v528 = vpop.permute.xlu0 %527
      %529 = vrot.lane.b32.xlu0 %v309, 25
      %v530 = vpop.permute.xlu0 %529
      %531 = vrot.lane.b32.xlu0 %v297, 25
      %v532 = vpop.permute.xlu0 %531
      %533 = vrot.lane.b32.xlu0 %v310, 25
      %v534 = vpop.permute.xlu0 %533
      %535 = vrot.lane.b32.xlu0 %v311, 25
      %v536 = vpop.permute.xlu0 %535
      %537 = vrot.lane.b32.xlu0 %v312, 25
      %v538 = vpop.permute.xlu0 %537
      %539 = vrot.lane.b32.xlu0 %v305, 25
      %v540 = vpop.permute.xlu0 %539
      %541 = vrot.lane.b32.xlu0 %v330, 25
      %v542 = vpop.permute.xlu0 %541
      %543 = vrot.lane.b32.xlu0 %v331, 25
      %v544 = vpop.permute.xlu0 %543
      %545 = vrot.lane.b32.xlu0 %v332, 25
      %v546 = vpop.permute.xlu0 %545
      %547 = vrot.lane.b32.xlu0 %v320, 25
      %v548 = vpop.permute.xlu0 %547
      %549 = vrot.lane.b32.xlu0 %v333, 25
      %v550 = vpop.permute.xlu0 %549
      %551 = vrot.lane.b32.xlu0 %v334, 25
      %v552 = vpop.permute.xlu0 %551
      %553 = vrot.lane.b32.xlu0 %v335, 25
      %v554 = vpop.permute.xlu0 %553
      %555 = vrot.lane.b32.xlu0 %v328, 25
      %v556 = vpop.permute.xlu0 %555
      %557 = vrot.lane.b32.xlu0 %v353, 25
      %v558 = vpop.permute.xlu0 %557
      %559 = vrot.lane.b32.xlu0 %v354, 25
      %v560 = vpop.permute.xlu0 %559
      %561 = vrot.lane.b32.xlu0 %v355, 25
      %v562 = vpop.permute.xlu0 %561
      %563 = vrot.lane.b32.xlu0 %v343, 25
      %v564 = vpop.permute.xlu0 %563
      %565 = vrot.lane.b32.xlu0 %v356, 25
      %v566 = vpop.permute.xlu0 %565
      %567 = vrot.lane.b32.xlu0 %v357, 25
      %v568 = vpop.permute.xlu0 %567
      %569 = vrot.lane.b32.xlu0 %v358, 25
      %v570 = vpop.permute.xlu0 %569
      %571 = vrot.lane.b32.xlu0 %v351, 25
      %v572 = vpop.permute.xlu0 %571
      %573 = vrot.lane.b32.xlu0 %v360, 25
      %v574 = vpop.permute.xlu0 %573
      %575 = vrot.lane.b32.xlu0 %v372, 25
      %v576 = vpop.permute.xlu0 %575
      %577 = vrot.lane.b32.xlu0 %v373, 25
      %v578 = vpop.permute.xlu0 %577
      %579 = vrot.lane.b32.xlu0 %v364, 25
      %v580 = vpop.permute.xlu0 %579
      %581 = vrot.lane.b32.xlu0 %v366, 25
      %v582 = vpop.permute.xlu0 %581
      %583 = vrot.lane.b32.xlu0 %v374, 25
      %v584 = vpop.permute.xlu0 %583
      %585 = vrot.lane.b32.xlu0 %v375, 25
      %v586 = vpop.permute.xlu0 %585
      %587 = vrot.lane.b32.xlu0 %v370, 25
      %v588 = vpop.permute.xlu0 %587
      %589 = vrot.lane.b32.xlu0 %v387, 25
      %v590 = vpop.permute.xlu0 %589
      %591 = vrot.lane.b32.xlu0 %v403, 25
      %v592 = vpop.permute.xlu0 %591
      %593 = vrot.lane.b32.xlu0 %v404, 25
      %v594 = vpop.permute.xlu0 %593
      %595 = vrot.lane.b32.xlu0 %v405, 25
      %v596 = vpop.permute.xlu0 %595
      %597 = vrot.lane.b32.xlu0 %v395, 25
      %v598 = vpop.permute.xlu0 %597
      %599 = vrot.lane.b32.xlu0 %v406, 25
      %v600 = vpop.permute.xlu0 %599
      %601 = vrot.lane.b32.xlu0 %v407, 25
      %v602 = vpop.permute.xlu0 %601
      %603 = vrot.lane.b32.xlu0 %v408, 25
      %v604 = vpop.permute.xlu0 %603
      %605 = vrot.lane.b32.xlu0 %v410, 25
      %v606 = vpop.permute.xlu0 %605
      %607 = vrot.lane.b32.xlu0 %v426, 25
      %v608 = vpop.permute.xlu0 %607
      %609 = vrot.lane.b32.xlu0 %v427, 25
      %v610 = vpop.permute.xlu0 %609
      %611 = vrot.lane.b32.xlu0 %v428, 25
      %v612 = vpop.permute.xlu0 %611
      %613 = vrot.lane.b32.xlu0 %v418, 25
      %v614 = vpop.permute.xlu0 %613
      %615 = vrot.lane.b32.xlu0 %v429, 25
      %v616 = vpop.permute.xlu0 %615
      %617 = vrot.lane.b32.xlu0 %v430, 25
      %v618 = vpop.permute.xlu0 %617
      %619 = vrot.lane.b32.xlu0 %v431, 25
      %v620 = vpop.permute.xlu0 %619
      %621 = vrot.lane.b32.xlu0 %v433, 25
      %v622 = vpop.permute.xlu0 %621
      %623 = vrot.lane.b32.xlu0 %v449, 25
      %v624 = vpop.permute.xlu0 %623
      %625 = vrot.lane.b32.xlu0 %v450, 25
      %v626 = vpop.permute.xlu0 %625
      %627 = vrot.lane.b32.xlu0 %v451, 25
      %v628 = vpop.permute.xlu0 %627
      %629 = vrot.lane.b32.xlu0 %v441, 25
      %v630 = vpop.permute.xlu0 %629
      %631 = vrot.lane.b32.xlu0 %v452, 25
      %v632 = vpop.permute.xlu0 %631
      %633 = vrot.lane.b32.xlu0 %v453, 25
      %v634 = vpop.permute.xlu0 %633
      %635 = vrot.lane.b32.xlu0 %v454, 25
      %v636 = vpop.permute.xlu0 %635
      %637 = vrot.lane.b32.xlu0 %v456, 25
      %v638 = vpop.permute.xlu0 %637
      %639 = vrot.lane.b32.xlu0 %v472, 25
      %v640 = vpop.permute.xlu0 %639
      %641 = vrot.lane.b32.xlu0 %v473, 25
      %v642 = vpop.permute.xlu0 %641
      %643 = vrot.lane.b32.xlu0 %v474, 25
      %v644 = vpop.permute.xlu0 %643
      %645 = vrot.lane.b32.xlu0 %v464, 25
      %v646 = vpop.permute.xlu0 %645
      %647 = vrot.lane.b32.xlu0 %v475, 25
      %v648 = vpop.permute.xlu0 %647
      %649 = vrot.lane.b32.xlu0 %v476, 25
      %v650 = vpop.permute.xlu0 %649
      %651 = vrot.lane.b32.xlu0 %v477, 25
      %v652 = vpop.permute.xlu0 %651
      %vm653 = vcmask 203776
      %v654 = vsel %vm653, %v510, %v512
      %v655 = vsel %vm653, %v512, %v514
      %v656 = vsel %vm653, %v514, %v516
      %v657 = vsel %vm653, %v518, %v520
      %v658 = vsel %vm653, %v520, %v522
      %v659 = vsel %vm653, %v522, %v524
      %v660 = vsel %vm653, %v526, %v528
      %v661 = vsel %vm653, %v528, %v530
      %v662 = vsel %vm653, %v530, %v532
      %v663 = vsel %vm653, %v534, %v536
      %v664 = vsel %vm653, %v536, %v538
      %v665 = vsel %vm653, %v538, %v540
      %v666 = vsel %vm653, %v542, %v544
      %v667 = vsel %vm653, %v544, %v546
      %v668 = vsel %vm653, %v546, %v548
      %v669 = vsel %vm653, %v550, %v552
      %v670 = vsel %vm653, %v552, %v554
      %v671 = vsel %vm653, %v554, %v556
      %v672 = vsel %vm653, %v558, %v560
      %v673 = vsel %vm653, %v560, %v562
      %v674 = vsel %vm653, %v562, %v564
      %v675 = vsel %vm653, %v566, %v568
      %v676 = vsel %vm653, %v568, %v570
      %v677 = vsel %vm653, %v570, %v572
      %v678 = vsel %vm653, %v574, %v576
      %v679 = vsel %vm653, %v576, %v578
      %v680 = vsel %vm653, %v578, %v580
      %v681 = vsel %vm653, %v582, %v584
      %v682 = vsel %vm653, %v584, %v586
      %v683 = vsel %vm653, %v586, %v588
      %v684 = vsel %vm653, %v590, %v592
      %v685 = vsel %vm653, %v592, %v594
      %v686 = vsel %vm653, %v594, %v596
      %v687 = vsel %vm653, %v598, %v600
      %v688 = vsel %vm653, %v600, %v602
      %v689 = vsel %vm653, %v602, %v604
      %v690 = vsel %vm653, %v606, %v608
      %v691 = vsel %vm653, %v608, %v610
      %v692 = vsel %vm653, %v610, %v612
      %v693 = vsel %vm653, %v614, %v616
      %v694 = vsel %vm653, %v616, %v618
      %v695 = vsel %vm653, %v618, %v620
      %v696 = vsel %vm653, %v622, %v624
      %v697 = vsel %vm653, %v624, %v626
      %v698 = vsel %vm653, %v626, %v628
      %v699 = vsel %vm653, %v630, %v632
      %v700 = vsel %vm653, %v632, %v634
      %v701 = vsel %vm653, %v634, %v636
      %v702 = vsel %vm653, %v638, %v640
      %v703 = vsel %vm653, %v640, %v642
      %v704 = vsel %vm653, %v642, %v644
      %v705 = vsel %vm653, %v646, %v648
      %v706 = vsel %vm653, %v648, %v650
      %v707 = vsel %vm653, %v650, %v652
      %vm762 = vcmask 261120
      %v764 = vsel %vm762, %v506, 0
      %766 = vmatprep.subr.bf16.mxu0 %v655
      %767 = vmatpush1.bf16.msra.mxu0 %v654
      %768 = vmatprep.subr.bf16.mxu0 %v658
      %769 = vmatpush1.bf16.msra.mxu0 %v657
      %770 = vmatprep.subr.bf16.mxu0 %v661
      %771 = vmatpush1.bf16.msra.mxu0 %v660
      %772 = vmatprep.subr.bf16.mxu0 %v664
      %773 = vmatpush1.bf16.msra.mxu0 %v663
      %774 = vmatprep.subr.bf16.mxu0 %v667
      %775 = vmatpush1.bf16.msra.mxu0 %v666
      %776 = vmatprep.subr.bf16.mxu0 %v670
      %777 = vmatpush1.bf16.msra.mxu0 %v669
      %778 = vmatprep.subr.bf16.mxu0 %v673
      %779 = vmatpush1.bf16.msra.mxu0 %v672
      %780 = vmatprep.subr.bf16.mxu0 %v676
      %781 = vmatpush1.bf16.msra.mxu0 %v675
      %782 = vmatprep.subr.bf16.mxu0 %v679
      %783 = vmatpush1.bf16.msra.mxu0 %v678
      %784 = vmatprep.subr.bf16.mxu0 %v682
      %785 = vmatpush1.bf16.msra.mxu0 %v681
      %786 = vmatprep.subr.bf16.mxu0 %v685
      %787 = vmatpush1.bf16.msra.mxu0 %v684
      %788 = vmatprep.subr.bf16.mxu0 %v688
      %789 = vmatpush1.bf16.msra.mxu0 %v687
      %790 = vmatprep.subr.bf16.mxu0 %v691
      %791 = vmatpush1.bf16.msra.mxu0 %v690
      %792 = vmatprep.subr.bf16.mxu0 %v694
      %793 = vmatpush1.bf16.msra.mxu0 %v693
      %794 = vmatprep.subr.bf16.mxu0 %v697
      %795 = vmatpush1.bf16.msra.mxu0 %v696
      %796 = vmatprep.subr.bf16.mxu0 %v700
      %797 = vmatpush1.bf16.msra.mxu0 %v699
      %798 = vmatprep.mubr.bf16.mxu0 %v505
      %799 = vmatmul.mubr.bf16.gmra.mrb[0].mxu0 %v504
      %v800 = vpop.f32.mrb[0].mxu0
      %v801 = vadd.f32 %v487, %v800
      %v802 = vpop.f32.mrb[0].mxu0
      %v803 = vadd.f32 %v487, %v802
      %v804 = vpop.f32.mrb[0].mxu0
      %v805 = vadd.f32 %v492, %v804
      %v806 = vpop.f32.mrb[0].mxu0
      %v807 = vadd.f32 %v492, %v806
      %808 = vdwg.mxu0
      %809 = vmatprep.subr.bf16.mxu0 %v703
      %810 = vmatpush1.bf16.msra.mxu0 %v702
      %811 = vmatprep.subr.bf16.mxu0 %v706
      %812 = vmatpush1.bf16.msra.mxu0 %v705
      %813 = vmatprep.subr.bf16.mxu0 0
      %814 = vmatpush1.bf16.msra.mxu0 0
      %815 = vmatprep.subr.bf16.mxu0 0
      %816 = vmatpush1.bf16.msra.mxu0 0
      %817 = vmatprep.subr.bf16.mxu0 0
      %818 = vmatpush1.bf16.msra.mxu0 0
      %819 = vmatprep.subr.bf16.mxu0 0
      %820 = vmatpush1.bf16.msra.mxu0 0
      %821 = vmatprep.subr.bf16.mxu0 0
      %822 = vmatpush1.bf16.msra.mxu0 0
      %823 = vmatprep.subr.bf16.mxu0 0
      %824 = vmatpush1.bf16.msra.mxu0 0
      %825 = vmatprep.subr.bf16.mxu0 0
      %826 = vmatpush1.bf16.msra.mxu0 0
      %827 = vmatprep.subr.bf16.mxu0 0
      %828 = vmatpush1.bf16.msra.mxu0 0
      %829 = vmatprep.subr.bf16.mxu0 0
      %830 = vmatpush1.bf16.msra.mxu0 0
      %831 = vmatprep.subr.bf16.mxu0 0
      %832 = vmatpush1.bf16.msra.mxu0 0
      %833 = vmatprep.subr.bf16.mxu0 0
      %834 = vmatpush1.bf16.msra.mxu0 0
      %835 = vmatprep.subr.bf16.mxu0 0
      %836 = vmatpush1.bf16.msra.mxu0 0
      %837 = vmatprep.subr.bf16.mxu0 0
      %838 = vmatpush1.bf16.msra.mxu0 0
      %839 = vmatprep.subr.bf16.mxu0 0
      %840 = vmatpush1.bf16.msra.mxu0 0
      %841 = vmatprep.mubr.bf16.mxu0 0
      %842 = vmatmul.mubr.bf16.gmra.mrb[0].mxu0 %v764
      %v843 = vpop.f32.mrb[0].mxu0
      %v844 = vadd.f32 %v801, %v843
      %v845 = vpop.f32.mrb[0].mxu0
      %v846 = vadd.f32 %v803, %v845
      %v847 = vpop.f32.mrb[0].mxu0
      %v848 = vadd.f32 %v805, %v847
      %v849 = vpop.f32.mrb[0].mxu0
      %v850 = vadd.f32 %v807, %v849
      %851 = vdwg.mxu0
      %852 = vmatprep.subr.bf16.mxu0 0
      %853 = vmatpush1.bf16.msra.mxu0 %v656
      %854 = vmatprep.subr.bf16.mxu0 0
      %855 = vmatpush1.bf16.msra.mxu0 %v659
      %856 = vmatprep.subr.bf16.mxu0 0
      %857 = vmatpush1.bf16.msra.mxu0 %v662
      %858 = vmatprep.subr.bf16.mxu0 0
      %859 = vmatpush1.bf16.msra.mxu0 %v665
      %860 = vmatprep.subr.bf16.mxu0 0
      %861 = vmatpush1.bf16.msra.mxu0 %v668
      %862 = vmatprep.subr.bf16.mxu0 0
      %863 = vmatpush1.bf16.msra.mxu0 %v671
      %864 = vmatprep.subr.bf16.mxu0 0
      %865 = vmatpush1.bf16.msra.mxu0 %v674
      %866 = vmatprep.subr.bf16.mxu0 0
      %867 = vmatpush1.bf16.msra.mxu0 %v677
      %868 = vmatprep.subr.bf16.mxu0 0
      %869 = vmatpush1.bf16.msra.mxu0 %v680
      %870 = vmatprep.subr.bf16.mxu0 0
      %871 = vmatpush1.bf16.msra.mxu0 %v683
      %872 = vmatprep.subr.bf16.mxu0 0
      %873 = vmatpush1.bf16.msra.mxu0 %v686
      %874 = vmatprep.subr.bf16.mxu0 0
      %875 = vmatpush1.bf16.msra.mxu0 %v689
      %876 = vmatprep.subr.bf16.mxu0 0
      %877 = vmatpush1.bf16.msra.mxu0 %v692
      %878 = vmatprep.subr.bf16.mxu0 0
      %879 = vmatpush1.bf16.msra.mxu0 %v695
      %880 = vmatprep.subr.bf16.mxu0 0
      %881 = vmatpush1.bf16.msra.mxu0 %v698
      %882 = vmatprep.subr.bf16.mxu0 0
      %883 = vmatpush1.bf16.msra.mxu0 %v701
      %884 = vmatprep.mubr.bf16.mxu0 %v505
      %885 = vmatmul.mubr.bf16.gmra.mrb[0].mxu0 %v504
      %v886 = vpop.f32.mrb[0].mxu0
      %v887 = vadd.f32 %v487, %v886
      %v888 = vpop.f32.mrb[0].mxu0
      %v889 = vpop.f32.mrb[0].mxu0
      %v890 = vadd.f32 %v492, %v889
      %v891 = vpop.f32.mrb[0].mxu0
      %892 = vdwg.mxu0
      %893 = vmatprep.subr.bf16.mxu0 0
      %894 = vmatpush1.bf16.msra.mxu0 %v704
      %895 = vmatprep.subr.bf16.mxu0 0
      %896 = vmatpush1.bf16.msra.mxu0 %v707
      %897 = vmatprep.subr.bf16.mxu0 0
      %898 = vmatpush1.bf16.msra.mxu0 0
      %899 = vmatprep.subr.bf16.mxu0 0
      %900 = vmatpush1.bf16.msra.mxu0 0
      %901 = vmatprep.subr.bf16.mxu0 0
      %902 = vmatpush1.bf16.msra.mxu0 0
      %903 = vmatprep.subr.bf16.mxu0 0
      %904 = vmatpush1.bf16.msra.mxu0 0
      %905 = vmatprep.subr.bf16.mxu0 0
      %906 = vmatpush1.bf16.msra.mxu0 0
      %907 = vmatprep.subr.bf16.mxu0 0
      %908 = vmatpush1.bf16.msra.mxu0 0
      %909 = vmatprep.subr.bf16.mxu0 0
      %910 = vmatpush1.bf16.msra.mxu0 0
      %911 = vmatprep.subr.bf16.mxu0 0
      %912 = vmatpush1.bf16.msra.mxu0 0
      %913 = vmatprep.subr.bf16.mxu0 0
      %914 = vmatpush1.bf16.msra.mxu0 0
      %915 = vmatprep.subr.bf16.mxu0 0
      %916 = vmatpush1.bf16.msra.mxu0 0
      %917 = vmatprep.subr.bf16.mxu0 0
      %918 = vmatpush1.bf16.msra.mxu0 0
      %919 = vmatprep.subr.bf16.mxu0 0
      %920 = vmatpush1.bf16.msra.mxu0 0
      %921 = vmatprep.subr.bf16.mxu0 0
      %922 = vmatpush1.bf16.msra.mxu0 0
      %923 = vmatprep.subr.bf16.mxu0 0
      %924 = vmatpush1.bf16.msra.mxu0 0
      %925 = vmatprep.mubr.bf16.mxu0 0
      %926 = vmatmul.mubr.bf16.gmra.mrb[0].mxu0 %v764
      %v927 = vpop.f32.mrb[0].mxu0
      %v928 = vadd.f32 %v887, %v927
      %v929 = vpop.f32.mrb[0].mxu0
      %v930 = vpop.f32.mrb[0].mxu0
      %v931 = vadd.f32 %v890, %v930
      %v932 = vpop.f32.mrb[0].mxu0
      %933 = vdwg.mxu0
      %vm934 = vcmp.gt.f32.partialorder %v844, 0.0
      %vm935 = vcmp.gt.f32.partialorder %v846, 0.0
      %vm936 = vcmp.gt.f32.partialorder %v928, 0.0
      %vm937 = vcmp.gt.f32.partialorder %v848, 0.0
      %vm938 = vcmp.gt.f32.partialorder %v850, 0.0
      %vm939 = vcmp.gt.f32.partialorder %v931, 0.0
      %v940 = vmul.f32 %v844, 0.01
      %v941 = vmul.f32 %v846, 0.01
      %v942 = vmul.f32 %v928, 0.01
      %v943 = vmul.f32 %v848, 0.01
      %v944 = vmul.f32 %v850, 0.01
      %v945 = vmul.f32 %v931, 0.01
      %v946 = vsel %vm934, %v844, %v940
      %v947 = vsel %vm935, %v846, %v941
      %v948 = vsel %vm936, %v928, %v942
      %v949 = vsel %vm937, %v848, %v943
      %v950 = vsel %vm938, %v850, %v944
      %v951 = vsel %vm939, %v931, %v945
      %v952 = vld [vmem:[%s3] sm:$0x7]
      %v954 = vlaneseq
      %v955 = vshrl.u32 %v954, 7
      %v956 = vsub.s32 0, %v955
      %v957 = vrot.slane %v952, %v956
      %v958 = vlaneseq
      %v959 = vshrl.u32 %v958, 7
      %v960 = vsub.s32 1, %v959
      %v961 = vrot.slane %v952, %v960
      %v962 = vlaneseq
      %v963 = vshrl.u32 %v962, 7
      %v964 = vsub.s32 2, %v963
      %v965 = vrot.slane %v952, %v964
      %v969 = vmul.f32 %v946, %v957
      %v970 = vmul.f32 %v947, %v961
      %v971 = vmul.f32 %v948, %v965
      %v972 = vmul.f32 %v949, %v957
      %v973 = vmul.f32 %v950, %v961
      %v974 = vmul.f32 %v951, %v965
      %v975 = vld [vmem:[%s239] sm:$0xff]
      %v976 = vld [vmem:[%s239 + $0x8] sm:$0xff]
      %v977 = vld [vmem:[%s239 + $0x14] sm:$0xff]
      %v978 = vld [vmem:[%s239 + $0x1c] sm:$0xff]
      %v983 = vrot.slane %v975, 4
      %v984 = vrot.slane %v976, 4
      %v985 = vrot.slane %v977, 4
      %v986 = vrot.slane %v978, 4
      %vm987 = vcmask 1043456
      %v988 = vsel %vm987, %v983, %v984
      %v989 = vsel %vm987, %v985, %v986
      %v994 = vunpack.c.l.bf16 %v988
      %v995 = vunpack.c.h.bf16 %v988
      %v996 = vunpack.c.l.bf16 %v984
      %v997 = vunpack.c.l.bf16 %v989
      %v998 = vunpack.c.h.bf16 %v989
      %v999 = vunpack.c.l.bf16 %v986
      %v1000 = vadd.f32 %v969, %v994
      %v1001 = vadd.f32 %v970, %v995
      %v1002 = vadd.f32 %v971, %v996
      %v1003 = vadd.f32 %v972, %v997
      %v1004 = vadd.f32 %v973, %v998
      %v1005 = vadd.f32 %v974, %v999
      %1006 = vst [vmem:[%s244] sm:$0xff] 0.0
      %1007 = vst [vmem:[%s244 + $0x8] sm:$0xff] 0.0
      %1008 = vst [vmem:[%s244 + $0x10] sm:$0xff] 0.0
      %1009 = vst [vmem:[%s244 + $0x18] sm:$0xff] 0.0
      %1010 = vst [vmem:[%s244 + $0x20] sm:$0xff] 0.0
      %1011 = vst [vmem:[%s244 + $0x28] sm:$0xff] 0.0
      %1012 = vst [vmem:[%s244 + $0x30] sm:$0xff] 0.0
      %1013 = vst [vmem:[%s244 + $0x38] sm:$0xff] 0.0
      %1014 = vst [vmem:[%s244 + $0x40] sm:$0xff] 0.0
      %1015 = vst [vmem:[%s244 + $0x48] sm:$0xff] 0.0
      %1016 = vst [vmem:[%s244 + $0x8] sm:$0xff] %v1000
      %1017 = vst [vmem:[%s244 + $0x10] sm:$0xff] %v1001
      %1018 = vst [vmem:[%s244 + $0x18] sm:$0xff] %v1002
      %1019 = vst [vmem:[%s244 + $0x30] sm:$0xff] %v1003
      %1020 = vst [vmem:[%s244 + $0x38] sm:$0xff] %v1004
      %1021 = vst [vmem:[%s244 + $0x40] sm:$0xff] %v1005
      %p1022 = scmp.lt.s32.totalorder %s16, 1
      %s1023 = scalar_select %p1022, %s16, 1
      %s1024 = smul.addr %s1023, 10
      %s1025 = smul.addr %s1024, 8
      %s1026 = scalar_lea.vmem %s5, %s1025
      // Predicated region
      $region41: #{_lambda_.11} parent=39 // pred_check
        %p1027 = pneg %p149
      $region42: #{_lambda_.11} parent=39 // pred_check_branch
        %1029 = sbr.rel (%p1027) target = $region44
      $region43: #{_lambda_.11} parent=39 // pred_region
        _
      $region44: #{_lambda_.11} parent=39 // pred_fallthru
        _
    $region40: #{_lambda_.11} parent=5 // pred_fallthru
      _
    %p1030 = scmp.le.s32.totalorder 2, %s11
    // Predicated region
    $region45: #{_lambda_.11} parent=5 // pred_check
      %p1031 = pneg %p1030
    $region46: #{_lambda_.11} parent=5 // pred_check_branch
      %1033 = sbr.rel (%p1031) target = $region48
    $region47: #{_lambda_.11} parent=5 // pred_region
      %s1034 = ssub.s32 %s11, 2
      // Predicated region
      $region49: #{_lambda_.11} parent=47 // pred_check
        %p1035 = pneg %p155
      $region50: #{_lambda_.11} parent=47 // pred_check_branch
        %1037 = sbr.rel (%p1035) target = $region52
      $region51: #{_lambda_.11} parent=47 // pred_region
        %p1038 = scmp.lt.s32.totalorder %s17, 1
        %s1039 = scalar_select %p1038, %s17, 1
        %s1040 = smul.addr %s1039, 10
        %s1041 = smul.addr %s1040, 8
        %s1042 = scalar_lea.vmem %s5, %s1041
      $region52: #{_lambda_.11} parent=47 // pred_fallthru
        _
    $region48: #{_lambda_.11} parent=5 // pred_fallthru
      _
  $region6: #{_lambda_.11} parent=0 // loop_footer
    %s15 = sadd.s32 1, %s11
  $region7: #{_lambda_.11} parent=0 // loop_footer_branch
    %10 = sbr.rel target = $region3
  $region8: #{_lambda_.11} parent=0 // loop_exit
    _

</llo_original>
